<compile_context>
chip_gen: v5e
topology: v5e:2x2
jax: 0.10.0
libtpu: 0.0.40
codegen_flags: <defaults>
</compile_context>

<pallas_src>
import jax
import jax.numpy as jnp
import numpy as np
from jax.experimental import pallas as pl
from jax.experimental.pallas import tpu as pltpu  # noqa: F401  (TPU backend)


def gmvae_kernel(x_ref, e_ref,
                 w1x_ref, w1y_ref, w2_ref, w34_ref, b34_ref,
                 wd1_ref, wd2_ref, wd3_ref,
                 px_ref):
    """All mixtures at once: Q_z encoder -> reparameterize -> P_x decoder."""
    B = x_ref.shape[0]
    M, H = w1y_ref.shape
    L = e_ref.shape[1]                      # latent width

    x = x_ref[...]                          # (B, D)     bf16
    e = e_ref[...]                          # (M*B, L)   f32

    # --- Q_z first layer ---------------------------------------------------
    # x @ W1x computed ONCE (identical for every mixture).
    xw1 = jnp.dot(x, w1x_ref[...],
                  preferred_element_type=jnp.float32)          # (B, H) f32
    # one-hot y[i] @ W1y == W1y[i, :]  ->  pure VPU broadcast-add.
    w1y = w1y_ref[...].astype(jnp.float32)                     # (M, H)
    h1 = jnp.maximum(xw1[None, :, :] + w1y[:, None, :], 0.0)   # (M, B, H) f32
    h1 = h1.reshape(M * B, H).astype(jnp.bfloat16)             # (MB, H)

    # --- Q_z second layer + fused zm|zv heads -------------------------------
    h2 = jnp.maximum(
        jnp.dot(h1, w2_ref[...], preferred_element_type=jnp.float32), 0.0)
    zmv = (jnp.dot(h2.astype(jnp.bfloat16), w34_ref[...],
                   preferred_element_type=jnp.float32)
           + b34_ref[...].astype(jnp.float32))                 # (MB, 2L) f32
    zm = zmv[:, :L]
    zv = jnp.logaddexp(zmv[:, L:], 0.0)      # softplus (f32, EUP)
    z = e * zv + zm                          # reparameterization (f32)

    # --- P_x decoder --------------------------------------------------------
    d1 = jnp.maximum(
        jnp.dot(z.astype(jnp.bfloat16), wd1_ref[...],
                preferred_element_type=jnp.float32), 0.0)
    d2 = jnp.maximum(
        jnp.dot(d1.astype(jnp.bfloat16), wd2_ref[...],
                preferred_element_type=jnp.float32), 0.0)
    px_ref[...] = jnp.dot(d2.astype(jnp.bfloat16), wd3_ref[...],
                          preferred_element_type=jnp.float32)  # (MB, D) f32


def gmvae_forward(x, e, params):
    """x: (B, D) f32; e: (M, B, L) f32 noise; params: bf16 weights.

    Returns px_batch: (M, B, D) f32 — same as PyTorch GMVAE.forward.
    """
    B, D = x.shape
    M, _, L = e.shape

    px_flat = pl.pallas_call(
        gmvae_kernel,
        out_shape=jax.ShapeDtypeStruct((M * B, D), jnp.float32),
    )(x.astype(jnp.bfloat16),
      e.reshape(M * B, L),
      params["w1x"], params["w1y"], params["w2"],
      params["w34"], params["b34"],
      params["wd1"], params["wd2"], params["wd3"])

    return px_flat.reshape(M, B, D)


def gmvae_reference(x, e, params):
    """Plain-JAX reference with the identical bf16-matmul / f32-elementwise recipe."""
    M, _, L = e.shape

    def mm(a, w):
        return jnp.dot(a.astype(jnp.bfloat16), w,
                       preferred_element_type=jnp.float32)

    xw1 = mm(x, params["w1x"])
    w1y = params["w1y"].astype(jnp.float32)
    b34 = params["b34"].astype(jnp.float32)
    outs = []
    for i in range(M):
        h1 = jax.nn.relu(xw1 + w1y[i][None, :])
        h2 = jax.nn.relu(mm(h1, params["w2"]))
        zmv = mm(h2, params["w34"]) + b34
        zm = zmv[:, :L]
        zv = jax.nn.softplus(zmv[:, L:])
        z = e[i] * zv + zm
        d1 = jax.nn.relu(mm(z, params["wd1"]))
        d2 = jax.nn.relu(mm(d1, params["wd2"]))
        outs.append(mm(d2, params["wd3"]))
    return jnp.stack(outs, axis=0)


if __name__ == "__main__":
    # Small shapes consistent with the module (hidden 512 hard-coded there).
    B = 8          # batch
    D = 256        # input_features (flattened)
    L = 64         # latent_features
    M = 8          # mixtures_count
    H = 512        # hidden width

    key = jax.random.PRNGKey(0)
    keys = jax.random.split(key, 12)
    scale = 0.05
    bf16 = jnp.bfloat16

    # Q_z heads generated separately, then fused into a lane-dense (H, 2L) slab.
    w3 = scale * jax.random.normal(keys[3], (H, L), jnp.float32)
    b3 = scale * jax.random.normal(keys[4], (1, L), jnp.float32)
    w4 = scale * jax.random.normal(keys[5], (H, L), jnp.float32)
    b4 = scale * jax.random.normal(keys[6], (1, L), jnp.float32)

    params = {
        # Q_z encoder; Linear weights stored transposed as (in, out); the
        # (D + M, H) concat layer is split into x-part and y-part.
        "w1x": (scale * jax.random.normal(keys[0], (D, H), jnp.float32)).astype(bf16),
        "w1y": (scale * jax.random.normal(keys[1], (M, H), jnp.float32)).astype(bf16),
        "w2":  (scale * jax.random.normal(keys[2], (H, H), jnp.float32)).astype(bf16),
        "w34": jnp.concatenate([w3, w4], axis=1).astype(bf16),   # (H, 2L)
        "b34": jnp.concatenate([b3, b4], axis=1).astype(bf16),   # (1, 2L)
        # P_x decoder.
        "wd1": (scale * jax.random.normal(keys[7], (L, H), jnp.float32)).astype(bf16),
        "wd2": (scale * jax.random.normal(keys[8], (H, H), jnp.float32)).astype(bf16),
        "wd3": (scale * jax.random.normal(keys[9], (H, D), jnp.float32)).astype(bf16),
    }

    # Flattened input x and the Normal(0,1) reparameterization noise e
    # (the stochastic sample in Q_z), drawn deterministically here.
    x = jax.random.normal(keys[10], (B, D), jnp.float32)
    e = jax.random.normal(keys[11], (M, B, L), jnp.float32)

    px_batch = gmvae_forward(x, e, params)
    px_batch = jax.block_until_ready(px_batch)

    ref = gmvae_reference(x, e, params)
    np.testing.assert_allclose(np.asarray(px_batch), np.asarray(ref),
                               rtol=5e-3, atol=5e-3)

    assert px_batch.shape == (M, B, D)
    print("KERNEL_OK")
</pallas_src>

<mosaic_0001>
module attributes {stable_mosaic.version = 11 : i64} {
  func.func @gmvae_kernel(%arg0: memref<8x256xbf16, #tpu.memory_space<vmem>>, %arg1: memref<64x64xf32, #tpu.memory_space<vmem>>, %arg2: memref<256x512xbf16, #tpu.memory_space<vmem>>, %arg3: memref<8x512xbf16, #tpu.memory_space<vmem>>, %arg4: memref<512x512xbf16, #tpu.memory_space<vmem>>, %arg5: memref<512x128xbf16, #tpu.memory_space<vmem>>, %arg6: memref<1x128xbf16, #tpu.memory_space<vmem>>, %arg7: memref<64x512xbf16, #tpu.memory_space<vmem>>, %arg8: memref<512x512xbf16, #tpu.memory_space<vmem>>, %arg9: memref<512x256xbf16, #tpu.memory_space<vmem>>, %arg10: memref<64x256xf32, #tpu.memory_space<vmem>>) attributes {dimension_semantics = [], scalar_prefetch = 0 : i64, scratch_operands = 0 : i64, tpu.core_type = #tpu.core_type<tc>} {
    %c0 = arith.constant 0 : index
    %c0_0 = arith.constant 0 : index
    %0 = vector.load %arg0[%c0, %c0_0] : memref<8x256xbf16, #tpu.memory_space<vmem>>, vector<8x256xbf16>
    %c0_1 = arith.constant 0 : index
    %c0_2 = arith.constant 0 : index
    %1 = vector.load %arg1[%c0_1, %c0_2] : memref<64x64xf32, #tpu.memory_space<vmem>>, vector<64x64xf32>
    %c0_3 = arith.constant 0 : index
    %c0_4 = arith.constant 0 : index
    %2 = vector.load %arg2[%c0_3, %c0_4] : memref<256x512xbf16, #tpu.memory_space<vmem>>, vector<256x512xbf16>
    %cst = arith.constant dense<0.000000e+00> : vector<8x512xf32>
    %3 = tpu.matmul %0, %2, %cst {dimension_numbers = #tpu.dot_dimension_numbers<[1], [0], [0], [1], [0, 0, 1, 1], [], []>} : vector<8x256xbf16>, vector<256x512xbf16>, vector<8x512xf32> -> vector<8x512xf32>
    %c0_5 = arith.constant 0 : index
    %c0_6 = arith.constant 0 : index
    %4 = vector.load %arg3[%c0_5, %c0_6] : memref<8x512xbf16, #tpu.memory_space<vmem>>, vector<8x512xbf16>
    %5 = arith.extf %4 : vector<8x512xbf16> to vector<8x512xf32>
    %6 = vector.shape_cast %3 : vector<8x512xf32> to vector<1x8x512xf32>
    %7 = vector.shape_cast %5 : vector<8x512xf32> to vector<8x1x512xf32>
    %8 = vector.broadcast %6 : vector<1x8x512xf32> to vector<8x8x512xf32>
    %9 = vector.broadcast %7 : vector<8x1x512xf32> to vector<8x8x512xf32>
    %10 = arith.addf %8, %9 : vector<8x8x512xf32>
    %cst_7 = arith.constant 0.000000e+00 : f32
    %11 = vector.broadcast %cst_7 : f32 to vector<8x8x512xf32>
    %12 = arith.maximumf %10, %11 : vector<8x8x512xf32>
    %13 = vector.shape_cast %12 : vector<8x8x512xf32> to vector<64x512xf32>
    %14 = arith.truncf %13 : vector<64x512xf32> to vector<64x512xbf16>
    %c0_8 = arith.constant 0 : index
    %c0_9 = arith.constant 0 : index
    %15 = vector.load %arg4[%c0_8, %c0_9] : memref<512x512xbf16, #tpu.memory_space<vmem>>, vector<512x512xbf16>
    %cst_10 = arith.constant dense<0.000000e+00> : vector<64x512xf32>
    %16 = tpu.matmul %14, %15, %cst_10 {dimension_numbers = #tpu.dot_dimension_numbers<[1], [0], [0], [1], [0, 0, 1, 1], [], []>} : vector<64x512xbf16>, vector<512x512xbf16>, vector<64x512xf32> -> vector<64x512xf32>
    %cst_11 = arith.constant 0.000000e+00 : f32
    %17 = vector.broadcast %cst_11 : f32 to vector<64x512xf32>
    %18 = arith.maximumf %16, %17 : vector<64x512xf32>
    %19 = arith.truncf %18 : vector<64x512xf32> to vector<64x512xbf16>
    %c0_12 = arith.constant 0 : index
    %c0_13 = arith.constant 0 : index
    %20 = vector.load %arg5[%c0_12, %c0_13] : memref<512x128xbf16, #tpu.memory_space<vmem>>, vector<512x128xbf16>
    %cst_14 = arith.constant dense<0.000000e+00> : vector<64x128xf32>
    %21 = tpu.matmul %19, %20, %cst_14 {dimension_numbers = #tpu.dot_dimension_numbers<[1], [0], [0], [1], [0, 0, 1, 1], [], []>} : vector<64x512xbf16>, vector<512x128xbf16>, vector<64x128xf32> -> vector<64x128xf32>
    %c0_15 = arith.constant 0 : index
    %c0_16 = arith.constant 0 : index
    %22 = vector.load %arg6[%c0_15, %c0_16] : memref<1x128xbf16, #tpu.memory_space<vmem>>, vector<1x128xbf16>
    %23 = arith.extf %22 : vector<1x128xbf16> to vector<1x128xf32>
    %24 = vector.broadcast %23 : vector<1x128xf32> to vector<64x128xf32>
    %25 = arith.addf %21, %24 : vector<64x128xf32>
    %26 = vector.extract_strided_slice %25 {offsets = [0, 0], sizes = [64, 64], strides = [1, 1]} : vector<64x128xf32> to vector<64x64xf32>
    %27 = vector.extract_strided_slice %25 {offsets = [0, 64], sizes = [64, 64], strides = [1, 1]} : vector<64x128xf32> to vector<64x64xf32>
    %cst_17 = arith.constant 0.000000e+00 : f32
    %28 = vector.broadcast %cst_17 : f32 to vector<64x64xf32>
    %29 = arith.maximumf %27, %28 : vector<64x64xf32>
    %30 = vector.broadcast %cst_17 : f32 to vector<64x64xf32>
    %31 = arith.subf %27, %30 : vector<64x64xf32>
    %32 = arith.cmpf one, %31, %31 : vector<64x64xf32>
    %33 = vector.broadcast %cst_17 : f32 to vector<64x64xf32>
    %34 = arith.addf %27, %33 : vector<64x64xf32>
    %35 = math.absf %31 : vector<64x64xf32>
    %cst_18 = arith.constant 0.000000e+00 : f32
    %36 = vector.broadcast %cst_18 : f32 to vector<64x64xf32>
    %37 = arith.subf %36, %35 : vector<64x64xf32>
    %38 = math.exp %37 : vector<64x64xf32>
    %39 = math.log1p %38 : vector<64x64xf32>
    %40 = arith.addf %29, %39 : vector<64x64xf32>
    %41 = arith.select %32, %34, %40 : vector<64x64xi1>, vector<64x64xf32>
    %42 = arith.mulf %1, %41 : vector<64x64xf32>
    %43 = arith.addf %42, %26 : vector<64x64xf32>
    %44 = arith.truncf %43 : vector<64x64xf32> to vector<64x64xbf16>
    %c0_19 = arith.constant 0 : index
    %c0_20 = arith.constant 0 : index
    %45 = vector.load %arg7[%c0_19, %c0_20] : memref<64x512xbf16, #tpu.memory_space<vmem>>, vector<64x512xbf16>
    %cst_21 = arith.constant dense<0.000000e+00> : vector<64x512xf32>
    %46 = tpu.matmul %44, %45, %cst_21 {dimension_numbers = #tpu.dot_dimension_numbers<[1], [0], [0], [1], [0, 0, 1, 1], [], []>} : vector<64x64xbf16>, vector<64x512xbf16>, vector<64x512xf32> -> vector<64x512xf32>
    %cst_22 = arith.constant 0.000000e+00 : f32
    %47 = vector.broadcast %cst_22 : f32 to vector<64x512xf32>
    %48 = arith.maximumf %46, %47 : vector<64x512xf32>
    %49 = arith.truncf %48 : vector<64x512xf32> to vector<64x512xbf16>
    %c0_23 = arith.constant 0 : index
    %c0_24 = arith.constant 0 : index
    %50 = vector.load %arg8[%c0_23, %c0_24] : memref<512x512xbf16, #tpu.memory_space<vmem>>, vector<512x512xbf16>
    %cst_25 = arith.constant dense<0.000000e+00> : vector<64x512xf32>
    %51 = tpu.matmul %49, %50, %cst_25 {dimension_numbers = #tpu.dot_dimension_numbers<[1], [0], [0], [1], [0, 0, 1, 1], [], []>} : vector<64x512xbf16>, vector<512x512xbf16>, vector<64x512xf32> -> vector<64x512xf32>
    %cst_26 = arith.constant 0.000000e+00 : f32
    %52 = vector.broadcast %cst_26 : f32 to vector<64x512xf32>
    %53 = arith.maximumf %51, %52 : vector<64x512xf32>
    %54 = arith.truncf %53 : vector<64x512xf32> to vector<64x512xbf16>
    %c0_27 = arith.constant 0 : index
    %c0_28 = arith.constant 0 : index
    %55 = vector.load %arg9[%c0_27, %c0_28] : memref<512x256xbf16, #tpu.memory_space<vmem>>, vector<512x256xbf16>
    %cst_29 = arith.constant dense<0.000000e+00> : vector<64x256xf32>
    %56 = tpu.matmul %54, %55, %cst_29 {dimension_numbers = #tpu.dot_dimension_numbers<[1], [0], [0], [1], [0, 0, 1, 1], [], []>} : vector<64x512xbf16>, vector<512x256xbf16>, vector<64x256xf32> -> vector<64x256xf32>
    %c0_30 = arith.constant 0 : index
    %c0_31 = arith.constant 0 : index
    %57 = vector.load %arg10[%c0_30, %c0_31] : memref<64x256xf32, #tpu.memory_space<vmem>>, vector<64x256xf32>
    tpu.vector_store %arg10[%c0_30, %c0_31], %56 {strides = array<i32>} : memref<64x256xf32, #tpu.memory_space<vmem>>, vector<64x256xf32>,
    return
  }
}

</mosaic_0001>

<llo_original>
// kernel: tpu_custom_call.1
$region0: #{tpu_custom_call.1}
  #allocation0 [shape = 'u32[]', space=smem, size = 0x4, offset = 0x4, fixed_abs, tag = 'smem constant byte address 0x4 - core index']
  #allocation1 [shape = 'u32[72,128]{1,0:T(1,128)}', space=vmem, size = 0x9000, scoped, tag = 'internal scratch']
  %s0 = inlined_call_operand.hbm [shape: bf16[8,256], index: 0, kind: input, shape index: {}]
  %s1 = inlined_call_operand.hbm [shape: f32[64,64], index: 1, kind: input, shape index: {}]
  %s2 = inlined_call_operand.hbm [shape: bf16[256,512], index: 2, kind: input, shape index: {}]
  %s3 = inlined_call_operand.hbm [shape: bf16[8,512], index: 3, kind: input, shape index: {}]
  %s4 = inlined_call_operand.hbm [shape: bf16[512,512], index: 4, kind: input, shape index: {}]
  %s5 = inlined_call_operand.hbm [shape: bf16[512,128], index: 5, kind: input, shape index: {}]
  %s6 = inlined_call_operand.vmem [shape: bf16[1,128], index: 6, kind: input, shape index: {}]
  %s7 = inlined_call_operand.hbm [shape: bf16[64,512], index: 7, kind: input, shape index: {}]
  %s8 = inlined_call_operand.hbm [shape: bf16[512,512], index: 8, kind: input, shape index: {}]
  %s9 = inlined_call_operand.hbm [shape: bf16[512,256], index: 9, kind: input, shape index: {}]
  %s10 = inlined_call_operand.hbm [shape: f32[64,256], index: 10, kind: output, shape index: {}]
  %s11 = sld [smem:[#allocation0]]
  $region86: #{tpu_custom_call.1} parent=0
    _
  %s13 = ssub.s32 1, %s11
  %s14 = scalar_select 0, %s13, %s11
  $region1: #{tpu_custom_call.1} parent=0
    #allocation2 [shape = 'u8[4096]{0}', space=vmem, size = 0x1000, scoped, tag = 'input window, operand 0, single buffered']
    #allocation3 [shape = 's32[1]{0}', space=sflag, size = 0x4, scoped, tag = 'scoped memory for tpu_custom_call.1']
    #allocation4 [shape = 's32[1]{0}', space=sflag, size = 0x4, scoped, tag = 'scoped memory for tpu_custom_call.1']
    #allocation5 [shape = 'u8[32768]{0}', space=vmem, size = 0x8000, scoped, tag = 'input window, operand 1, single buffered']
    #allocation6 [shape = 's32[1]{0}', space=sflag, size = 0x4, scoped, tag = 'scoped memory for tpu_custom_call.1']
    #allocation7 [shape = 'u8[262144]{0}', space=vmem, size = 0x40000, scoped, tag = 'input window, operand 2, single buffered']
    #allocation8 [shape = 'u8[8192]{0}', space=vmem, size = 0x2000, scoped, tag = 'input window, operand 3, single buffered']
    #allocation9 [shape = 's32[1]{0}', space=sflag, size = 0x4, scoped, tag = 'scoped memory for tpu_custom_call.1']
    #allocation10 [shape = 'u8[524288]{0}', space=vmem, size = 0x80000, scoped, tag = 'input window, operand 4, single buffered']
    #allocation11 [shape = 'u8[131072]{0}', space=vmem, size = 0x20000, scoped, tag = 'input window, operand 5, single buffered']
    #allocation12 [shape = 's32[1]{0}', space=sflag, size = 0x4, scoped, tag = 'scoped memory for tpu_custom_call.1']
    #allocation13 [shape = 'u8[65536]{0}', space=vmem, size = 0x10000, scoped, tag = 'input window, operand 7, single buffered']
    #allocation14 [shape = 'u8[524288]{0}', space=vmem, size = 0x80000, scoped, tag = 'input window, operand 8, single buffered']
    #allocation15 [shape = 's32[1]{0}', space=sflag, size = 0x4, scoped, tag = 'scoped memory for tpu_custom_call.1']
    #allocation16 [shape = 'u8[262144]{0}', space=vmem, size = 0x40000, scoped, tag = 'input window, operand 9, single buffered']
    #allocation17 [shape = 'u8[65536]{0}', space=vmem, size = 0x10000, scoped, tag = 'output window, operand 0, single buffered']
    %15 = vsyncpa [#allocation3], 0
    %16 = vsyncpa [#allocation6], 0
    %17 = vsyncpa [#allocation9], 0
    %18 = vsyncpa [#allocation12], 0
    %19 = vsyncpa [#allocation15], 0
    %20 = vsyncpa [#allocation4], 0
    // Predicated region
    $region2: #{tpu_custom_call.1} parent=1 // pred_check
      _
    $region3: #{tpu_custom_call.1} parent=1 // pred_check_branch
      %22 = sbr.rel (0) target = $region5
    $region4: #{tpu_custom_call.1} parent=1 // pred_region
      %24 = vsyncadd [#allocation3], 0
      %s26 = sshll.u32 %s0, 4
      %s27 = int_to_ptr.hbm [resolvable:$true] %s26
      %s28 = sshll.u32 [#allocation2], 4
      %s29 = int_to_ptr.vmem [resolvable:$true] %s28
      %31 = dma.hbm_to_vmem [thread:$0]  %s27, 128, %s29, [#allocation3]
    $region5: #{tpu_custom_call.1} parent=1 // pred_fallthru
      _
    // Predicated region
    $region6: #{tpu_custom_call.1} parent=1 // pred_check
      _
    $region7: #{tpu_custom_call.1} parent=1 // pred_check_branch
      %33 = sbr.rel (0) target = $region9
    $region8: #{tpu_custom_call.1} parent=1 // pred_region
      %35 = vsyncadd [#allocation6], 0
      %s36 = sshll.u32 %s1, 4
      %s37 = int_to_ptr.hbm [resolvable:$true] %s36
      %s38 = sshll.u32 [#allocation5], 4
      %s39 = int_to_ptr.vmem [resolvable:$true] %s38
      %44 = dma.hbm_to_vmem [thread:$0]  %s37, 1024, %s39, [#allocation6], 128, 128, 8
    $region9: #{tpu_custom_call.1} parent=1 // pred_fallthru
      _
    // Predicated region
    $region10: #{tpu_custom_call.1} parent=1 // pred_check
      _
    $region11: #{tpu_custom_call.1} parent=1 // pred_check_branch
      %46 = sbr.rel (0) target = $region13
    $region12: #{tpu_custom_call.1} parent=1 // pred_region
      %48 = vsyncadd [#allocation6], 0
      %s49 = sshll.u32 %s2, 4
      %s50 = int_to_ptr.hbm [resolvable:$true] %s49
      %s51 = sshll.u32 [#allocation7], 4
      %s52 = int_to_ptr.vmem [resolvable:$true] %s51
      %57 = dma.hbm_to_vmem [thread:$0]  %s50, 8192, %s52, [#allocation6], 256, 256, 16
    $region13: #{tpu_custom_call.1} parent=1 // pred_fallthru
      _
    // Predicated region
    $region14: #{tpu_custom_call.1} parent=1 // pred_check
      _
    $region15: #{tpu_custom_call.1} parent=1 // pred_check_branch
      %59 = sbr.rel (0) target = $region17
    $region16: #{tpu_custom_call.1} parent=1 // pred_region
      %61 = vsyncadd [#allocation9], 0
      %s63 = sshll.u32 %s3, 4
      %s64 = int_to_ptr.hbm [resolvable:$true] %s63
      %s65 = sshll.u32 [#allocation8], 4
      %s66 = int_to_ptr.vmem [resolvable:$true] %s65
      %68 = dma.hbm_to_vmem [thread:$0]  %s64, 256, %s66, [#allocation9]
    $region17: #{tpu_custom_call.1} parent=1 // pred_fallthru
      _
    // Predicated region
    $region18: #{tpu_custom_call.1} parent=1 // pred_check
      _
    $region19: #{tpu_custom_call.1} parent=1 // pred_check_branch
      %70 = sbr.rel (0) target = $region21
    $region20: #{tpu_custom_call.1} parent=1 // pred_region
      %72 = vsyncadd [#allocation9], 0
      %s73 = sshll.u32 %s4, 4
      %s74 = int_to_ptr.hbm [resolvable:$true] %s73
      %s75 = sshll.u32 [#allocation10], 4
      %s76 = int_to_ptr.vmem [resolvable:$true] %s75
      %81 = dma.hbm_to_vmem [thread:$0]  %s74, 16384, %s76, [#allocation9], 256, 256, 16
    $region21: #{tpu_custom_call.1} parent=1 // pred_fallthru
      _
    // Predicated region
    $region22: #{tpu_custom_call.1} parent=1 // pred_check
      _
    $region23: #{tpu_custom_call.1} parent=1 // pred_check_branch
      %83 = sbr.rel (0) target = $region25
    $region24: #{tpu_custom_call.1} parent=1 // pred_region
      %85 = vsyncadd [#allocation12], 0
      %s86 = sshll.u32 %s5, 4
      %s87 = int_to_ptr.hbm [resolvable:$true] %s86
      %s88 = sshll.u32 [#allocation11], 4
      %s89 = int_to_ptr.vmem [resolvable:$true] %s88
      %94 = dma.hbm_to_vmem [thread:$0]  %s87, 4096, %s89, [#allocation12], 64, 64, 4
    $region25: #{tpu_custom_call.1} parent=1 // pred_fallthru
      _
    // Predicated region
    $region26: #{tpu_custom_call.1} parent=1 // pred_check
      _
    $region27: #{tpu_custom_call.1} parent=1 // pred_check_branch
      %96 = sbr.rel (0) target = $region29
    $region28: #{tpu_custom_call.1} parent=1 // pred_region
      _
    $region29: #{tpu_custom_call.1} parent=1 // pred_fallthru
      _
    // Predicated region
    $region30: #{tpu_custom_call.1} parent=1 // pred_check
      _
    $region31: #{tpu_custom_call.1} parent=1 // pred_check_branch
      %98 = sbr.rel (0) target = $region33
    $region32: #{tpu_custom_call.1} parent=1 // pred_region
      %100 = vsyncadd [#allocation12], 0
      %s101 = sshll.u32 %s7, 4
      %s102 = int_to_ptr.hbm [resolvable:$true] %s101
      %s103 = sshll.u32 [#allocation13], 4
      %s104 = int_to_ptr.vmem [resolvable:$true] %s103
      %109 = dma.hbm_to_vmem [thread:$0]  %s102, 2048, %s104, [#allocation12], 256, 256, 16
    $region33: #{tpu_custom_call.1} parent=1 // pred_fallthru
      _
    // Predicated region
    $region34: #{tpu_custom_call.1} parent=1 // pred_check
      _
    $region35: #{tpu_custom_call.1} parent=1 // pred_check_branch
      %111 = sbr.rel (0) target = $region37
    $region36: #{tpu_custom_call.1} parent=1 // pred_region
      %113 = vsyncadd [#allocation15], 0
      %s114 = sshll.u32 %s8, 4
      %s115 = int_to_ptr.hbm [resolvable:$true] %s114
      %s116 = sshll.u32 [#allocation14], 4
      %s117 = int_to_ptr.vmem [resolvable:$true] %s116
      %122 = dma.hbm_to_vmem [thread:$0]  %s115, 16384, %s117, [#allocation15], 256, 256, 16
    $region37: #{tpu_custom_call.1} parent=1 // pred_fallthru
      _
    // Predicated region
    $region38: #{tpu_custom_call.1} parent=1 // pred_check
      _
    $region39: #{tpu_custom_call.1} parent=1 // pred_check_branch
      %124 = sbr.rel (0) target = $region41
    $region40: #{tpu_custom_call.1} parent=1 // pred_region
      %126 = vsyncadd [#allocation15], 0
      %s127 = sshll.u32 %s9, 4
      %s128 = int_to_ptr.hbm [resolvable:$true] %s127
      %s129 = sshll.u32 [#allocation16], 4
      %s130 = int_to_ptr.vmem [resolvable:$true] %s129
      %135 = dma.hbm_to_vmem [thread:$0]  %s128, 8192, %s130, [#allocation15], 128, 128, 8
    $region41: #{tpu_custom_call.1} parent=1 // pred_fallthru
      _
    // Predicated region
    $region42: #{tpu_custom_call.1} parent=1 // pred_check
      _
    $region43: #{tpu_custom_call.1} parent=1 // pred_check_branch
      %137 = sbr.rel (0) target = $region45
    $region44: #{tpu_custom_call.1} parent=1 // pred_region
      %139 = dma.done [#allocation3], 128
    $region45: #{tpu_custom_call.1} parent=1 // pred_fallthru
      _
    // Predicated region
    $region46: #{tpu_custom_call.1} parent=1 // pred_check
      _
    $region47: #{tpu_custom_call.1} parent=1 // pred_check_branch
      %141 = sbr.rel (0) target = $region49
    $region48: #{tpu_custom_call.1} parent=1 // pred_region
      %143 = dma.done [#allocation6], 1024
    $region49: #{tpu_custom_call.1} parent=1 // pred_fallthru
      _
    // Predicated region
    $region50: #{tpu_custom_call.1} parent=1 // pred_check
      _
    $region51: #{tpu_custom_call.1} parent=1 // pred_check_branch
      %145 = sbr.rel (0) target = $region53
    $region52: #{tpu_custom_call.1} parent=1 // pred_region
      %147 = dma.done [#allocation6], 8192
    $region53: #{tpu_custom_call.1} parent=1 // pred_fallthru
      _
    // Predicated region
    $region54: #{tpu_custom_call.1} parent=1 // pred_check
      _
    $region55: #{tpu_custom_call.1} parent=1 // pred_check_branch
      %149 = sbr.rel (0) target = $region57
    $region56: #{tpu_custom_call.1} parent=1 // pred_region
      %151 = dma.done [#allocation9], 256
    $region57: #{tpu_custom_call.1} parent=1 // pred_fallthru
      _
    // Predicated region
    $region58: #{tpu_custom_call.1} parent=1 // pred_check
      _
    $region59: #{tpu_custom_call.1} parent=1 // pred_check_branch
      %153 = sbr.rel (0) target = $region61
    $region60: #{tpu_custom_call.1} parent=1 // pred_region
      %155 = dma.done [#allocation9], 16384
    $region61: #{tpu_custom_call.1} parent=1 // pred_fallthru
      _
    // Predicated region
    $region62: #{tpu_custom_call.1} parent=1 // pred_check
      _
    $region63: #{tpu_custom_call.1} parent=1 // pred_check_branch
      %157 = sbr.rel (0) target = $region65
    $region64: #{tpu_custom_call.1} parent=1 // pred_region
      %159 = dma.done [#allocation12], 4096
    $region65: #{tpu_custom_call.1} parent=1 // pred_fallthru
      _
    // Predicated region
    $region66: #{tpu_custom_call.1} parent=1 // pred_check
      _
    $region67: #{tpu_custom_call.1} parent=1 // pred_check_branch
      %161 = sbr.rel (0) target = $region69
    $region68: #{tpu_custom_call.1} parent=1 // pred_region
      %163 = dma.done [#allocation12], 2048
    $region69: #{tpu_custom_call.1} parent=1 // pred_fallthru
      _
    // Predicated region
    $region70: #{tpu_custom_call.1} parent=1 // pred_check
      _
    $region71: #{tpu_custom_call.1} parent=1 // pred_check_branch
      %165 = sbr.rel (0) target = $region73
    $region72: #{tpu_custom_call.1} parent=1 // pred_region
      %167 = dma.done [#allocation15], 16384
    $region73: #{tpu_custom_call.1} parent=1 // pred_fallthru
      _
    // Predicated region
    $region74: #{tpu_custom_call.1} parent=1 // pred_check
      _
    $region75: #{tpu_custom_call.1} parent=1 // pred_check_branch
      %169 = sbr.rel (0) target = $region77
    $region76: #{tpu_custom_call.1} parent=1 // pred_region
      %171 = dma.done [#allocation15], 8192
    $region77: #{tpu_custom_call.1} parent=1 // pred_fallthru
      _
    %v173 = vld [vmem:[#allocation2] sm:$0xff]
    %v174 = vld [vmem:[#allocation5] sm:$0xff]
    %v175 = vld [vmem:[#allocation5 + $0x8] sm:$0xff]
    %v176 = vld [vmem:[#allocation5 + $0x10] sm:$0xff]
    %v177 = vld [vmem:[#allocation5 + $0x18] sm:$0xff]
    %v178 = vld [vmem:[#allocation5 + $0x20] sm:$0xff]
    %v179 = vld [vmem:[#allocation5 + $0x28] sm:$0xff]
    %v180 = vld [vmem:[#allocation5 + $0x30] sm:$0xff]
    %v181 = vld [vmem:[#allocation5 + $0x38] sm:$0xff]
    %v182 = vld [vmem:[#allocation7] sm:$0xff]
    %v183 = vld [vmem:[#allocation7 + $0x8] sm:$0xff]
    %v184 = vld [vmem:[#allocation7 + $0x10] sm:$0xff]
    %v185 = vld [vmem:[#allocation7 + $0x18] sm:$0xff]
    %v186 = vld [vmem:[#allocation7 + $0x20] sm:$0xff]
    %v187 = vld [vmem:[#allocation7 + $0x28] sm:$0xff]
    %v188 = vld [vmem:[#allocation7 + $0x30] sm:$0xff]
    %v189 = vld [vmem:[#allocation7 + $0x38] sm:$0xff]
    %v190 = vld [vmem:[#allocation7 + $0x40] sm:$0xff]
    %v191 = vld [vmem:[#allocation7 + $0x48] sm:$0xff]
    %v192 = vld [vmem:[#allocation7 + $0x50] sm:$0xff]
    %v193 = vld [vmem:[#allocation7 + $0x58] sm:$0xff]
    %v194 = vld [vmem:[#allocation7 + $0x60] sm:$0xff]
    %v195 = vld [vmem:[#allocation7 + $0x68] sm:$0xff]
    %v196 = vld [vmem:[#allocation7 + $0x70] sm:$0xff]
    %v197 = vld [vmem:[#allocation7 + $0x78] sm:$0xff]
    %v198 = vld [vmem:[#allocation7 + $0x80] sm:$0xff]
    %v199 = vld [vmem:[#allocation7 + $0x88] sm:$0xff]
    %v200 = vld [vmem:[#allocation7 + $0x90] sm:$0xff]
    %v201 = vld [vmem:[#allocation7 + $0x98] sm:$0xff]
    %v202 = vld [vmem:[#allocation7 + $0xa0] sm:$0xff]
    %v203 = vld [vmem:[#allocation7 + $0xa8] sm:$0xff]
    %v204 = vld [vmem:[#allocation7 + $0xb0] sm:$0xff]
    %v205 = vld [vmem:[#allocation7 + $0xb8] sm:$0xff]
    %v206 = vld [vmem:[#allocation7 + $0xc0] sm:$0xff]
    %v207 = vld [vmem:[#allocation7 + $0xc8] sm:$0xff]
    %v208 = vld [vmem:[#allocation7 + $0xd0] sm:$0xff]
    %v209 = vld [vmem:[#allocation7 + $0xd8] sm:$0xff]
    %v210 = vld [vmem:[#allocation7 + $0xe0] sm:$0xff]
    %v211 = vld [vmem:[#allocation7 + $0xe8] sm:$0xff]
    %v212 = vld [vmem:[#allocation7 + $0xf0] sm:$0xff]
    %v213 = vld [vmem:[#allocation7 + $0xf8] sm:$0xff]
    %v214 = vld [vmem:[#allocation7 + $0x100] sm:$0xff]
    %v215 = vld [vmem:[#allocation7 + $0x108] sm:$0xff]
    %v216 = vld [vmem:[#allocation7 + $0x110] sm:$0xff]
    %v217 = vld [vmem:[#allocation7 + $0x118] sm:$0xff]
    %v218 = vld [vmem:[#allocation7 + $0x120] sm:$0xff]
    %v219 = vld [vmem:[#allocation7 + $0x128] sm:$0xff]
    %v220 = vld [vmem:[#allocation7 + $0x130] sm:$0xff]
    %v221 = vld [vmem:[#allocation7 + $0x138] sm:$0xff]
    %v222 = vld [vmem:[#allocation7 + $0x140] sm:$0xff]
    %v223 = vld [vmem:[#allocation7 + $0x148] sm:$0xff]
    %v224 = vld [vmem:[#allocation7 + $0x150] sm:$0xff]
    %v225 = vld [vmem:[#allocation7 + $0x158] sm:$0xff]
    %v226 = vld [vmem:[#allocation7 + $0x160] sm:$0xff]
    %v227 = vld [vmem:[#allocation7 + $0x168] sm:$0xff]
    %v228 = vld [vmem:[#allocation7 + $0x170] sm:$0xff]
    %v229 = vld [vmem:[#allocation7 + $0x178] sm:$0xff]
    %v230 = vld [vmem:[#allocation7 + $0x180] sm:$0xff]
    %v231 = vld [vmem:[#allocation7 + $0x188] sm:$0xff]
    %v232 = vld [vmem:[#allocation7 + $0x190] sm:$0xff]
    %v233 = vld [vmem:[#allocation7 + $0x198] sm:$0xff]
    %v234 = vld [vmem:[#allocation7 + $0x1a0] sm:$0xff]
    %v235 = vld [vmem:[#allocation7 + $0x1a8] sm:$0xff]
    %v236 = vld [vmem:[#allocation7 + $0x1b0] sm:$0xff]
    %v237 = vld [vmem:[#allocation7 + $0x1b8] sm:$0xff]
    %v238 = vld [vmem:[#allocation7 + $0x1c0] sm:$0xff]
    %v239 = vld [vmem:[#allocation7 + $0x1c8] sm:$0xff]
    %v240 = vld [vmem:[#allocation7 + $0x1d0] sm:$0xff]
    %v241 = vld [vmem:[#allocation7 + $0x1d8] sm:$0xff]
    %v242 = vld [vmem:[#allocation7 + $0x1e0] sm:$0xff]
    %v243 = vld [vmem:[#allocation7 + $0x1e8] sm:$0xff]
    %v244 = vld [vmem:[#allocation7 + $0x1f0] sm:$0xff]
    %v245 = vld [vmem:[#allocation7 + $0x1f8] sm:$0xff]
    %v247 = vunpack.c.l.b16 %v173
    %v248 = vunpack.c.h.b16 %v173
    %v249 = vpack.c.b16 %v247, %v247
    %v250 = vpack.c.b16 %v248, %v248
    %v317 = vunpack.c.l.b16 %v182
    %v318 = vunpack.c.h.b16 %v182
    %v319 = vunpack.c.l.b16 %v183
    %v320 = vunpack.c.h.b16 %v183
    %v321 = vunpack.c.l.b16 %v184
    %v322 = vunpack.c.h.b16 %v184
    %v323 = vunpack.c.l.b16 %v185
    %v324 = vunpack.c.h.b16 %v185
    %v325 = vunpack.c.l.b16 %v186
    %v326 = vunpack.c.h.b16 %v186
    %v327 = vunpack.c.l.b16 %v187
    %v328 = vunpack.c.h.b16 %v187
    %v329 = vunpack.c.l.b16 %v188
    %v330 = vunpack.c.h.b16 %v188
    %v331 = vunpack.c.l.b16 %v189
    %v332 = vunpack.c.h.b16 %v189
    %v333 = vunpack.c.l.b16 %v190
    %v334 = vunpack.c.h.b16 %v190
    %v335 = vunpack.c.l.b16 %v191
    %v336 = vunpack.c.h.b16 %v191
    %v337 = vunpack.c.l.b16 %v192
    %v338 = vunpack.c.h.b16 %v192
    %v339 = vunpack.c.l.b16 %v193
    %v340 = vunpack.c.h.b16 %v193
    %v341 = vunpack.c.l.b16 %v194
    %v342 = vunpack.c.h.b16 %v194
    %v343 = vunpack.c.l.b16 %v195
    %v344 = vunpack.c.h.b16 %v195
    %v345 = vunpack.c.l.b16 %v196
    %v346 = vunpack.c.h.b16 %v196
    %v347 = vunpack.c.l.b16 %v197
    %v348 = vunpack.c.h.b16 %v197
    %v349 = vunpack.c.l.b16 %v198
    %v350 = vunpack.c.h.b16 %v198
    %v351 = vunpack.c.l.b16 %v199
    %v352 = vunpack.c.h.b16 %v199
    %v353 = vunpack.c.l.b16 %v200
    %v354 = vunpack.c.h.b16 %v200
    %v355 = vunpack.c.l.b16 %v201
    %v356 = vunpack.c.h.b16 %v201
    %v357 = vunpack.c.l.b16 %v202
    %v358 = vunpack.c.h.b16 %v202
    %v359 = vunpack.c.l.b16 %v203
    %v360 = vunpack.c.h.b16 %v203
    %v361 = vunpack.c.l.b16 %v204
    %v362 = vunpack.c.h.b16 %v204
    %v363 = vunpack.c.l.b16 %v205
    %v364 = vunpack.c.h.b16 %v205
    %v365 = vunpack.c.l.b16 %v206
    %v366 = vunpack.c.h.b16 %v206
    %v367 = vunpack.c.l.b16 %v207
    %v368 = vunpack.c.h.b16 %v207
    %v369 = vunpack.c.l.b16 %v208
    %v370 = vunpack.c.h.b16 %v208
    %v371 = vunpack.c.l.b16 %v209
    %v372 = vunpack.c.h.b16 %v209
    %v373 = vunpack.c.l.b16 %v210
    %v374 = vunpack.c.h.b16 %v210
    %v375 = vunpack.c.l.b16 %v211
    %v376 = vunpack.c.h.b16 %v211
    %v377 = vunpack.c.l.b16 %v212
    %v378 = vunpack.c.h.b16 %v212
    %v379 = vunpack.c.l.b16 %v213
    %v380 = vunpack.c.h.b16 %v213
    %v381 = vunpack.c.l.b16 %v214
    %v382 = vunpack.c.h.b16 %v214
    %v383 = vunpack.c.l.b16 %v215
    %v384 = vunpack.c.h.b16 %v215
    %v385 = vunpack.c.l.b16 %v216
    %v386 = vunpack.c.h.b16 %v216
    %v387 = vunpack.c.l.b16 %v217
    %v388 = vunpack.c.h.b16 %v217
    %v389 = vunpack.c.l.b16 %v218
    %v390 = vunpack.c.h.b16 %v218
    %v391 = vunpack.c.l.b16 %v219
    %v392 = vunpack.c.h.b16 %v219
    %v393 = vunpack.c.l.b16 %v220
    %v394 = vunpack.c.h.b16 %v220
    %v395 = vunpack.c.l.b16 %v221
    %v396 = vunpack.c.h.b16 %v221
    %v397 = vunpack.c.l.b16 %v222
    %v398 = vunpack.c.h.b16 %v222
    %v399 = vunpack.c.l.b16 %v223
    %v400 = vunpack.c.h.b16 %v223
    %v401 = vunpack.c.l.b16 %v224
    %v402 = vunpack.c.h.b16 %v224
    %v403 = vunpack.c.l.b16 %v225
    %v404 = vunpack.c.h.b16 %v225
    %v405 = vunpack.c.l.b16 %v226
    %v406 = vunpack.c.h.b16 %v226
    %v407 = vunpack.c.l.b16 %v227
    %v408 = vunpack.c.h.b16 %v227
    %v409 = vunpack.c.l.b16 %v228
    %v410 = vunpack.c.h.b16 %v228
    %v411 = vunpack.c.l.b16 %v229
    %v412 = vunpack.c.h.b16 %v229
    %v413 = vunpack.c.l.b16 %v230
    %v414 = vunpack.c.h.b16 %v230
    %v415 = vunpack.c.l.b16 %v231
    %v416 = vunpack.c.h.b16 %v231
    %v417 = vunpack.c.l.b16 %v232
    %v418 = vunpack.c.h.b16 %v232
    %v419 = vunpack.c.l.b16 %v233
    %v420 = vunpack.c.h.b16 %v233
    %v421 = vunpack.c.l.b16 %v234
    %v422 = vunpack.c.h.b16 %v234
    %v423 = vunpack.c.l.b16 %v235
    %v424 = vunpack.c.h.b16 %v235
    %v425 = vunpack.c.l.b16 %v236
    %v426 = vunpack.c.h.b16 %v236
    %v427 = vunpack.c.l.b16 %v237
    %v428 = vunpack.c.h.b16 %v237
    %v429 = vunpack.c.l.b16 %v238
    %v430 = vunpack.c.h.b16 %v238
    %v431 = vunpack.c.l.b16 %v239
    %v432 = vunpack.c.h.b16 %v239
    %v433 = vunpack.c.l.b16 %v240
    %v434 = vunpack.c.h.b16 %v240
    %v435 = vunpack.c.l.b16 %v241
    %v436 = vunpack.c.h.b16 %v241
    %v437 = vunpack.c.l.b16 %v242
    %v438 = vunpack.c.h.b16 %v242
    %v439 = vunpack.c.l.b16 %v243
    %v440 = vunpack.c.h.b16 %v243
    %v441 = vunpack.c.l.b16 %v244
    %v442 = vunpack.c.h.b16 %v244
    %v443 = vunpack.c.l.b16 %v245
    %v444 = vunpack.c.h.b16 %v245
    %v445 = vpack.c.b16 %v321, %v317
    %v446 = vpack.c.b16 %v322, %v318
    %v447 = vpack.c.b16 %v323, %v319
    %v448 = vpack.c.b16 %v324, %v320
    %v449 = vpack.c.b16 %v329, %v325
    %v450 = vpack.c.b16 %v330, %v326
    %v451 = vpack.c.b16 %v331, %v327
    %v452 = vpack.c.b16 %v332, %v328
    %v453 = vpack.c.b16 %v337, %v333
    %v454 = vpack.c.b16 %v338, %v334
    %v455 = vpack.c.b16 %v339, %v335
    %v456 = vpack.c.b16 %v340, %v336
    %v457 = vpack.c.b16 %v345, %v341
    %v458 = vpack.c.b16 %v346, %v342
    %v459 = vpack.c.b16 %v347, %v343
    %v460 = vpack.c.b16 %v348, %v344
    %v461 = vpack.c.b16 %v353, %v349
    %v462 = vpack.c.b16 %v354, %v350
    %v463 = vpack.c.b16 %v355, %v351
    %v464 = vpack.c.b16 %v356, %v352
    %v465 = vpack.c.b16 %v361, %v357
    %v466 = vpack.c.b16 %v362, %v358
    %v467 = vpack.c.b16 %v363, %v359
    %v468 = vpack.c.b16 %v364, %v360
    %v469 = vpack.c.b16 %v369, %v365
    %v470 = vpack.c.b16 %v370, %v366
    %v471 = vpack.c.b16 %v371, %v367
    %v472 = vpack.c.b16 %v372, %v368
    %v473 = vpack.c.b16 %v377, %v373
    %v474 = vpack.c.b16 %v378, %v374
    %v475 = vpack.c.b16 %v379, %v375
    %v476 = vpack.c.b16 %v380, %v376
    %v477 = vpack.c.b16 %v385, %v381
    %v478 = vpack.c.b16 %v386, %v382
    %v479 = vpack.c.b16 %v387, %v383
    %v480 = vpack.c.b16 %v388, %v384
    %v481 = vpack.c.b16 %v393, %v389
    %v482 = vpack.c.b16 %v394, %v390
    %v483 = vpack.c.b16 %v395, %v391
    %v484 = vpack.c.b16 %v396, %v392
    %v485 = vpack.c.b16 %v401, %v397
    %v486 = vpack.c.b16 %v402, %v398
    %v487 = vpack.c.b16 %v403, %v399
    %v488 = vpack.c.b16 %v404, %v400
    %v489 = vpack.c.b16 %v409, %v405
    %v490 = vpack.c.b16 %v410, %v406
    %v491 = vpack.c.b16 %v411, %v407
    %v492 = vpack.c.b16 %v412, %v408
    %v493 = vpack.c.b16 %v417, %v413
    %v494 = vpack.c.b16 %v418, %v414
    %v495 = vpack.c.b16 %v419, %v415
    %v496 = vpack.c.b16 %v420, %v416
    %v497 = vpack.c.b16 %v425, %v421
    %v498 = vpack.c.b16 %v426, %v422
    %v499 = vpack.c.b16 %v427, %v423
    %v500 = vpack.c.b16 %v428, %v424
    %v501 = vpack.c.b16 %v433, %v429
    %v502 = vpack.c.b16 %v434, %v430
    %v503 = vpack.c.b16 %v435, %v431
    %v504 = vpack.c.b16 %v436, %v432
    %v505 = vpack.c.b16 %v441, %v437
    %v506 = vpack.c.b16 %v442, %v438
    %v507 = vpack.c.b16 %v443, %v439
    %v508 = vpack.c.b16 %v444, %v440
    %573 = vmatpush.bf16.msra.mxu0 %v473
    %574 = vmatpush.bf16.msra.mxu0 %v469
    %575 = vmatpush.bf16.msra.mxu0 %v465
    %576 = vmatpush.bf16.msra.mxu0 %v461
    %577 = vmatpush.bf16.msra.mxu0 %v457
    %578 = vmatpush.bf16.msra.mxu0 %v453
    %579 = vmatpush.bf16.msra.mxu0 %v449
    %580 = vmatpush.bf16.msra.mxu0 %v445
    %581 = vmatmul.bf16.gmra.mxu0 %v249
    %v582 = vpop.f32.mrf.mxu0
    %v583 = vadd.f32 0.0, %v582
    %v584 = vpop.f32.mrf.mxu0
    %585 = vdwg.mxu0
    %586 = vmatpush.bf16.msra.mxu0 %v505
    %587 = vmatpush.bf16.msra.mxu0 %v501
    %588 = vmatpush.bf16.msra.mxu0 %v497
    %589 = vmatpush.bf16.msra.mxu0 %v493
    %590 = vmatpush.bf16.msra.mxu0 %v489
    %591 = vmatpush.bf16.msra.mxu0 %v485
    %592 = vmatpush.bf16.msra.mxu0 %v481
    %593 = vmatpush.bf16.msra.mxu0 %v477
    %594 = vmatmul.bf16.gmra.mxu0 %v250
    %v595 = vpop.f32.mrf.mxu0
    %v596 = vadd.f32 %v583, %v595
    %v597 = vpop.f32.mrf.mxu0
    %598 = vdwg.mxu0
    %599 = vmatpush.bf16.msra.mxu0 %v474
    %600 = vmatpush.bf16.msra.mxu0 %v470
    %601 = vmatpush.bf16.msra.mxu0 %v466
    %602 = vmatpush.bf16.msra.mxu0 %v462
    %603 = vmatpush.bf16.msra.mxu0 %v458
    %604 = vmatpush.bf16.msra.mxu0 %v454
    %605 = vmatpush.bf16.msra.mxu0 %v450
    %606 = vmatpush.bf16.msra.mxu0 %v446
    %607 = vmatmul.bf16.gmra.mxu0 %v249
    %v608 = vpop.f32.mrf.mxu0
    %v609 = vadd.f32 0.0, %v608
    %v610 = vpop.f32.mrf.mxu0
    %611 = vdwg.mxu0
    %612 = vmatpush.bf16.msra.mxu0 %v506
    %613 = vmatpush.bf16.msra.mxu0 %v502
    %614 = vmatpush.bf16.msra.mxu0 %v498
    %615 = vmatpush.bf16.msra.mxu0 %v494
    %616 = vmatpush.bf16.msra.mxu0 %v490
    %617 = vmatpush.bf16.msra.mxu0 %v486
    %618 = vmatpush.bf16.msra.mxu0 %v482
    %619 = vmatpush.bf16.msra.mxu0 %v478
    %620 = vmatmul.bf16.gmra.mxu0 %v250
    %v621 = vpop.f32.mrf.mxu0
    %v622 = vadd.f32 %v609, %v621
    %v623 = vpop.f32.mrf.mxu0
    %624 = vdwg.mxu0
    %625 = vmatpush.bf16.msra.mxu0 %v475
    %626 = vmatpush.bf16.msra.mxu0 %v471
    %627 = vmatpush.bf16.msra.mxu0 %v467
    %628 = vmatpush.bf16.msra.mxu0 %v463
    %629 = vmatpush.bf16.msra.mxu0 %v459
    %630 = vmatpush.bf16.msra.mxu0 %v455
    %631 = vmatpush.bf16.msra.mxu0 %v451
    %632 = vmatpush.bf16.msra.mxu0 %v447
    %633 = vmatmul.bf16.gmra.mxu0 %v249
    %v634 = vpop.f32.mrf.mxu0
    %v635 = vadd.f32 0.0, %v634
    %v636 = vpop.f32.mrf.mxu0
    %637 = vdwg.mxu0
    %638 = vmatpush.bf16.msra.mxu0 %v507
    %639 = vmatpush.bf16.msra.mxu0 %v503
    %640 = vmatpush.bf16.msra.mxu0 %v499
    %641 = vmatpush.bf16.msra.mxu0 %v495
    %642 = vmatpush.bf16.msra.mxu0 %v491
    %643 = vmatpush.bf16.msra.mxu0 %v487
    %644 = vmatpush.bf16.msra.mxu0 %v483
    %645 = vmatpush.bf16.msra.mxu0 %v479
    %646 = vmatmul.bf16.gmra.mxu0 %v250
    %v647 = vpop.f32.mrf.mxu0
    %v648 = vadd.f32 %v635, %v647
    %v649 = vpop.f32.mrf.mxu0
    %650 = vdwg.mxu0
    %651 = vmatpush.bf16.msra.mxu0 %v476
    %652 = vmatpush.bf16.msra.mxu0 %v472
    %653 = vmatpush.bf16.msra.mxu0 %v468
    %654 = vmatpush.bf16.msra.mxu0 %v464
    %655 = vmatpush.bf16.msra.mxu0 %v460
    %656 = vmatpush.bf16.msra.mxu0 %v456
    %657 = vmatpush.bf16.msra.mxu0 %v452
    %658 = vmatpush.bf16.msra.mxu0 %v448
    %659 = vmatmul.bf16.gmra.mxu0 %v249
    %v660 = vpop.f32.mrf.mxu0
    %v661 = vadd.f32 0.0, %v660
    %v662 = vpop.f32.mrf.mxu0
    %663 = vdwg.mxu0
    %664 = vmatpush.bf16.msra.mxu0 %v508
    %665 = vmatpush.bf16.msra.mxu0 %v504
    %666 = vmatpush.bf16.msra.mxu0 %v500
    %667 = vmatpush.bf16.msra.mxu0 %v496
    %668 = vmatpush.bf16.msra.mxu0 %v492
    %669 = vmatpush.bf16.msra.mxu0 %v488
    %670 = vmatpush.bf16.msra.mxu0 %v484
    %671 = vmatpush.bf16.msra.mxu0 %v480
    %672 = vmatmul.bf16.gmra.mxu0 %v250
    %v673 = vpop.f32.mrf.mxu0
    %v674 = vadd.f32 %v661, %v673
    %v675 = vpop.f32.mrf.mxu0
    %676 = vdwg.mxu0
    %v677 = vld [vmem:[#allocation8] sm:$0xff]
    %v678 = vld [vmem:[#allocation8 + $0x8] sm:$0xff]
    %v679 = vunpack.c.l.bf16 %v677
    %v680 = vunpack.c.h.bf16 %v677
    %v681 = vunpack.c.l.bf16 %v678
    %v682 = vunpack.c.h.bf16 %v678
    %v687 = vrot.slane %v680, 7
    %v688 = vrot.slane %v681, 6
    %v689 = vrot.slane %v682, 5
    %vm690 = vcmask 1040384
    %v691 = vsel %vm690, %v679, %v687
    %vm692 = vcmask 1042434
    %v693 = vsel %vm692, %v688, %v689
    %vm694 = vcmask 1041408
    %v695 = vsel %vm694, %v691, %v693
    %vm696 = vcmask 1041409
    %v697 = vsel %vm696, %v679, %v687
    %vm698 = vcmask 1043459
    %v699 = vsel %vm698, %v688, %v689
    %vm700 = vcmask 1042433
    %v701 = vsel %vm700, %v697, %v699
    %v702 = vrot.slane %v701, 1
    %v703 = vsel %vm692, %v679, %v687
    %vm704 = vcmask 1044484
    %v705 = vsel %vm704, %v688, %v689
    %vm706 = vcmask 1043458
    %v707 = vsel %vm706, %v703, %v705
    %v708 = vrot.slane %v707, 2
    %v709 = vsel %vm698, %v679, %v687
    %vm710 = vcmask 1045509
    %v711 = vsel %vm710, %v688, %v689
    %vm712 = vcmask 1044483
    %v713 = vsel %vm712, %v709, %v711
    %v714 = vrot.slane %v713, 3
    %v715 = vsel %vm704, %v679, %v687
    %vm716 = vcmask 1046534
    %v717 = vsel %vm716, %v688, %v689
    %vm718 = vcmask 1045508
    %v719 = vsel %vm718, %v715, %v717
    %v720 = vrot.slane %v719, 4
    %v721 = vsel %vm710, %v679, %v687
    %vm722 = vcmask 1046528
    %v723 = vsel %vm722, %v689, %v688
    %vm724 = vcmask 1046533
    %v725 = vsel %vm724, %v721, %v723
    %v726 = vrot.slane %v725, 5
    %v727 = vsel %vm716, %v679, %v687
    %v728 = vsel %vm690, %v688, %v689
    %vm729 = vcmask 1045504
    %v730 = vsel %vm729, %v728, %v727
    %v731 = vrot.slane %v730, 6
    %v732 = vsel %vm722, %v687, %v679
    %v733 = vsel %vm696, %v688, %v689
    %vm734 = vcmask 1046529
    %v735 = vsel %vm734, %v733, %v732
    %v736 = vrot.slane %v735, 7
    %v737 = vperm.slane %v695, 0
    %v738 = vperm.slane %v695, 1
    %v739 = vperm.slane %v695, 2
    %v740 = vperm.slane %v695, 3
    %v741 = vperm.slane %v702, 0
    %v742 = vperm.slane %v702, 1
    %v743 = vperm.slane %v702, 2
    %v744 = vperm.slane %v702, 3
    %v745 = vperm.slane %v708, 0
    %v746 = vperm.slane %v708, 1
    %v747 = vperm.slane %v708, 2
    %v748 = vperm.slane %v708, 3
    %v749 = vperm.slane %v714, 0
    %v750 = vperm.slane %v714, 1
    %v751 = vperm.slane %v714, 2
    %v752 = vperm.slane %v714, 3
    %v753 = vperm.slane %v720, 0
    %v754 = vperm.slane %v720, 1
    %v755 = vperm.slane %v720, 2
    %v756 = vperm.slane %v720, 3
    %v757 = vperm.slane %v726, 0
    %v758 = vperm.slane %v726, 1
    %v759 = vperm.slane %v726, 2
    %v760 = vperm.slane %v726, 3
    %v761 = vperm.slane %v731, 0
    %v762 = vperm.slane %v731, 1
    %v763 = vperm.slane %v731, 2
    %v764 = vperm.slane %v731, 3
    %v765 = vperm.slane %v736, 0
    %v766 = vperm.slane %v736, 1
    %v767 = vperm.slane %v736, 2
    %v768 = vperm.slane %v736, 3
    %v801 = vadd.f32 %v596, %v737
    %v802 = vadd.f32 %v622, %v738
    %v803 = vadd.f32 %v648, %v739
    %v804 = vadd.f32 %v674, %v740
    %v805 = vadd.f32 %v596, %v741
    %v806 = vadd.f32 %v622, %v742
    %v807 = vadd.f32 %v648, %v743
    %v808 = vadd.f32 %v674, %v744
    %v809 = vadd.f32 %v596, %v745
    %v810 = vadd.f32 %v622, %v746
    %v811 = vadd.f32 %v648, %v747
    %v812 = vadd.f32 %v674, %v748
    %v813 = vadd.f32 %v596, %v749
    %v814 = vadd.f32 %v622, %v750
    %v815 = vadd.f32 %v648, %v751
    %v816 = vadd.f32 %v674, %v752
    %v817 = vadd.f32 %v596, %v753
    %v818 = vadd.f32 %v622, %v754
    %v819 = vadd.f32 %v648, %v755
    %v820 = vadd.f32 %v674, %v756
    %v821 = vadd.f32 %v596, %v757
    %v822 = vadd.f32 %v622, %v758
    %v823 = vadd.f32 %v648, %v759
    %v824 = vadd.f32 %v674, %v760
    %v825 = vadd.f32 %v596, %v761
    %v826 = vadd.f32 %v622, %v762
    %v827 = vadd.f32 %v648, %v763
    %v828 = vadd.f32 %v674, %v764
    %v829 = vadd.f32 %v596, %v765
    %v830 = vadd.f32 %v622, %v766
    %v831 = vadd.f32 %v648, %v767
    %v832 = vadd.f32 %v674, %v768
    %v833 = vmax.f32 %v801, 0.0
    %v834 = vmax.f32 %v802, 0.0
    %v835 = vmax.f32 %v803, 0.0
    %v836 = vmax.f32 %v804, 0.0
    %v837 = vmax.f32 %v805, 0.0
    %v838 = vmax.f32 %v806, 0.0
    %v839 = vmax.f32 %v807, 0.0
    %v840 = vmax.f32 %v808, 0.0
    %v841 = vmax.f32 %v809, 0.0
    %v842 = vmax.f32 %v810, 0.0
    %v843 = vmax.f32 %v811, 0.0
    %v844 = vmax.f32 %v812, 0.0
    %v845 = vmax.f32 %v813, 0.0
    %v846 = vmax.f32 %v814, 0.0
    %v847 = vmax.f32 %v815, 0.0
    %v848 = vmax.f32 %v816, 0.0
    %v849 = vmax.f32 %v817, 0.0
    %v850 = vmax.f32 %v818, 0.0
    %v851 = vmax.f32 %v819, 0.0
    %v852 = vmax.f32 %v820, 0.0
    %v853 = vmax.f32 %v821, 0.0
    %v854 = vmax.f32 %v822, 0.0
    %v855 = vmax.f32 %v823, 0.0
    %v856 = vmax.f32 %v824, 0.0
    %v857 = vmax.f32 %v825, 0.0
    %v858 = vmax.f32 %v826, 0.0
    %v859 = vmax.f32 %v827, 0.0
    %v860 = vmax.f32 %v828, 0.0
    %v861 = vmax.f32 %v829, 0.0
    %v862 = vmax.f32 %v830, 0.0
    %v863 = vmax.f32 %v831, 0.0
    %v864 = vmax.f32 %v832, 0.0
    %v865 = vpack.c.bf16 %v837, %v833
    %v866 = vpack.c.bf16 %v838, %v834
    %v867 = vpack.c.bf16 %v839, %v835
    %v868 = vpack.c.bf16 %v840, %v836
    %v869 = vpack.c.bf16 %v845, %v841
    %v870 = vpack.c.bf16 %v846, %v842
    %v871 = vpack.c.bf16 %v847, %v843
    %v872 = vpack.c.bf16 %v848, %v844
    %v873 = vpack.c.bf16 %v853, %v849
    %v874 = vpack.c.bf16 %v854, %v850
    %v875 = vpack.c.bf16 %v855, %v851
    %v876 = vpack.c.bf16 %v856, %v852
    %v877 = vpack.c.bf16 %v861, %v857
    %v878 = vpack.c.bf16 %v862, %v858
    %v879 = vpack.c.bf16 %v863, %v859
    %v880 = vpack.c.bf16 %v864, %v860
    %v881 = vld [vmem:[#allocation10] sm:$0xff]
    %v882 = vld [vmem:[#allocation10 + $0x8] sm:$0xff]
    %v883 = vld [vmem:[#allocation10 + $0x10] sm:$0xff]
    %v884 = vld [vmem:[#allocation10 + $0x18] sm:$0xff]
    %v885 = vld [vmem:[#allocation10 + $0x20] sm:$0xff]
    %v886 = vld [vmem:[#allocation10 + $0x28] sm:$0xff]
    %v887 = vld [vmem:[#allocation10 + $0x30] sm:$0xff]
    %v888 = vld [vmem:[#allocation10 + $0x38] sm:$0xff]
    %v889 = vld [vmem:[#allocation10 + $0x40] sm:$0xff]
    %v890 = vld [vmem:[#allocation10 + $0x48] sm:$0xff]
    %v891 = vld [vmem:[#allocation10 + $0x50] sm:$0xff]
    %v892 = vld [vmem:[#allocation10 + $0x58] sm:$0xff]
    %v893 = vld [vmem:[#allocation10 + $0x60] sm:$0xff]
    %v894 = vld [vmem:[#allocation10 + $0x68] sm:$0xff]
    %v895 = vld [vmem:[#allocation10 + $0x70] sm:$0xff]
    %v896 = vld [vmem:[#allocation10 + $0x78] sm:$0xff]
    %v897 = vld [vmem:[#allocation10 + $0x80] sm:$0xff]
    %v898 = vld [vmem:[#allocation10 + $0x88] sm:$0xff]
    %v899 = vld [vmem:[#allocation10 + $0x90] sm:$0xff]
    %v900 = vld [vmem:[#allocation10 + $0x98] sm:$0xff]
    %v901 = vld [vmem:[#allocation10 + $0xa0] sm:$0xff]
    %v902 = vld [vmem:[#allocation10 + $0xa8] sm:$0xff]
    %v903 = vld [vmem:[#allocation10 + $0xb0] sm:$0xff]
    %v904 = vld [vmem:[#allocation10 + $0xb8] sm:$0xff]
    %v905 = vld [vmem:[#allocation10 + $0xc0] sm:$0xff]
    %v906 = vld [vmem:[#allocation10 + $0xc8] sm:$0xff]
    %v907 = vld [vmem:[#allocation10 + $0xd0] sm:$0xff]
    %v908 = vld [vmem:[#allocation10 + $0xd8] sm:$0xff]
    %v909 = vld [vmem:[#allocation10 + $0xe0] sm:$0xff]
    %v910 = vld [vmem:[#allocation10 + $0xe8] sm:$0xff]
    %v911 = vld [vmem:[#allocation10 + $0xf0] sm:$0xff]
    %v912 = vld [vmem:[#allocation10 + $0xf8] sm:$0xff]
    %v913 = vld [vmem:[#allocation10 + $0x100] sm:$0xff]
    %v914 = vld [vmem:[#allocation10 + $0x108] sm:$0xff]
    %v915 = vld [vmem:[#allocation10 + $0x110] sm:$0xff]
    %v916 = vld [vmem:[#allocation10 + $0x118] sm:$0xff]
    %v917 = vld [vmem:[#allocation10 + $0x120] sm:$0xff]
    %v918 = vld [vmem:[#allocation10 + $0x128] sm:$0xff]
    %v919 = vld [vmem:[#allocation10 + $0x130] sm:$0xff]
    %v920 = vld [vmem:[#allocation10 + $0x138] sm:$0xff]
    %v921 = vld [vmem:[#allocation10 + $0x140] sm:$0xff]
    %v922 = vld [vmem:[#allocation10 + $0x148] sm:$0xff]
    %v923 = vld [vmem:[#allocation10 + $0x150] sm:$0xff]
    %v924 = vld [vmem:[#allocation10 + $0x158] sm:$0xff]
    %v925 = vld [vmem:[#allocation10 + $0x160] sm:$0xff]
    %v926 = vld [vmem:[#allocation10 + $0x168] sm:$0xff]
    %v927 = vld [vmem:[#allocation10 + $0x170] sm:$0xff]
    %v928 = vld [vmem:[#allocation10 + $0x178] sm:$0xff]
    %v929 = vld [vmem:[#allocation10 + $0x180] sm:$0xff]
    %v930 = vld [vmem:[#allocation10 + $0x188] sm:$0xff]
    %v931 = vld [vmem:[#allocation10 + $0x190] sm:$0xff]
    %v932 = vld [vmem:[#allocation10 + $0x198] sm:$0xff]
    %v933 = vld [vmem:[#allocation10 + $0x1a0] sm:$0xff]
    %v934 = vld [vmem:[#allocation10 + $0x1a8] sm:$0xff]
    %v935 = vld [vmem:[#allocation10 + $0x1b0] sm:$0xff]
    %v936 = vld [vmem:[#allocation10 + $0x1b8] sm:$0xff]
    %v937 = vld [vmem:[#allocation10 + $0x1c0] sm:$0xff]
    %v938 = vld [vmem:[#allocation10 + $0x1c8] sm:$0xff]
    %v939 = vld [vmem:[#allocation10 + $0x1d0] sm:$0xff]
    %v940 = vld [vmem:[#allocation10 + $0x1d8] sm:$0xff]
    %v941 = vld [vmem:[#allocation10 + $0x1e0] sm:$0xff]
    %v942 = vld [vmem:[#allocation10 + $0x1e8] sm:$0xff]
    %v943 = vld [vmem:[#allocation10 + $0x1f0] sm:$0xff]
    %v944 = vld [vmem:[#allocation10 + $0x1f8] sm:$0xff]
    %v945 = vld [vmem:[#allocation10 + $0x200] sm:$0xff]
    %v946 = vld [vmem:[#allocation10 + $0x208] sm:$0xff]
    %v947 = vld [vmem:[#allocation10 + $0x210] sm:$0xff]
    %v948 = vld [vmem:[#allocation10 + $0x218] sm:$0xff]
    %v949 = vld [vmem:[#allocation10 + $0x220] sm:$0xff]
    %v950 = vld [vmem:[#allocation10 + $0x228] sm:$0xff]
    %v951 = vld [vmem:[#allocation10 + $0x230] sm:$0xff]
    %v952 = vld [vmem:[#allocation10 + $0x238] sm:$0xff]
    %v953 = vld [vmem:[#allocation10 + $0x240] sm:$0xff]
    %v954 = vld [vmem:[#allocation10 + $0x248] sm:$0xff]
    %v955 = vld [vmem:[#allocation10 + $0x250] sm:$0xff]
    %v956 = vld [vmem:[#allocation10 + $0x258] sm:$0xff]
    %v957 = vld [vmem:[#allocation10 + $0x260] sm:$0xff]
    %v958 = vld [vmem:[#allocation10 + $0x268] sm:$0xff]
    %v959 = vld [vmem:[#allocation10 + $0x270] sm:$0xff]
    %v960 = vld [vmem:[#allocation10 + $0x278] sm:$0xff]
    %v961 = vld [vmem:[#allocation10 + $0x280] sm:$0xff]
    %v962 = vld [vmem:[#allocation10 + $0x288] sm:$0xff]
    %v963 = vld [vmem:[#allocation10 + $0x290] sm:$0xff]
    %v964 = vld [vmem:[#allocation10 + $0x298] sm:$0xff]
    %v965 = vld [vmem:[#allocation10 + $0x2a0] sm:$0xff]
    %v966 = vld [vmem:[#allocation10 + $0x2a8] sm:$0xff]
    %v967 = vld [vmem:[#allocation10 + $0x2b0] sm:$0xff]
    %v968 = vld [vmem:[#allocation10 + $0x2b8] sm:$0xff]
    %v969 = vld [vmem:[#allocation10 + $0x2c0] sm:$0xff]
    %v970 = vld [vmem:[#allocation10 + $0x2c8] sm:$0xff]
    %v971 = vld [vmem:[#allocation10 + $0x2d0] sm:$0xff]
    %v972 = vld [vmem:[#allocation10 + $0x2d8] sm:$0xff]
    %v973 = vld [vmem:[#allocation10 + $0x2e0] sm:$0xff]
    %v974 = vld [vmem:[#allocation10 + $0x2e8] sm:$0xff]
    %v975 = vld [vmem:[#allocation10 + $0x2f0] sm:$0xff]
    %v976 = vld [vmem:[#allocation10 + $0x2f8] sm:$0xff]
    %v977 = vld [vmem:[#allocation10 + $0x300] sm:$0xff]
    %v978 = vld [vmem:[#allocation10 + $0x308] sm:$0xff]
    %v979 = vld [vmem:[#allocation10 + $0x310] sm:$0xff]
    %v980 = vld [vmem:[#allocation10 + $0x318] sm:$0xff]
    %v981 = vld [vmem:[#allocation10 + $0x320] sm:$0xff]
    %v982 = vld [vmem:[#allocation10 + $0x328] sm:$0xff]
    %v983 = vld [vmem:[#allocation10 + $0x330] sm:$0xff]
    %v984 = vld [vmem:[#allocation10 + $0x338] sm:$0xff]
    %v985 = vld [vmem:[#allocation10 + $0x340] sm:$0xff]
    %v986 = vld [vmem:[#allocation10 + $0x348] sm:$0xff]
    %v987 = vld [vmem:[#allocation10 + $0x350] sm:$0xff]
    %v988 = vld [vmem:[#allocation10 + $0x358] sm:$0xff]
    %v989 = vld [vmem:[#allocation10 + $0x360] sm:$0xff]
    %v990 = vld [vmem:[#allocation10 + $0x368] sm:$0xff]
    %v991 = vld [vmem:[#allocation10 + $0x370] sm:$0xff]
    %v992 = vld [vmem:[#allocation10 + $0x378] sm:$0xff]
    %v993 = vld [vmem:[#allocation10 + $0x380] sm:$0xff]
    %v994 = vld [vmem:[#allocation10 + $0x388] sm:$0xff]
    %v995 = vld [vmem:[#allocation10 + $0x390] sm:$0xff]
    %v996 = vld [vmem:[#allocation10 + $0x398] sm:$0xff]
    %v997 = vld [vmem:[#allocation10 + $0x3a0] sm:$0xff]
    %v998 = vld [vmem:[#allocation10 + $0x3a8] sm:$0xff]
    %v999 = vld [vmem:[#allocation10 + $0x3b0] sm:$0xff]
    %v1000 = vld [vmem:[#allocation10 + $0x3b8] sm:$0xff]
    %v1001 = vld [vmem:[#allocation10 + $0x3c0] sm:$0xff]
    %v1002 = vld [vmem:[#allocation10 + $0x3c8] sm:$0xff]
    %v1003 = vld [vmem:[#allocation10 + $0x3d0] sm:$0xff]
    %v1004 = vld [vmem:[#allocation10 + $0x3d8] sm:$0xff]
    %v1005 = vld [vmem:[#allocation10 + $0x3e0] sm:$0xff]
    %v1006 = vld [vmem:[#allocation10 + $0x3e8] sm:$0xff]
    %v1007 = vld [vmem:[#allocation10 + $0x3f0] sm:$0xff]
    %v1008 = vld [vmem:[#allocation10 + $0x3f8] sm:$0xff]
    %v1137 = vunpack.c.l.b16 %v881
    %v1138 = vunpack.c.h.b16 %v881
    %v1139 = vunpack.c.l.b16 %v882
    %v1140 = vunpack.c.h.b16 %v882
    %v1141 = vunpack.c.l.b16 %v883
    %v1142 = vunpack.c.h.b16 %v883
    %v1143 = vunpack.c.l.b16 %v884
    %v1144 = vunpack.c.h.b16 %v884
    %v1145 = vunpack.c.l.b16 %v885
    %v1146 = vunpack.c.h.b16 %v885
    %v1147 = vunpack.c.l.b16 %v886
    %v1148 = vunpack.c.h.b16 %v886
    %v1149 = vunpack.c.l.b16 %v887
    %v1150 = vunpack.c.h.b16 %v887
    %v1151 = vunpack.c.l.b16 %v888
    %v1152 = vunpack.c.h.b16 %v888
    %v1153 = vunpack.c.l.b16 %v889
    %v1154 = vunpack.c.h.b16 %v889
    %v1155 = vunpack.c.l.b16 %v890
    %v1156 = vunpack.c.h.b16 %v890
    %v1157 = vunpack.c.l.b16 %v891
    %v1158 = vunpack.c.h.b16 %v891
    %v1159 = vunpack.c.l.b16 %v892
    %v1160 = vunpack.c.h.b16 %v892
    %v1161 = vunpack.c.l.b16 %v893
    %v1162 = vunpack.c.h.b16 %v893
    %v1163 = vunpack.c.l.b16 %v894
    %v1164 = vunpack.c.h.b16 %v894
    %v1165 = vunpack.c.l.b16 %v895
    %v1166 = vunpack.c.h.b16 %v895
    %v1167 = vunpack.c.l.b16 %v896
    %v1168 = vunpack.c.h.b16 %v896
    %v1169 = vunpack.c.l.b16 %v897
    %v1170 = vunpack.c.h.b16 %v897
    %v1171 = vunpack.c.l.b16 %v898
    %v1172 = vunpack.c.h.b16 %v898
    %v1173 = vunpack.c.l.b16 %v899
    %v1174 = vunpack.c.h.b16 %v899
    %v1175 = vunpack.c.l.b16 %v900
    %v1176 = vunpack.c.h.b16 %v900
    %v1177 = vunpack.c.l.b16 %v901
    %v1178 = vunpack.c.h.b16 %v901
    %v1179 = vunpack.c.l.b16 %v902
    %v1180 = vunpack.c.h.b16 %v902
    %v1181 = vunpack.c.l.b16 %v903
    %v1182 = vunpack.c.h.b16 %v903
    %v1183 = vunpack.c.l.b16 %v904
    %v1184 = vunpack.c.h.b16 %v904
    %v1185 = vunpack.c.l.b16 %v905
    %v1186 = vunpack.c.h.b16 %v905
    %v1187 = vunpack.c.l.b16 %v906
    %v1188 = vunpack.c.h.b16 %v906
    %v1189 = vunpack.c.l.b16 %v907
    %v1190 = vunpack.c.h.b16 %v907
    %v1191 = vunpack.c.l.b16 %v908
    %v1192 = vunpack.c.h.b16 %v908
    %v1193 = vunpack.c.l.b16 %v909
    %v1194 = vunpack.c.h.b16 %v909
    %v1195 = vunpack.c.l.b16 %v910
    %v1196 = vunpack.c.h.b16 %v910
    %v1197 = vunpack.c.l.b16 %v911
    %v1198 = vunpack.c.h.b16 %v911
    %v1199 = vunpack.c.l.b16 %v912
    %v1200 = vunpack.c.h.b16 %v912
    %v1201 = vunpack.c.l.b16 %v913
    %v1202 = vunpack.c.h.b16 %v913
    %v1203 = vunpack.c.l.b16 %v914
    %v1204 = vunpack.c.h.b16 %v914
    %v1205 = vunpack.c.l.b16 %v915
    %v1206 = vunpack.c.h.b16 %v915
    %v1207 = vunpack.c.l.b16 %v916
    %v1208 = vunpack.c.h.b16 %v916
    %v1209 = vunpack.c.l.b16 %v917
    %v1210 = vunpack.c.h.b16 %v917
    %v1211 = vunpack.c.l.b16 %v918
    %v1212 = vunpack.c.h.b16 %v918
    %v1213 = vunpack.c.l.b16 %v919
    %v1214 = vunpack.c.h.b16 %v919
    %v1215 = vunpack.c.l.b16 %v920
    %v1216 = vunpack.c.h.b16 %v920
    %v1217 = vunpack.c.l.b16 %v921
    %v1218 = vunpack.c.h.b16 %v921
    %v1219 = vunpack.c.l.b16 %v922
    %v1220 = vunpack.c.h.b16 %v922
    %v1221 = vunpack.c.l.b16 %v923
    %v1222 = vunpack.c.h.b16 %v923
    %v1223 = vunpack.c.l.b16 %v924
    %v1224 = vunpack.c.h.b16 %v924
    %v1225 = vunpack.c.l.b16 %v925
    %v1226 = vunpack.c.h.b16 %v925
    %v1227 = vunpack.c.l.b16 %v926
    %v1228 = vunpack.c.h.b16 %v926
    %v1229 = vunpack.c.l.b16 %v927
    %v1230 = vunpack.c.h.b16 %v927
    %v1231 = vunpack.c.l.b16 %v928
    %v1232 = vunpack.c.h.b16 %v928
    %v1233 = vunpack.c.l.b16 %v929
    %v1234 = vunpack.c.h.b16 %v929
    %v1235 = vunpack.c.l.b16 %v930
    %v1236 = vunpack.c.h.b16 %v930
    %v1237 = vunpack.c.l.b16 %v931
    %v1238 = vunpack.c.h.b16 %v931
    %v1239 = vunpack.c.l.b16 %v932
    %v1240 = vunpack.c.h.b16 %v932
    %v1241 = vunpack.c.l.b16 %v933
    %v1242 = vunpack.c.h.b16 %v933
    %v1243 = vunpack.c.l.b16 %v934
    %v1244 = vunpack.c.h.b16 %v934
    %v1245 = vunpack.c.l.b16 %v935
    %v1246 = vunpack.c.h.b16 %v935
    %v1247 = vunpack.c.l.b16 %v936
    %v1248 = vunpack.c.h.b16 %v936
    %v1249 = vunpack.c.l.b16 %v937
    %v1250 = vunpack.c.h.b16 %v937
    %v1251 = vunpack.c.l.b16 %v938
    %v1252 = vunpack.c.h.b16 %v938
    %v1253 = vunpack.c.l.b16 %v939
    %v1254 = vunpack.c.h.b16 %v939
    %v1255 = vunpack.c.l.b16 %v940
    %v1256 = vunpack.c.h.b16 %v940
    %v1257 = vunpack.c.l.b16 %v941
    %v1258 = vunpack.c.h.b16 %v941
    %v1259 = vunpack.c.l.b16 %v942
    %v1260 = vunpack.c.h.b16 %v942
    %v1261 = vunpack.c.l.b16 %v943
    %v1262 = vunpack.c.h.b16 %v943
    %v1263 = vunpack.c.l.b16 %v944
    %v1264 = vunpack.c.h.b16 %v944
    %v1265 = vunpack.c.l.b16 %v945
    %v1266 = vunpack.c.h.b16 %v945
    %v1267 = vunpack.c.l.b16 %v946
    %v1268 = vunpack.c.h.b16 %v946
    %v1269 = vunpack.c.l.b16 %v947
    %v1270 = vunpack.c.h.b16 %v947
    %v1271 = vunpack.c.l.b16 %v948
    %v1272 = vunpack.c.h.b16 %v948
    %v1273 = vunpack.c.l.b16 %v949
    %v1274 = vunpack.c.h.b16 %v949
    %v1275 = vunpack.c.l.b16 %v950
    %v1276 = vunpack.c.h.b16 %v950
    %v1277 = vunpack.c.l.b16 %v951
    %v1278 = vunpack.c.h.b16 %v951
    %v1279 = vunpack.c.l.b16 %v952
    %v1280 = vunpack.c.h.b16 %v952
    %v1281 = vunpack.c.l.b16 %v953
    %v1282 = vunpack.c.h.b16 %v953
    %v1283 = vunpack.c.l.b16 %v954
    %v1284 = vunpack.c.h.b16 %v954
    %v1285 = vunpack.c.l.b16 %v955
    %v1286 = vunpack.c.h.b16 %v955
    %v1287 = vunpack.c.l.b16 %v956
    %v1288 = vunpack.c.h.b16 %v956
    %v1289 = vunpack.c.l.b16 %v957
    %v1290 = vunpack.c.h.b16 %v957
    %v1291 = vunpack.c.l.b16 %v958
    %v1292 = vunpack.c.h.b16 %v958
    %v1293 = vunpack.c.l.b16 %v959
    %v1294 = vunpack.c.h.b16 %v959
    %v1295 = vunpack.c.l.b16 %v960
    %v1296 = vunpack.c.h.b16 %v960
    %v1297 = vunpack.c.l.b16 %v961
    %v1298 = vunpack.c.h.b16 %v961
    %v1299 = vunpack.c.l.b16 %v962
    %v1300 = vunpack.c.h.b16 %v962
    %v1301 = vunpack.c.l.b16 %v963
    %v1302 = vunpack.c.h.b16 %v963
    %v1303 = vunpack.c.l.b16 %v964
    %v1304 = vunpack.c.h.b16 %v964
    %v1305 = vunpack.c.l.b16 %v965
    %v1306 = vunpack.c.h.b16 %v965
    %v1307 = vunpack.c.l.b16 %v966
    %v1308 = vunpack.c.h.b16 %v966
    %v1309 = vunpack.c.l.b16 %v967
    %v1310 = vunpack.c.h.b16 %v967
    %v1311 = vunpack.c.l.b16 %v968
    %v1312 = vunpack.c.h.b16 %v968
    %v1313 = vunpack.c.l.b16 %v969
    %v1314 = vunpack.c.h.b16 %v969
    %v1315 = vunpack.c.l.b16 %v970
    %v1316 = vunpack.c.h.b16 %v970
    %v1317 = vunpack.c.l.b16 %v971
    %v1318 = vunpack.c.h.b16 %v971
    %v1319 = vunpack.c.l.b16 %v972
    %v1320 = vunpack.c.h.b16 %v972
    %v1321 = vunpack.c.l.b16 %v973
    %v1322 = vunpack.c.h.b16 %v973
    %v1323 = vunpack.c.l.b16 %v974
    %v1324 = vunpack.c.h.b16 %v974
    %v1325 = vunpack.c.l.b16 %v975
    %v1326 = vunpack.c.h.b16 %v975
    %v1327 = vunpack.c.l.b16 %v976
    %v1328 = vunpack.c.h.b16 %v976
    %v1329 = vunpack.c.l.b16 %v977
    %v1330 = vunpack.c.h.b16 %v977
    %v1331 = vunpack.c.l.b16 %v978
    %v1332 = vunpack.c.h.b16 %v978
    %v1333 = vunpack.c.l.b16 %v979
    %v1334 = vunpack.c.h.b16 %v979
    %v1335 = vunpack.c.l.b16 %v980
    %v1336 = vunpack.c.h.b16 %v980
    %v1337 = vunpack.c.l.b16 %v981
    %v1338 = vunpack.c.h.b16 %v981
    %v1339 = vunpack.c.l.b16 %v982
    %v1340 = vunpack.c.h.b16 %v982
    %v1341 = vunpack.c.l.b16 %v983
    %v1342 = vunpack.c.h.b16 %v983
    %v1343 = vunpack.c.l.b16 %v984
    %v1344 = vunpack.c.h.b16 %v984
    %v1345 = vunpack.c.l.b16 %v985
    %v1346 = vunpack.c.h.b16 %v985
    %v1347 = vunpack.c.l.b16 %v986
    %v1348 = vunpack.c.h.b16 %v986
    %v1349 = vunpack.c.l.b16 %v987
    %v1350 = vunpack.c.h.b16 %v987
    %v1351 = vunpack.c.l.b16 %v988
    %v1352 = vunpack.c.h.b16 %v988
    %v1353 = vunpack.c.l.b16 %v989
    %v1354 = vunpack.c.h.b16 %v989
    %v1355 = vunpack.c.l.b16 %v990
    %v1356 = vunpack.c.h.b16 %v990
    %v1357 = vunpack.c.l.b16 %v991
    %v1358 = vunpack.c.h.b16 %v991
    %v1359 = vunpack.c.l.b16 %v992
    %v1360 = vunpack.c.h.b16 %v992
    %v1361 = vunpack.c.l.b16 %v993
    %v1362 = vunpack.c.h.b16 %v993
    %v1363 = vunpack.c.l.b16 %v994
    %v1364 = vunpack.c.h.b16 %v994
    %v1365 = vunpack.c.l.b16 %v995
    %v1366 = vunpack.c.h.b16 %v995
    %v1367 = vunpack.c.l.b16 %v996
    %v1368 = vunpack.c.h.b16 %v996
    %v1369 = vunpack.c.l.b16 %v997
    %v1370 = vunpack.c.h.b16 %v997
    %v1371 = vunpack.c.l.b16 %v998
    %v1372 = vunpack.c.h.b16 %v998
    %v1373 = vunpack.c.l.b16 %v999
    %v1374 = vunpack.c.h.b16 %v999
    %v1375 = vunpack.c.l.b16 %v1000
    %v1376 = vunpack.c.h.b16 %v1000
    %v1377 = vunpack.c.l.b16 %v1001
    %v1378 = vunpack.c.h.b16 %v1001
    %v1379 = vunpack.c.l.b16 %v1002
    %v1380 = vunpack.c.h.b16 %v1002
    %v1381 = vunpack.c.l.b16 %v1003
    %v1382 = vunpack.c.h.b16 %v1003
    %v1383 = vunpack.c.l.b16 %v1004
    %v1384 = vunpack.c.h.b16 %v1004
    %v1385 = vunpack.c.l.b16 %v1005
    %v1386 = vunpack.c.h.b16 %v1005
    %v1387 = vunpack.c.l.b16 %v1006
    %v1388 = vunpack.c.h.b16 %v1006
    %v1389 = vunpack.c.l.b16 %v1007
    %v1390 = vunpack.c.h.b16 %v1007
    %v1391 = vunpack.c.l.b16 %v1008
    %v1392 = vunpack.c.h.b16 %v1008
    %v1393 = vpack.c.b16 %v1141, %v1137
    %v1394 = vpack.c.b16 %v1142, %v1138
    %v1395 = vpack.c.b16 %v1143, %v1139
    %v1396 = vpack.c.b16 %v1144, %v1140
    %v1397 = vpack.c.b16 %v1149, %v1145
    %v1398 = vpack.c.b16 %v1150, %v1146
    %v1399 = vpack.c.b16 %v1151, %v1147
    %v1400 = vpack.c.b16 %v1152, %v1148
    %v1401 = vpack.c.b16 %v1157, %v1153
    %v1402 = vpack.c.b16 %v1158, %v1154
    %v1403 = vpack.c.b16 %v1159, %v1155
    %v1404 = vpack.c.b16 %v1160, %v1156
    %v1405 = vpack.c.b16 %v1165, %v1161
    %v1406 = vpack.c.b16 %v1166, %v1162
    %v1407 = vpack.c.b16 %v1167, %v1163
    %v1408 = vpack.c.b16 %v1168, %v1164
    %v1409 = vpack.c.b16 %v1173, %v1169
    %v1410 = vpack.c.b16 %v1174, %v1170
    %v1411 = vpack.c.b16 %v1175, %v1171
    %v1412 = vpack.c.b16 %v1176, %v1172
    %v1413 = vpack.c.b16 %v1181, %v1177
    %v1414 = vpack.c.b16 %v1182, %v1178
    %v1415 = vpack.c.b16 %v1183, %v1179
    %v1416 = vpack.c.b16 %v1184, %v1180
    %v1417 = vpack.c.b16 %v1189, %v1185
    %v1418 = vpack.c.b16 %v1190, %v1186
    %v1419 = vpack.c.b16 %v1191, %v1187
    %v1420 = vpack.c.b16 %v1192, %v1188
    %v1421 = vpack.c.b16 %v1197, %v1193
    %v1422 = vpack.c.b16 %v1198, %v1194
    %v1423 = vpack.c.b16 %v1199, %v1195
    %v1424 = vpack.c.b16 %v1200, %v1196
    %v1425 = vpack.c.b16 %v1205, %v1201
    %v1426 = vpack.c.b16 %v1206, %v1202
    %v1427 = vpack.c.b16 %v1207, %v1203
    %v1428 = vpack.c.b16 %v1208, %v1204
    %v1429 = vpack.c.b16 %v1213, %v1209
    %v1430 = vpack.c.b16 %v1214, %v1210
    %v1431 = vpack.c.b16 %v1215, %v1211
    %v1432 = vpack.c.b16 %v1216, %v1212
    %v1433 = vpack.c.b16 %v1221, %v1217
    %v1434 = vpack.c.b16 %v1222, %v1218
    %v1435 = vpack.c.b16 %v1223, %v1219
    %v1436 = vpack.c.b16 %v1224, %v1220
    %v1437 = vpack.c.b16 %v1229, %v1225
    %v1438 = vpack.c.b16 %v1230, %v1226
    %v1439 = vpack.c.b16 %v1231, %v1227
    %v1440 = vpack.c.b16 %v1232, %v1228
    %v1441 = vpack.c.b16 %v1237, %v1233
    %v1442 = vpack.c.b16 %v1238, %v1234
    %v1443 = vpack.c.b16 %v1239, %v1235
    %v1444 = vpack.c.b16 %v1240, %v1236
    %v1445 = vpack.c.b16 %v1245, %v1241
    %v1446 = vpack.c.b16 %v1246, %v1242
    %v1447 = vpack.c.b16 %v1247, %v1243
    %v1448 = vpack.c.b16 %v1248, %v1244
    %v1449 = vpack.c.b16 %v1253, %v1249
    %v1450 = vpack.c.b16 %v1254, %v1250
    %v1451 = vpack.c.b16 %v1255, %v1251
    %v1452 = vpack.c.b16 %v1256, %v1252
    %v1453 = vpack.c.b16 %v1261, %v1257
    %v1454 = vpack.c.b16 %v1262, %v1258
    %v1455 = vpack.c.b16 %v1263, %v1259
    %v1456 = vpack.c.b16 %v1264, %v1260
    %v1457 = vpack.c.b16 %v1269, %v1265
    %v1458 = vpack.c.b16 %v1270, %v1266
    %v1459 = vpack.c.b16 %v1271, %v1267
    %v1460 = vpack.c.b16 %v1272, %v1268
    %v1461 = vpack.c.b16 %v1277, %v1273
    %v1462 = vpack.c.b16 %v1278, %v1274
    %v1463 = vpack.c.b16 %v1279, %v1275
    %v1464 = vpack.c.b16 %v1280, %v1276
    %v1465 = vpack.c.b16 %v1285, %v1281
    %v1466 = vpack.c.b16 %v1286, %v1282
    %v1467 = vpack.c.b16 %v1287, %v1283
    %v1468 = vpack.c.b16 %v1288, %v1284
    %v1469 = vpack.c.b16 %v1293, %v1289
    %v1470 = vpack.c.b16 %v1294, %v1290
    %v1471 = vpack.c.b16 %v1295, %v1291
    %v1472 = vpack.c.b16 %v1296, %v1292
    %v1473 = vpack.c.b16 %v1301, %v1297
    %v1474 = vpack.c.b16 %v1302, %v1298
    %v1475 = vpack.c.b16 %v1303, %v1299
    %v1476 = vpack.c.b16 %v1304, %v1300
    %v1477 = vpack.c.b16 %v1309, %v1305
    %v1478 = vpack.c.b16 %v1310, %v1306
    %v1479 = vpack.c.b16 %v1311, %v1307
    %v1480 = vpack.c.b16 %v1312, %v1308
    %v1481 = vpack.c.b16 %v1317, %v1313
    %v1482 = vpack.c.b16 %v1318, %v1314
    %v1483 = vpack.c.b16 %v1319, %v1315
    %v1484 = vpack.c.b16 %v1320, %v1316
    %v1485 = vpack.c.b16 %v1325, %v1321
    %v1486 = vpack.c.b16 %v1326, %v1322
    %v1487 = vpack.c.b16 %v1327, %v1323
    %v1488 = vpack.c.b16 %v1328, %v1324
    %v1489 = vpack.c.b16 %v1333, %v1329
    %v1490 = vpack.c.b16 %v1334, %v1330
    %v1491 = vpack.c.b16 %v1335, %v1331
    %v1492 = vpack.c.b16 %v1336, %v1332
    %v1493 = vpack.c.b16 %v1341, %v1337
    %v1494 = vpack.c.b16 %v1342, %v1338
    %v1495 = vpack.c.b16 %v1343, %v1339
    %v1496 = vpack.c.b16 %v1344, %v1340
    %v1497 = vpack.c.b16 %v1349, %v1345
    %v1498 = vpack.c.b16 %v1350, %v1346
    %v1499 = vpack.c.b16 %v1351, %v1347
    %v1500 = vpack.c.b16 %v1352, %v1348
    %v1501 = vpack.c.b16 %v1357, %v1353
    %v1502 = vpack.c.b16 %v1358, %v1354
    %v1503 = vpack.c.b16 %v1359, %v1355
    %v1504 = vpack.c.b16 %v1360, %v1356
    %v1505 = vpack.c.b16 %v1365, %v1361
    %v1506 = vpack.c.b16 %v1366, %v1362
    %v1507 = vpack.c.b16 %v1367, %v1363
    %v1508 = vpack.c.b16 %v1368, %v1364
    %v1509 = vpack.c.b16 %v1373, %v1369
    %v1510 = vpack.c.b16 %v1374, %v1370
    %v1511 = vpack.c.b16 %v1375, %v1371
    %v1512 = vpack.c.b16 %v1376, %v1372
    %v1513 = vpack.c.b16 %v1381, %v1377
    %v1514 = vpack.c.b16 %v1382, %v1378
    %v1515 = vpack.c.b16 %v1383, %v1379
    %v1516 = vpack.c.b16 %v1384, %v1380
    %v1517 = vpack.c.b16 %v1389, %v1385
    %v1518 = vpack.c.b16 %v1390, %v1386
    %v1519 = vpack.c.b16 %v1391, %v1387
    %v1520 = vpack.c.b16 %v1392, %v1388
    %1649 = vmatpush.bf16.msra.mxu0 %v1421
    %1650 = vmatpush.bf16.msra.mxu0 %v1417
    %1651 = vmatpush.bf16.msra.mxu0 %v1413
    %1652 = vmatpush.bf16.msra.mxu0 %v1409
    %1653 = vmatpush.bf16.msra.mxu0 %v1405
    %1654 = vmatpush.bf16.msra.mxu0 %v1401
    %1655 = vmatpush.bf16.msra.mxu0 %v1397
    %1656 = vmatpush.bf16.msra.mxu0 %v1393
    %1657 = vmatmul.bf16.gmra.mxu0 %v865
    %v1658 = vpop.f32.mrf.mxu0
    %v1659 = vadd.f32 0.0, %v1658
    %v1660 = vpop.f32.mrf.mxu0
    %v1661 = vadd.f32 0.0, %v1660
    %1662 = vmatmul.bf16.gmra.mxu0 %v869
    %v1663 = vpop.f32.mrf.mxu0
    %v1664 = vadd.f32 0.0, %v1663
    %v1665 = vpop.f32.mrf.mxu0
    %v1666 = vadd.f32 0.0, %v1665
    %1667 = vmatmul.bf16.gmra.mxu0 %v873
    %v1668 = vpop.f32.mrf.mxu0
    %v1669 = vadd.f32 0.0, %v1668
    %v1670 = vpop.f32.mrf.mxu0
    %v1671 = vadd.f32 0.0, %v1670
    %1672 = vmatmul.bf16.gmra.mxu0 %v877
    %v1673 = vpop.f32.mrf.mxu0
    %v1674 = vadd.f32 0.0, %v1673
    %v1675 = vpop.f32.mrf.mxu0
    %v1676 = vadd.f32 0.0, %v1675
    %1677 = vdwg.mxu0
    %1678 = vmatpush.bf16.msra.mxu0 %v1453
    %1679 = vmatpush.bf16.msra.mxu0 %v1449
    %1680 = vmatpush.bf16.msra.mxu0 %v1445
    %1681 = vmatpush.bf16.msra.mxu0 %v1441
    %1682 = vmatpush.bf16.msra.mxu0 %v1437
    %1683 = vmatpush.bf16.msra.mxu0 %v1433
    %1684 = vmatpush.bf16.msra.mxu0 %v1429
    %1685 = vmatpush.bf16.msra.mxu0 %v1425
    %1686 = vmatmul.bf16.gmra.mxu0 %v866
    %v1687 = vpop.f32.mrf.mxu0
    %v1688 = vadd.f32 %v1659, %v1687
    %v1689 = vpop.f32.mrf.mxu0
    %v1690 = vadd.f32 %v1661, %v1689
    %1691 = vmatmul.bf16.gmra.mxu0 %v870
    %v1692 = vpop.f32.mrf.mxu0
    %v1693 = vadd.f32 %v1664, %v1692
    %v1694 = vpop.f32.mrf.mxu0
    %v1695 = vadd.f32 %v1666, %v1694
    %1696 = vmatmul.bf16.gmra.mxu0 %v874
    %v1697 = vpop.f32.mrf.mxu0
    %v1698 = vadd.f32 %v1669, %v1697
    %v1699 = vpop.f32.mrf.mxu0
    %v1700 = vadd.f32 %v1671, %v1699
    %1701 = vmatmul.bf16.gmra.mxu0 %v878
    %v1702 = vpop.f32.mrf.mxu0
    %v1703 = vadd.f32 %v1674, %v1702
    %v1704 = vpop.f32.mrf.mxu0
    %v1705 = vadd.f32 %v1676, %v1704
    %1706 = vdwg.mxu0
    %1707 = vmatpush.bf16.msra.mxu0 %v1485
    %1708 = vmatpush.bf16.msra.mxu0 %v1481
    %1709 = vmatpush.bf16.msra.mxu0 %v1477
    %1710 = vmatpush.bf16.msra.mxu0 %v1473
    %1711 = vmatpush.bf16.msra.mxu0 %v1469
    %1712 = vmatpush.bf16.msra.mxu0 %v1465
    %1713 = vmatpush.bf16.msra.mxu0 %v1461
    %1714 = vmatpush.bf16.msra.mxu0 %v1457
    %1715 = vmatmul.bf16.gmra.mxu0 %v867
    %v1716 = vpop.f32.mrf.mxu0
    %v1717 = vadd.f32 %v1688, %v1716
    %v1718 = vpop.f32.mrf.mxu0
    %v1719 = vadd.f32 %v1690, %v1718
    %1720 = vmatmul.bf16.gmra.mxu0 %v871
    %v1721 = vpop.f32.mrf.mxu0
    %v1722 = vadd.f32 %v1693, %v1721
    %v1723 = vpop.f32.mrf.mxu0
    %v1724 = vadd.f32 %v1695, %v1723
    %1725 = vmatmul.bf16.gmra.mxu0 %v875
    %v1726 = vpop.f32.mrf.mxu0
    %v1727 = vadd.f32 %v1698, %v1726
    %v1728 = vpop.f32.mrf.mxu0
    %v1729 = vadd.f32 %v1700, %v1728
    %1730 = vmatmul.bf16.gmra.mxu0 %v879
    %v1731 = vpop.f32.mrf.mxu0
    %v1732 = vadd.f32 %v1703, %v1731
    %v1733 = vpop.f32.mrf.mxu0
    %v1734 = vadd.f32 %v1705, %v1733
    %1735 = vdwg.mxu0
    %1736 = vmatpush.bf16.msra.mxu0 %v1517
    %1737 = vmatpush.bf16.msra.mxu0 %v1513
    %1738 = vmatpush.bf16.msra.mxu0 %v1509
    %1739 = vmatpush.bf16.msra.mxu0 %v1505
    %1740 = vmatpush.bf16.msra.mxu0 %v1501
    %1741 = vmatpush.bf16.msra.mxu0 %v1497
    %1742 = vmatpush.bf16.msra.mxu0 %v1493
    %1743 = vmatpush.bf16.msra.mxu0 %v1489
    %1744 = vmatmul.bf16.gmra.mxu0 %v868
    %v1745 = vpop.f32.mrf.mxu0
    %v1746 = vadd.f32 %v1717, %v1745
    %v1747 = vpop.f32.mrf.mxu0
    %v1748 = vadd.f32 %v1719, %v1747
    %1749 = vmatmul.bf16.gmra.mxu0 %v872
    %v1750 = vpop.f32.mrf.mxu0
    %v1751 = vadd.f32 %v1722, %v1750
    %v1752 = vpop.f32.mrf.mxu0
    %v1753 = vadd.f32 %v1724, %v1752
    %1754 = vmatmul.bf16.gmra.mxu0 %v876
    %v1755 = vpop.f32.mrf.mxu0
    %v1756 = vadd.f32 %v1727, %v1755
    %v1757 = vpop.f32.mrf.mxu0
    %v1758 = vadd.f32 %v1729, %v1757
    %1759 = vmatmul.bf16.gmra.mxu0 %v880
    %v1760 = vpop.f32.mrf.mxu0
    %v1761 = vadd.f32 %v1732, %v1760
    %v1762 = vpop.f32.mrf.mxu0
    %v1763 = vadd.f32 %v1734, %v1762
    %1764 = vdwg.mxu0
    %1765 = vmatpush.bf16.msra.mxu0 %v1422
    %1766 = vmatpush.bf16.msra.mxu0 %v1418
    %1767 = vmatpush.bf16.msra.mxu0 %v1414
    %1768 = vmatpush.bf16.msra.mxu0 %v1410
    %1769 = vmatpush.bf16.msra.mxu0 %v1406
    %1770 = vmatpush.bf16.msra.mxu0 %v1402
    %1771 = vmatpush.bf16.msra.mxu0 %v1398
    %1772 = vmatpush.bf16.msra.mxu0 %v1394
    %1773 = vmatmul.bf16.gmra.mxu0 %v865
    %v1774 = vpop.f32.mrf.mxu0
    %v1775 = vadd.f32 0.0, %v1774
    %v1776 = vpop.f32.mrf.mxu0
    %v1777 = vadd.f32 0.0, %v1776
    %1778 = vmatmul.bf16.gmra.mxu0 %v869
    %v1779 = vpop.f32.mrf.mxu0
    %v1780 = vadd.f32 0.0, %v1779
    %v1781 = vpop.f32.mrf.mxu0
    %v1782 = vadd.f32 0.0, %v1781
    %1783 = vmatmul.bf16.gmra.mxu0 %v873
    %v1784 = vpop.f32.mrf.mxu0
    %v1785 = vadd.f32 0.0, %v1784
    %v1786 = vpop.f32.mrf.mxu0
    %v1787 = vadd.f32 0.0, %v1786
    %1788 = vmatmul.bf16.gmra.mxu0 %v877
    %v1789 = vpop.f32.mrf.mxu0
    %v1790 = vadd.f32 0.0, %v1789
    %v1791 = vpop.f32.mrf.mxu0
    %v1792 = vadd.f32 0.0, %v1791
    %1793 = vdwg.mxu0
    %1794 = vmatpush.bf16.msra.mxu0 %v1454
    %1795 = vmatpush.bf16.msra.mxu0 %v1450
    %1796 = vmatpush.bf16.msra.mxu0 %v1446
    %1797 = vmatpush.bf16.msra.mxu0 %v1442
    %1798 = vmatpush.bf16.msra.mxu0 %v1438
    %1799 = vmatpush.bf16.msra.mxu0 %v1434
    %1800 = vmatpush.bf16.msra.mxu0 %v1430
    %1801 = vmatpush.bf16.msra.mxu0 %v1426
    %1802 = vmatmul.bf16.gmra.mxu0 %v866
    %v1803 = vpop.f32.mrf.mxu0
    %v1804 = vadd.f32 %v1775, %v1803
    %v1805 = vpop.f32.mrf.mxu0
    %v1806 = vadd.f32 %v1777, %v1805
    %1807 = vmatmul.bf16.gmra.mxu0 %v870
    %v1808 = vpop.f32.mrf.mxu0
    %v1809 = vadd.f32 %v1780, %v1808
    %v1810 = vpop.f32.mrf.mxu0
    %v1811 = vadd.f32 %v1782, %v1810
    %1812 = vmatmul.bf16.gmra.mxu0 %v874
    %v1813 = vpop.f32.mrf.mxu0
    %v1814 = vadd.f32 %v1785, %v1813
    %v1815 = vpop.f32.mrf.mxu0
    %v1816 = vadd.f32 %v1787, %v1815
    %1817 = vmatmul.bf16.gmra.mxu0 %v878
    %v1818 = vpop.f32.mrf.mxu0
    %v1819 = vadd.f32 %v1790, %v1818
    %v1820 = vpop.f32.mrf.mxu0
    %v1821 = vadd.f32 %v1792, %v1820
    %1822 = vdwg.mxu0
    %1823 = vmatpush.bf16.msra.mxu0 %v1486
    %1824 = vmatpush.bf16.msra.mxu0 %v1482
    %1825 = vmatpush.bf16.msra.mxu0 %v1478
    %1826 = vmatpush.bf16.msra.mxu0 %v1474
    %1827 = vmatpush.bf16.msra.mxu0 %v1470
    %1828 = vmatpush.bf16.msra.mxu0 %v1466
    %1829 = vmatpush.bf16.msra.mxu0 %v1462
    %1830 = vmatpush.bf16.msra.mxu0 %v1458
    %1831 = vmatmul.bf16.gmra.mxu0 %v867
    %v1832 = vpop.f32.mrf.mxu0
    %v1833 = vadd.f32 %v1804, %v1832
    %v1834 = vpop.f32.mrf.mxu0
    %v1835 = vadd.f32 %v1806, %v1834
    %1836 = vmatmul.bf16.gmra.mxu0 %v871
    %v1837 = vpop.f32.mrf.mxu0
    %v1838 = vadd.f32 %v1809, %v1837
    %v1839 = vpop.f32.mrf.mxu0
    %v1840 = vadd.f32 %v1811, %v1839
    %1841 = vmatmul.bf16.gmra.mxu0 %v875
    %v1842 = vpop.f32.mrf.mxu0
    %v1843 = vadd.f32 %v1814, %v1842
    %v1844 = vpop.f32.mrf.mxu0
    %v1845 = vadd.f32 %v1816, %v1844
    %1846 = vmatmul.bf16.gmra.mxu0 %v879
    %v1847 = vpop.f32.mrf.mxu0
    %v1848 = vadd.f32 %v1819, %v1847
    %v1849 = vpop.f32.mrf.mxu0
    %v1850 = vadd.f32 %v1821, %v1849
    %1851 = vdwg.mxu0
    %1852 = vmatpush.bf16.msra.mxu0 %v1518
    %1853 = vmatpush.bf16.msra.mxu0 %v1514
    %1854 = vmatpush.bf16.msra.mxu0 %v1510
    %1855 = vmatpush.bf16.msra.mxu0 %v1506
    %1856 = vmatpush.bf16.msra.mxu0 %v1502
    %1857 = vmatpush.bf16.msra.mxu0 %v1498
    %1858 = vmatpush.bf16.msra.mxu0 %v1494
    %1859 = vmatpush.bf16.msra.mxu0 %v1490
    %1860 = vmatmul.bf16.gmra.mxu0 %v868
    %v1861 = vpop.f32.mrf.mxu0
    %v1862 = vadd.f32 %v1833, %v1861
    %v1863 = vpop.f32.mrf.mxu0
    %v1864 = vadd.f32 %v1835, %v1863
    %1865 = vmatmul.bf16.gmra.mxu0 %v872
    %v1866 = vpop.f32.mrf.mxu0
    %v1867 = vadd.f32 %v1838, %v1866
    %v1868 = vpop.f32.mrf.mxu0
    %v1869 = vadd.f32 %v1840, %v1868
    %1870 = vmatmul.bf16.gmra.mxu0 %v876
    %v1871 = vpop.f32.mrf.mxu0
    %v1872 = vadd.f32 %v1843, %v1871
    %v1873 = vpop.f32.mrf.mxu0
    %v1874 = vadd.f32 %v1845, %v1873
    %1875 = vmatmul.bf16.gmra.mxu0 %v880
    %v1876 = vpop.f32.mrf.mxu0
    %v1877 = vadd.f32 %v1848, %v1876
    %v1878 = vpop.f32.mrf.mxu0
    %v1879 = vadd.f32 %v1850, %v1878
    %1880 = vdwg.mxu0
    %1881 = vmatpush.bf16.msra.mxu0 %v1423
    %1882 = vmatpush.bf16.msra.mxu0 %v1419
    %1883 = vmatpush.bf16.msra.mxu0 %v1415
    %1884 = vmatpush.bf16.msra.mxu0 %v1411
    %1885 = vmatpush.bf16.msra.mxu0 %v1407
    %1886 = vmatpush.bf16.msra.mxu0 %v1403
    %1887 = vmatpush.bf16.msra.mxu0 %v1399
    %1888 = vmatpush.bf16.msra.mxu0 %v1395
    %1889 = vmatmul.bf16.gmra.mxu0 %v865
    %v1890 = vpop.f32.mrf.mxu0
    %v1891 = vadd.f32 0.0, %v1890
    %v1892 = vpop.f32.mrf.mxu0
    %v1893 = vadd.f32 0.0, %v1892
    %1894 = vmatmul.bf16.gmra.mxu0 %v869
    %v1895 = vpop.f32.mrf.mxu0
    %v1896 = vadd.f32 0.0, %v1895
    %v1897 = vpop.f32.mrf.mxu0
    %v1898 = vadd.f32 0.0, %v1897
    %1899 = vmatmul.bf16.gmra.mxu0 %v873
    %v1900 = vpop.f32.mrf.mxu0
    %v1901 = vadd.f32 0.0, %v1900
    %v1902 = vpop.f32.mrf.mxu0
    %v1903 = vadd.f32 0.0, %v1902
    %1904 = vmatmul.bf16.gmra.mxu0 %v877
    %v1905 = vpop.f32.mrf.mxu0
    %v1906 = vadd.f32 0.0, %v1905
    %v1907 = vpop.f32.mrf.mxu0
    %v1908 = vadd.f32 0.0, %v1907
    %1909 = vdwg.mxu0
    %1910 = vmatpush.bf16.msra.mxu0 %v1455
    %1911 = vmatpush.bf16.msra.mxu0 %v1451
    %1912 = vmatpush.bf16.msra.mxu0 %v1447
    %1913 = vmatpush.bf16.msra.mxu0 %v1443
    %1914 = vmatpush.bf16.msra.mxu0 %v1439
    %1915 = vmatpush.bf16.msra.mxu0 %v1435
    %1916 = vmatpush.bf16.msra.mxu0 %v1431
    %1917 = vmatpush.bf16.msra.mxu0 %v1427
    %1918 = vmatmul.bf16.gmra.mxu0 %v866
    %v1919 = vpop.f32.mrf.mxu0
    %v1920 = vadd.f32 %v1891, %v1919
    %v1921 = vpop.f32.mrf.mxu0
    %v1922 = vadd.f32 %v1893, %v1921
    %1923 = vmatmul.bf16.gmra.mxu0 %v870
    %v1924 = vpop.f32.mrf.mxu0
    %v1925 = vadd.f32 %v1896, %v1924
    %v1926 = vpop.f32.mrf.mxu0
    %v1927 = vadd.f32 %v1898, %v1926
    %1928 = vmatmul.bf16.gmra.mxu0 %v874
    %v1929 = vpop.f32.mrf.mxu0
    %v1930 = vadd.f32 %v1901, %v1929
    %v1931 = vpop.f32.mrf.mxu0
    %v1932 = vadd.f32 %v1903, %v1931
    %1933 = vmatmul.bf16.gmra.mxu0 %v878
    %v1934 = vpop.f32.mrf.mxu0
    %v1935 = vadd.f32 %v1906, %v1934
    %v1936 = vpop.f32.mrf.mxu0
    %v1937 = vadd.f32 %v1908, %v1936
    %1938 = vdwg.mxu0
    %1939 = vmatpush.bf16.msra.mxu0 %v1487
    %1940 = vmatpush.bf16.msra.mxu0 %v1483
    %1941 = vmatpush.bf16.msra.mxu0 %v1479
    %1942 = vmatpush.bf16.msra.mxu0 %v1475
    %1943 = vmatpush.bf16.msra.mxu0 %v1471
    %1944 = vmatpush.bf16.msra.mxu0 %v1467
    %1945 = vmatpush.bf16.msra.mxu0 %v1463
    %1946 = vmatpush.bf16.msra.mxu0 %v1459
    %1947 = vmatmul.bf16.gmra.mxu0 %v867
    %v1948 = vpop.f32.mrf.mxu0
    %v1949 = vadd.f32 %v1920, %v1948
    %v1950 = vpop.f32.mrf.mxu0
    %v1951 = vadd.f32 %v1922, %v1950
    %1952 = vmatmul.bf16.gmra.mxu0 %v871
    %v1953 = vpop.f32.mrf.mxu0
    %v1954 = vadd.f32 %v1925, %v1953
    %v1955 = vpop.f32.mrf.mxu0
    %v1956 = vadd.f32 %v1927, %v1955
    %1957 = vmatmul.bf16.gmra.mxu0 %v875
    %v1958 = vpop.f32.mrf.mxu0
    %v1959 = vadd.f32 %v1930, %v1958
    %v1960 = vpop.f32.mrf.mxu0
    %v1961 = vadd.f32 %v1932, %v1960
    %1962 = vmatmul.bf16.gmra.mxu0 %v879
    %v1963 = vpop.f32.mrf.mxu0
    %v1964 = vadd.f32 %v1935, %v1963
    %v1965 = vpop.f32.mrf.mxu0
    %v1966 = vadd.f32 %v1937, %v1965
    %1967 = vdwg.mxu0
    %1968 = vmatpush.bf16.msra.mxu0 %v1519
    %1969 = vmatpush.bf16.msra.mxu0 %v1515
    %1970 = vmatpush.bf16.msra.mxu0 %v1511
    %1971 = vmatpush.bf16.msra.mxu0 %v1507
    %1972 = vmatpush.bf16.msra.mxu0 %v1503
    %1973 = vmatpush.bf16.msra.mxu0 %v1499
    %1974 = vmatpush.bf16.msra.mxu0 %v1495
    %1975 = vmatpush.bf16.msra.mxu0 %v1491
    %1976 = vmatmul.bf16.gmra.mxu0 %v868
    %v1977 = vpop.f32.mrf.mxu0
    %v1978 = vadd.f32 %v1949, %v1977
    %v1979 = vpop.f32.mrf.mxu0
    %v1980 = vadd.f32 %v1951, %v1979
    %1981 = vmatmul.bf16.gmra.mxu0 %v872
    %v1982 = vpop.f32.mrf.mxu0
    %v1983 = vadd.f32 %v1954, %v1982
    %v1984 = vpop.f32.mrf.mxu0
    %v1985 = vadd.f32 %v1956, %v1984
    %1986 = vmatmul.bf16.gmra.mxu0 %v876
    %v1987 = vpop.f32.mrf.mxu0
    %v1988 = vadd.f32 %v1959, %v1987
    %v1989 = vpop.f32.mrf.mxu0
    %v1990 = vadd.f32 %v1961, %v1989
    %1991 = vmatmul.bf16.gmra.mxu0 %v880
    %v1992 = vpop.f32.mrf.mxu0
    %v1993 = vadd.f32 %v1964, %v1992
    %v1994 = vpop.f32.mrf.mxu0
    %v1995 = vadd.f32 %v1966, %v1994
    %1996 = vdwg.mxu0
    %1997 = vmatpush.bf16.msra.mxu0 %v1424
    %1998 = vmatpush.bf16.msra.mxu0 %v1420
    %1999 = vmatpush.bf16.msra.mxu0 %v1416
    %2000 = vmatpush.bf16.msra.mxu0 %v1412
    %2001 = vmatpush.bf16.msra.mxu0 %v1408
    %2002 = vmatpush.bf16.msra.mxu0 %v1404
    %2003 = vmatpush.bf16.msra.mxu0 %v1400
    %2004 = vmatpush.bf16.msra.mxu0 %v1396
    %2005 = vmatmul.bf16.gmra.mxu0 %v865
    %v2006 = vpop.f32.mrf.mxu0
    %v2007 = vadd.f32 0.0, %v2006
    %v2008 = vpop.f32.mrf.mxu0
    %v2009 = vadd.f32 0.0, %v2008
    %2010 = vmatmul.bf16.gmra.mxu0 %v869
    %v2011 = vpop.f32.mrf.mxu0
    %v2012 = vadd.f32 0.0, %v2011
    %v2013 = vpop.f32.mrf.mxu0
    %v2014 = vadd.f32 0.0, %v2013
    %2015 = vmatmul.bf16.gmra.mxu0 %v873
    %v2016 = vpop.f32.mrf.mxu0
    %v2017 = vadd.f32 0.0, %v2016
    %v2018 = vpop.f32.mrf.mxu0
    %v2019 = vadd.f32 0.0, %v2018
    %2020 = vmatmul.bf16.gmra.mxu0 %v877
    %v2021 = vpop.f32.mrf.mxu0
    %v2022 = vadd.f32 0.0, %v2021
    %v2023 = vpop.f32.mrf.mxu0
    %v2024 = vadd.f32 0.0, %v2023
    %2025 = vdwg.mxu0
    %2026 = vmatpush.bf16.msra.mxu0 %v1456
    %2027 = vmatpush.bf16.msra.mxu0 %v1452
    %2028 = vmatpush.bf16.msra.mxu0 %v1448
    %2029 = vmatpush.bf16.msra.mxu0 %v1444
    %2030 = vmatpush.bf16.msra.mxu0 %v1440
    %2031 = vmatpush.bf16.msra.mxu0 %v1436
    %2032 = vmatpush.bf16.msra.mxu0 %v1432
    %2033 = vmatpush.bf16.msra.mxu0 %v1428
    %2034 = vmatmul.bf16.gmra.mxu0 %v866
    %v2035 = vpop.f32.mrf.mxu0
    %v2036 = vadd.f32 %v2007, %v2035
    %v2037 = vpop.f32.mrf.mxu0
    %v2038 = vadd.f32 %v2009, %v2037
    %2039 = vmatmul.bf16.gmra.mxu0 %v870
    %v2040 = vpop.f32.mrf.mxu0
    %v2041 = vadd.f32 %v2012, %v2040
    %v2042 = vpop.f32.mrf.mxu0
    %v2043 = vadd.f32 %v2014, %v2042
    %2044 = vmatmul.bf16.gmra.mxu0 %v874
    %v2045 = vpop.f32.mrf.mxu0
    %v2046 = vadd.f32 %v2017, %v2045
    %v2047 = vpop.f32.mrf.mxu0
    %v2048 = vadd.f32 %v2019, %v2047
    %2049 = vmatmul.bf16.gmra.mxu0 %v878
    %v2050 = vpop.f32.mrf.mxu0
    %v2051 = vadd.f32 %v2022, %v2050
    %v2052 = vpop.f32.mrf.mxu0
    %v2053 = vadd.f32 %v2024, %v2052
    %2054 = vdwg.mxu0
    %2055 = vmatpush.bf16.msra.mxu0 %v1488
    %2056 = vmatpush.bf16.msra.mxu0 %v1484
    %2057 = vmatpush.bf16.msra.mxu0 %v1480
    %2058 = vmatpush.bf16.msra.mxu0 %v1476
    %2059 = vmatpush.bf16.msra.mxu0 %v1472
    %2060 = vmatpush.bf16.msra.mxu0 %v1468
    %2061 = vmatpush.bf16.msra.mxu0 %v1464
    %2062 = vmatpush.bf16.msra.mxu0 %v1460
    %2063 = vmatmul.bf16.gmra.mxu0 %v867
    %v2064 = vpop.f32.mrf.mxu0
    %v2065 = vadd.f32 %v2036, %v2064
    %v2066 = vpop.f32.mrf.mxu0
    %v2067 = vadd.f32 %v2038, %v2066
    %2068 = vmatmul.bf16.gmra.mxu0 %v871
    %v2069 = vpop.f32.mrf.mxu0
    %v2070 = vadd.f32 %v2041, %v2069
    %v2071 = vpop.f32.mrf.mxu0
    %v2072 = vadd.f32 %v2043, %v2071
    %2073 = vmatmul.bf16.gmra.mxu0 %v875
    %v2074 = vpop.f32.mrf.mxu0
    %v2075 = vadd.f32 %v2046, %v2074
    %v2076 = vpop.f32.mrf.mxu0
    %v2077 = vadd.f32 %v2048, %v2076
    %2078 = vmatmul.bf16.gmra.mxu0 %v879
    %v2079 = vpop.f32.mrf.mxu0
    %v2080 = vadd.f32 %v2051, %v2079
    %v2081 = vpop.f32.mrf.mxu0
    %v2082 = vadd.f32 %v2053, %v2081
    %2083 = vdwg.mxu0
    %2084 = vmatpush.bf16.msra.mxu0 %v1520
    %2085 = vmatpush.bf16.msra.mxu0 %v1516
    %2086 = vmatpush.bf16.msra.mxu0 %v1512
    %2087 = vmatpush.bf16.msra.mxu0 %v1508
    %2088 = vmatpush.bf16.msra.mxu0 %v1504
    %2089 = vmatpush.bf16.msra.mxu0 %v1500
    %2090 = vmatpush.bf16.msra.mxu0 %v1496
    %2091 = vmatpush.bf16.msra.mxu0 %v1492
    %2092 = vmatmul.bf16.gmra.mxu0 %v868
    %v2093 = vpop.f32.mrf.mxu0
    %v2094 = vadd.f32 %v2065, %v2093
    %v2095 = vpop.f32.mrf.mxu0
    %v2096 = vadd.f32 %v2067, %v2095
    %2097 = vmatmul.bf16.gmra.mxu0 %v872
    %v2098 = vpop.f32.mrf.mxu0
    %v2099 = vadd.f32 %v2070, %v2098
    %v2100 = vpop.f32.mrf.mxu0
    %v2101 = vadd.f32 %v2072, %v2100
    %2102 = vmatmul.bf16.gmra.mxu0 %v876
    %v2103 = vpop.f32.mrf.mxu0
    %v2104 = vadd.f32 %v2075, %v2103
    %v2105 = vpop.f32.mrf.mxu0
    %v2106 = vadd.f32 %v2077, %v2105
    %2107 = vmatmul.bf16.gmra.mxu0 %v880
    %v2108 = vpop.f32.mrf.mxu0
    %v2109 = vadd.f32 %v2080, %v2108
    %v2110 = vpop.f32.mrf.mxu0
    %v2111 = vadd.f32 %v2082, %v2110
    %2112 = vdwg.mxu0
    %v2113 = vmax.f32 %v1746, 0.0
    %v2114 = vmax.f32 %v1862, 0.0
    %v2115 = vmax.f32 %v1978, 0.0
    %v2116 = vmax.f32 %v2094, 0.0
    %v2117 = vmax.f32 %v1748, 0.0
    %v2118 = vmax.f32 %v1864, 0.0
    %v2119 = vmax.f32 %v1980, 0.0
    %v2120 = vmax.f32 %v2096, 0.0
    %v2121 = vmax.f32 %v1751, 0.0
    %v2122 = vmax.f32 %v1867, 0.0
    %v2123 = vmax.f32 %v1983, 0.0
    %v2124 = vmax.f32 %v2099, 0.0
    %v2125 = vmax.f32 %v1753, 0.0
    %v2126 = vmax.f32 %v1869, 0.0
    %v2127 = vmax.f32 %v1985, 0.0
    %v2128 = vmax.f32 %v2101, 0.0
    %v2129 = vmax.f32 %v1756, 0.0
    %v2130 = vmax.f32 %v1872, 0.0
    %v2131 = vmax.f32 %v1988, 0.0
    %v2132 = vmax.f32 %v2104, 0.0
    %v2133 = vmax.f32 %v1758, 0.0
    %v2134 = vmax.f32 %v1874, 0.0
    %v2135 = vmax.f32 %v1990, 0.0
    %v2136 = vmax.f32 %v2106, 0.0
    %v2137 = vmax.f32 %v1761, 0.0
    %v2138 = vmax.f32 %v1877, 0.0
    %v2139 = vmax.f32 %v1993, 0.0
    %v2140 = vmax.f32 %v2109, 0.0
    %v2141 = vmax.f32 %v1763, 0.0
    %v2142 = vmax.f32 %v1879, 0.0
    %v2143 = vmax.f32 %v1995, 0.0
    %v2144 = vmax.f32 %v2111, 0.0
    %v2145 = vpack.c.bf16 %v2117, %v2113
    %v2146 = vpack.c.bf16 %v2118, %v2114
    %v2147 = vpack.c.bf16 %v2119, %v2115
    %v2148 = vpack.c.bf16 %v2120, %v2116
    %v2149 = vpack.c.bf16 %v2125, %v2121
    %v2150 = vpack.c.bf16 %v2126, %v2122
    %v2151 = vpack.c.bf16 %v2127, %v2123
    %v2152 = vpack.c.bf16 %v2128, %v2124
    %v2153 = vpack.c.bf16 %v2133, %v2129
    %v2154 = vpack.c.bf16 %v2134, %v2130
    %v2155 = vpack.c.bf16 %v2135, %v2131
    %v2156 = vpack.c.bf16 %v2136, %v2132
    %v2157 = vpack.c.bf16 %v2141, %v2137
    %v2158 = vpack.c.bf16 %v2142, %v2138
    %v2159 = vpack.c.bf16 %v2143, %v2139
    %v2160 = vpack.c.bf16 %v2144, %v2140
    %v2161 = vld [vmem:[#allocation11] sm:$0xf]
    %v2162 = vld [vmem:[#allocation11 + $0x4] sm:$0xf]
    %v2163 = vld [vmem:[#allocation11 + $0x8] sm:$0xf]
    %v2164 = vld [vmem:[#allocation11 + $0xc] sm:$0xf]
    %v2165 = vld [vmem:[#allocation11 + $0x10] sm:$0xf]
    %v2166 = vld [vmem:[#allocation11 + $0x14] sm:$0xf]
    %v2167 = vld [vmem:[#allocation11 + $0x18] sm:$0xf]
    %v2168 = vld [vmem:[#allocation11 + $0x1c] sm:$0xf]
    %v2169 = vld [vmem:[#allocation11 + $0x20] sm:$0xf]
    %v2170 = vld [vmem:[#allocation11 + $0x24] sm:$0xf]
    %v2171 = vld [vmem:[#allocation11 + $0x28] sm:$0xf]
    %v2172 = vld [vmem:[#allocation11 + $0x2c] sm:$0xf]
    %v2173 = vld [vmem:[#allocation11 + $0x30] sm:$0xf]
    %v2174 = vld [vmem:[#allocation11 + $0x34] sm:$0xf]
    %v2175 = vld [vmem:[#allocation11 + $0x38] sm:$0xf]
    %v2176 = vld [vmem:[#allocation11 + $0x3c] sm:$0xf]
    %v2177 = vld [vmem:[#allocation11 + $0x40] sm:$0xf]
    %v2178 = vld [vmem:[#allocation11 + $0x44] sm:$0xf]
    %v2179 = vld [vmem:[#allocation11 + $0x48] sm:$0xf]
    %v2180 = vld [vmem:[#allocation11 + $0x4c] sm:$0xf]
    %v2181 = vld [vmem:[#allocation11 + $0x50] sm:$0xf]
    %v2182 = vld [vmem:[#allocation11 + $0x54] sm:$0xf]
    %v2183 = vld [vmem:[#allocation11 + $0x58] sm:$0xf]
    %v2184 = vld [vmem:[#allocation11 + $0x5c] sm:$0xf]
    %v2185 = vld [vmem:[#allocation11 + $0x60] sm:$0xf]
    %v2186 = vld [vmem:[#allocation11 + $0x64] sm:$0xf]
    %v2187 = vld [vmem:[#allocation11 + $0x68] sm:$0xf]
    %v2188 = vld [vmem:[#allocation11 + $0x6c] sm:$0xf]
    %v2189 = vld [vmem:[#allocation11 + $0x70] sm:$0xf]
    %v2190 = vld [vmem:[#allocation11 + $0x74] sm:$0xf]
    %v2191 = vld [vmem:[#allocation11 + $0x78] sm:$0xf]
    %v2192 = vld [vmem:[#allocation11 + $0x7c] sm:$0xf]
    %v2193 = vld [vmem:[#allocation11 + $0x80] sm:$0xf]
    %v2194 = vld [vmem:[#allocation11 + $0x84] sm:$0xf]
    %v2195 = vld [vmem:[#allocation11 + $0x88] sm:$0xf]
    %v2196 = vld [vmem:[#allocation11 + $0x8c] sm:$0xf]
    %v2197 = vld [vmem:[#allocation11 + $0x90] sm:$0xf]
    %v2198 = vld [vmem:[#allocation11 + $0x94] sm:$0xf]
    %v2199 = vld [vmem:[#allocation11 + $0x98] sm:$0xf]
    %v2200 = vld [vmem:[#allocation11 + $0x9c] sm:$0xf]
    %v2201 = vld [vmem:[#allocation11 + $0xa0] sm:$0xf]
    %v2202 = vld [vmem:[#allocation11 + $0xa4] sm:$0xf]
    %v2203 = vld [vmem:[#allocation11 + $0xa8] sm:$0xf]
    %v2204 = vld [vmem:[#allocation11 + $0xac] sm:$0xf]
    %v2205 = vld [vmem:[#allocation11 + $0xb0] sm:$0xf]
    %v2206 = vld [vmem:[#allocation11 + $0xb4] sm:$0xf]
    %v2207 = vld [vmem:[#allocation11 + $0xb8] sm:$0xf]
    %v2208 = vld [vmem:[#allocation11 + $0xbc] sm:$0xf]
    %v2209 = vld [vmem:[#allocation11 + $0xc0] sm:$0xf]
    %v2210 = vld [vmem:[#allocation11 + $0xc4] sm:$0xf]
    %v2211 = vld [vmem:[#allocation11 + $0xc8] sm:$0xf]
    %v2212 = vld [vmem:[#allocation11 + $0xcc] sm:$0xf]
    %v2213 = vld [vmem:[#allocation11 + $0xd0] sm:$0xf]
    %v2214 = vld [vmem:[#allocation11 + $0xd4] sm:$0xf]
    %v2215 = vld [vmem:[#allocation11 + $0xd8] sm:$0xf]
    %v2216 = vld [vmem:[#allocation11 + $0xdc] sm:$0xf]
    %v2217 = vld [vmem:[#allocation11 + $0xe0] sm:$0xf]
    %v2218 = vld [vmem:[#allocation11 + $0xe4] sm:$0xf]
    %v2219 = vld [vmem:[#allocation11 + $0xe8] sm:$0xf]
    %v2220 = vld [vmem:[#allocation11 + $0xec] sm:$0xf]
    %v2221 = vld [vmem:[#allocation11 + $0xf0] sm:$0xf]
    %v2222 = vld [vmem:[#allocation11 + $0xf4] sm:$0xf]
    %v2223 = vld [vmem:[#allocation11 + $0xf8] sm:$0xf]
    %v2224 = vld [vmem:[#allocation11 + $0xfc] sm:$0xf]
    %v2225 = vld [vmem:[%s6] sm:$0x1]
    %v2226 = vunpack.c.l.bf16 %v2225
    %v2227 = vperm.slane %v2226, 0
    %v2292 = vunpack.c.l.b16 %v2161
    %v2293 = vunpack.c.l.b16 %v2162
    %v2294 = vunpack.c.l.b16 %v2163
    %v2295 = vunpack.c.l.b16 %v2164
    %v2296 = vunpack.c.l.b16 %v2165
    %v2297 = vunpack.c.l.b16 %v2166
    %v2298 = vunpack.c.l.b16 %v2167
    %v2299 = vunpack.c.l.b16 %v2168
    %v2300 = vunpack.c.l.b16 %v2169
    %v2301 = vunpack.c.l.b16 %v2170
    %v2302 = vunpack.c.l.b16 %v2171
    %v2303 = vunpack.c.l.b16 %v2172
    %v2304 = vunpack.c.l.b16 %v2173
    %v2305 = vunpack.c.l.b16 %v2174
    %v2306 = vunpack.c.l.b16 %v2175
    %v2307 = vunpack.c.l.b16 %v2176
    %v2308 = vunpack.c.l.b16 %v2177
    %v2309 = vunpack.c.l.b16 %v2178
    %v2310 = vunpack.c.l.b16 %v2179
    %v2311 = vunpack.c.l.b16 %v2180
    %v2312 = vunpack.c.l.b16 %v2181
    %v2313 = vunpack.c.l.b16 %v2182
    %v2314 = vunpack.c.l.b16 %v2183
    %v2315 = vunpack.c.l.b16 %v2184
    %v2316 = vunpack.c.l.b16 %v2185
    %v2317 = vunpack.c.l.b16 %v2186
    %v2318 = vunpack.c.l.b16 %v2187
    %v2319 = vunpack.c.l.b16 %v2188
    %v2320 = vunpack.c.l.b16 %v2189
    %v2321 = vunpack.c.l.b16 %v2190
    %v2322 = vunpack.c.l.b16 %v2191
    %v2323 = vunpack.c.l.b16 %v2192
    %v2324 = vunpack.c.l.b16 %v2193
    %v2325 = vunpack.c.l.b16 %v2194
    %v2326 = vunpack.c.l.b16 %v2195
    %v2327 = vunpack.c.l.b16 %v2196
    %v2328 = vunpack.c.l.b16 %v2197
    %v2329 = vunpack.c.l.b16 %v2198
    %v2330 = vunpack.c.l.b16 %v2199
    %v2331 = vunpack.c.l.b16 %v2200
    %v2332 = vunpack.c.l.b16 %v2201
    %v2333 = vunpack.c.l.b16 %v2202
    %v2334 = vunpack.c.l.b16 %v2203
    %v2335 = vunpack.c.l.b16 %v2204
    %v2336 = vunpack.c.l.b16 %v2205
    %v2337 = vunpack.c.l.b16 %v2206
    %v2338 = vunpack.c.l.b16 %v2207
    %v2339 = vunpack.c.l.b16 %v2208
    %v2340 = vunpack.c.l.b16 %v2209
    %v2341 = vunpack.c.l.b16 %v2210
    %v2342 = vunpack.c.l.b16 %v2211
    %v2343 = vunpack.c.l.b16 %v2212
    %v2344 = vunpack.c.l.b16 %v2213
    %v2345 = vunpack.c.l.b16 %v2214
    %v2346 = vunpack.c.l.b16 %v2215
    %v2347 = vunpack.c.l.b16 %v2216
    %v2348 = vunpack.c.l.b16 %v2217
    %v2349 = vunpack.c.l.b16 %v2218
    %v2350 = vunpack.c.l.b16 %v2219
    %v2351 = vunpack.c.l.b16 %v2220
    %v2352 = vunpack.c.l.b16 %v2221
    %v2353 = vunpack.c.l.b16 %v2222
    %v2354 = vunpack.c.l.b16 %v2223
    %v2355 = vunpack.c.l.b16 %v2224
    %v2356 = vpack.c.b16 %v2293, %v2292
    %v2357 = vpack.c.b16 %v2295, %v2294
    %v2358 = vpack.c.b16 %v2297, %v2296
    %v2359 = vpack.c.b16 %v2299, %v2298
    %v2360 = vpack.c.b16 %v2301, %v2300
    %v2361 = vpack.c.b16 %v2303, %v2302
    %v2362 = vpack.c.b16 %v2305, %v2304
    %v2363 = vpack.c.b16 %v2307, %v2306
    %v2364 = vpack.c.b16 %v2309, %v2308
    %v2365 = vpack.c.b16 %v2311, %v2310
    %v2366 = vpack.c.b16 %v2313, %v2312
    %v2367 = vpack.c.b16 %v2315, %v2314
    %v2368 = vpack.c.b16 %v2317, %v2316
    %v2369 = vpack.c.b16 %v2319, %v2318
    %v2370 = vpack.c.b16 %v2321, %v2320
    %v2371 = vpack.c.b16 %v2323, %v2322
    %v2372 = vpack.c.b16 %v2325, %v2324
    %v2373 = vpack.c.b16 %v2327, %v2326
    %v2374 = vpack.c.b16 %v2329, %v2328
    %v2375 = vpack.c.b16 %v2331, %v2330
    %v2376 = vpack.c.b16 %v2333, %v2332
    %v2377 = vpack.c.b16 %v2335, %v2334
    %v2378 = vpack.c.b16 %v2337, %v2336
    %v2379 = vpack.c.b16 %v2339, %v2338
    %v2380 = vpack.c.b16 %v2341, %v2340
    %v2381 = vpack.c.b16 %v2343, %v2342
    %v2382 = vpack.c.b16 %v2345, %v2344
    %v2383 = vpack.c.b16 %v2347, %v2346
    %v2384 = vpack.c.b16 %v2349, %v2348
    %v2385 = vpack.c.b16 %v2351, %v2350
    %v2386 = vpack.c.b16 %v2353, %v2352
    %v2387 = vpack.c.b16 %v2355, %v2354
    %2420 = vmatpush.bf16.msra.mxu0 %v2363
    %2421 = vmatpush.bf16.msra.mxu0 %v2362
    %2422 = vmatpush.bf16.msra.mxu0 %v2361
    %2423 = vmatpush.bf16.msra.mxu0 %v2360
    %2424 = vmatpush.bf16.msra.mxu0 %v2359
    %2425 = vmatpush.bf16.msra.mxu0 %v2358
    %2426 = vmatpush.bf16.msra.mxu0 %v2357
    %2427 = vmatpush.bf16.msra.mxu0 %v2356
    %2428 = vmatmul.bf16.gmra.mxu0 %v2145
    %v2429 = vpop.f32.mrf.mxu0
    %v2430 = vadd.f32 %v2227, %v2429
    %v2431 = vpop.f32.mrf.mxu0
    %v2432 = vadd.f32 %v2227, %v2431
    %2433 = vmatmul.bf16.gmra.mxu0 %v2149
    %v2434 = vpop.f32.mrf.mxu0
    %v2435 = vadd.f32 %v2227, %v2434
    %v2436 = vpop.f32.mrf.mxu0
    %v2437 = vadd.f32 %v2227, %v2436
    %2438 = vmatmul.bf16.gmra.mxu0 %v2153
    %v2439 = vpop.f32.mrf.mxu0
    %v2440 = vadd.f32 %v2227, %v2439
    %v2441 = vpop.f32.mrf.mxu0
    %v2442 = vadd.f32 %v2227, %v2441
    %2443 = vmatmul.bf16.gmra.mxu0 %v2157
    %v2444 = vpop.f32.mrf.mxu0
    %v2445 = vadd.f32 %v2227, %v2444
    %v2446 = vpop.f32.mrf.mxu0
    %v2447 = vadd.f32 %v2227, %v2446
    %2448 = vdwg.mxu0
    %2449 = vmatpush.bf16.msra.mxu0 %v2371
    %2450 = vmatpush.bf16.msra.mxu0 %v2370
    %2451 = vmatpush.bf16.msra.mxu0 %v2369
    %2452 = vmatpush.bf16.msra.mxu0 %v2368
    %2453 = vmatpush.bf16.msra.mxu0 %v2367
    %2454 = vmatpush.bf16.msra.mxu0 %v2366
    %2455 = vmatpush.bf16.msra.mxu0 %v2365
    %2456 = vmatpush.bf16.msra.mxu0 %v2364
    %2457 = vmatmul.bf16.gmra.mxu0 %v2146
    %v2458 = vpop.f32.mrf.mxu0
    %v2459 = vadd.f32 %v2430, %v2458
    %v2460 = vpop.f32.mrf.mxu0
    %v2461 = vadd.f32 %v2432, %v2460
    %2462 = vmatmul.bf16.gmra.mxu0 %v2150
    %v2463 = vpop.f32.mrf.mxu0
    %v2464 = vadd.f32 %v2435, %v2463
    %v2465 = vpop.f32.mrf.mxu0
    %v2466 = vadd.f32 %v2437, %v2465
    %2467 = vmatmul.bf16.gmra.mxu0 %v2154
    %v2468 = vpop.f32.mrf.mxu0
    %v2469 = vadd.f32 %v2440, %v2468
    %v2470 = vpop.f32.mrf.mxu0
    %v2471 = vadd.f32 %v2442, %v2470
    %2472 = vmatmul.bf16.gmra.mxu0 %v2158
    %v2473 = vpop.f32.mrf.mxu0
    %v2474 = vadd.f32 %v2445, %v2473
    %v2475 = vpop.f32.mrf.mxu0
    %v2476 = vadd.f32 %v2447, %v2475
    %2477 = vdwg.mxu0
    %2478 = vmatpush.bf16.msra.mxu0 %v2379
    %2479 = vmatpush.bf16.msra.mxu0 %v2378
    %2480 = vmatpush.bf16.msra.mxu0 %v2377
    %2481 = vmatpush.bf16.msra.mxu0 %v2376
    %2482 = vmatpush.bf16.msra.mxu0 %v2375
    %2483 = vmatpush.bf16.msra.mxu0 %v2374
    %2484 = vmatpush.bf16.msra.mxu0 %v2373
    %2485 = vmatpush.bf16.msra.mxu0 %v2372
    %2486 = vmatmul.bf16.gmra.mxu0 %v2147
    %v2487 = vpop.f32.mrf.mxu0
    %v2488 = vadd.f32 %v2459, %v2487
    %v2489 = vpop.f32.mrf.mxu0
    %v2490 = vadd.f32 %v2461, %v2489
    %2491 = vmatmul.bf16.gmra.mxu0 %v2151
    %v2492 = vpop.f32.mrf.mxu0
    %v2493 = vadd.f32 %v2464, %v2492
    %v2494 = vpop.f32.mrf.mxu0
    %v2495 = vadd.f32 %v2466, %v2494
    %2496 = vmatmul.bf16.gmra.mxu0 %v2155
    %v2497 = vpop.f32.mrf.mxu0
    %v2498 = vadd.f32 %v2469, %v2497
    %v2499 = vpop.f32.mrf.mxu0
    %v2500 = vadd.f32 %v2471, %v2499
    %2501 = vmatmul.bf16.gmra.mxu0 %v2159
    %v2502 = vpop.f32.mrf.mxu0
    %v2503 = vadd.f32 %v2474, %v2502
    %v2504 = vpop.f32.mrf.mxu0
    %v2505 = vadd.f32 %v2476, %v2504
    %2506 = vdwg.mxu0
    %2507 = vmatpush.bf16.msra.mxu0 %v2387
    %2508 = vmatpush.bf16.msra.mxu0 %v2386
    %2509 = vmatpush.bf16.msra.mxu0 %v2385
    %2510 = vmatpush.bf16.msra.mxu0 %v2384
    %2511 = vmatpush.bf16.msra.mxu0 %v2383
    %2512 = vmatpush.bf16.msra.mxu0 %v2382
    %2513 = vmatpush.bf16.msra.mxu0 %v2381
    %2514 = vmatpush.bf16.msra.mxu0 %v2380
    %2515 = vmatmul.bf16.gmra.mxu0 %v2148
    %v2516 = vpop.f32.mrf.mxu0
    %v2517 = vadd.f32 %v2488, %v2516
    %v2518 = vpop.f32.mrf.mxu0
    %v2519 = vadd.f32 %v2490, %v2518
    %2520 = vmatmul.bf16.gmra.mxu0 %v2152
    %v2521 = vpop.f32.mrf.mxu0
    %v2522 = vadd.f32 %v2493, %v2521
    %v2523 = vpop.f32.mrf.mxu0
    %v2524 = vadd.f32 %v2495, %v2523
    %2525 = vmatmul.bf16.gmra.mxu0 %v2156
    %v2526 = vpop.f32.mrf.mxu0
    %v2527 = vadd.f32 %v2498, %v2526
    %v2528 = vpop.f32.mrf.mxu0
    %v2529 = vadd.f32 %v2500, %v2528
    %2530 = vmatmul.bf16.gmra.mxu0 %v2160
    %v2531 = vpop.f32.mrf.mxu0
    %v2532 = vadd.f32 %v2503, %v2531
    %v2533 = vpop.f32.mrf.mxu0
    %v2534 = vadd.f32 %v2505, %v2533
    %2535 = vdwg.mxu0
    %v2536 = vmax.f32 %v2517, 0.0
    %v2537 = vmax.f32 %v2519, 0.0
    %v2538 = vmax.f32 %v2522, 0.0
    %v2539 = vmax.f32 %v2524, 0.0
    %v2540 = vmax.f32 %v2527, 0.0
    %v2541 = vmax.f32 %v2529, 0.0
    %v2542 = vmax.f32 %v2532, 0.0
    %v2543 = vmax.f32 %v2534, 0.0
    %vm2544 = vcmp.ne.f32.partialorder %v2517, %v2517
    %vm2545 = vcmp.ne.f32.partialorder %v2519, %v2519
    %vm2546 = vcmp.ne.f32.partialorder %v2522, %v2522
    %vm2547 = vcmp.ne.f32.partialorder %v2524, %v2524
    %vm2548 = vcmp.ne.f32.partialorder %v2527, %v2527
    %vm2549 = vcmp.ne.f32.partialorder %v2529, %v2529
    %vm2550 = vcmp.ne.f32.partialorder %v2532, %v2532
    %vm2551 = vcmp.ne.f32.partialorder %v2534, %v2534
    %v2552 = vadd.f32 %v2517, 0.0
    %v2553 = vadd.f32 %v2519, 0.0
    %v2554 = vadd.f32 %v2522, 0.0
    %v2555 = vadd.f32 %v2524, 0.0
    %v2556 = vadd.f32 %v2527, 0.0
    %v2557 = vadd.f32 %v2529, 0.0
    %v2558 = vadd.f32 %v2532, 0.0
    %v2559 = vadd.f32 %v2534, 0.0
    %v2560 = vand.u32 2147483647, %v2517
    %v2561 = vand.u32 2147483647, %v2519
    %v2562 = vand.u32 2147483647, %v2522
    %v2563 = vand.u32 2147483647, %v2524
    %v2564 = vand.u32 2147483647, %v2527
    %v2565 = vand.u32 2147483647, %v2529
    %v2566 = vand.u32 2147483647, %v2532
    %v2567 = vand.u32 2147483647, %v2534
    %v2568 = vsub.f32 0.0, %v2560
    %v2569 = vsub.f32 0.0, %v2561
    %v2570 = vsub.f32 0.0, %v2562
    %v2571 = vsub.f32 0.0, %v2563
    %v2572 = vsub.f32 0.0, %v2564
    %v2573 = vsub.f32 0.0, %v2565
    %v2574 = vsub.f32 0.0, %v2566
    %v2575 = vsub.f32 0.0, %v2567
    %v2576 = vmul.f32 %v2568, 1.442695
    %v2577 = vpow.pop %v2576
    %v2578 = vmul.f32 %v2569, 1.442695
    %v2579 = vpow.pop %v2578
    %v2580 = vmul.f32 %v2570, 1.442695
    %v2581 = vpow.pop %v2580
    %v2582 = vmul.f32 %v2571, 1.442695
    %v2583 = vpow.pop %v2582
    %v2584 = vmul.f32 %v2572, 1.442695
    %v2585 = vpow.pop %v2584
    %v2586 = vmul.f32 %v2573, 1.442695
    %v2587 = vpow.pop %v2586
    %v2588 = vmul.f32 %v2574, 1.442695
    %v2589 = vpow.pop %v2588
    %v2590 = vmul.f32 %v2575, 1.442695
    %v2591 = vpow.pop %v2590
    %v2592 = vadd.f32 %v2577, 1.0
    %v2593 = vlog2.pop %v2592
    %v2594 = vmul.f32 %v2593, 0.6931472
    %v2595 = vmul.f32 -0.5, %v2577
    %v2596 = vadd.f32 %v2595, 1.0
    %v2597 = vmul.f32 %v2596, %v2577
    %v2598 = vand.u32 2147483647, %v2577
    %vm2599 = vcmp.lt.f32.partialorder %v2598, 0.0004427343
    %v2600 = vsel %vm2599, %v2597, %v2594
    %v2601 = vadd.f32 %v2579, 1.0
    %v2602 = vlog2.pop %v2601
    %v2603 = vmul.f32 %v2602, 0.6931472
    %v2604 = vmul.f32 -0.5, %v2579
    %v2605 = vadd.f32 %v2604, 1.0
    %v2606 = vmul.f32 %v2605, %v2579
    %v2607 = vand.u32 2147483647, %v2579
    %vm2608 = vcmp.lt.f32.partialorder %v2607, 0.0004427343
    %v2609 = vsel %vm2608, %v2606, %v2603
    %v2610 = vadd.f32 %v2581, 1.0
    %v2611 = vlog2.pop %v2610
    %v2612 = vmul.f32 %v2611, 0.6931472
    %v2613 = vmul.f32 -0.5, %v2581
    %v2614 = vadd.f32 %v2613, 1.0
    %v2615 = vmul.f32 %v2614, %v2581
    %v2616 = vand.u32 2147483647, %v2581
    %vm2617 = vcmp.lt.f32.partialorder %v2616, 0.0004427343
    %v2618 = vsel %vm2617, %v2615, %v2612
    %v2619 = vadd.f32 %v2583, 1.0
    %v2620 = vlog2.pop %v2619
    %v2621 = vmul.f32 %v2620, 0.6931472
    %v2622 = vmul.f32 -0.5, %v2583
    %v2623 = vadd.f32 %v2622, 1.0
    %v2624 = vmul.f32 %v2623, %v2583
    %v2625 = vand.u32 2147483647, %v2583
    %vm2626 = vcmp.lt.f32.partialorder %v2625, 0.0004427343
    %v2627 = vsel %vm2626, %v2624, %v2621
    %v2628 = vadd.f32 %v2585, 1.0
    %v2629 = vlog2.pop %v2628
    %v2630 = vmul.f32 %v2629, 0.6931472
    %v2631 = vmul.f32 -0.5, %v2585
    %v2632 = vadd.f32 %v2631, 1.0
    %v2633 = vmul.f32 %v2632, %v2585
    %v2634 = vand.u32 2147483647, %v2585
    %vm2635 = vcmp.lt.f32.partialorder %v2634, 0.0004427343
    %v2636 = vsel %vm2635, %v2633, %v2630
    %v2637 = vadd.f32 %v2587, 1.0
    %v2638 = vlog2.pop %v2637
    %v2639 = vmul.f32 %v2638, 0.6931472
    %v2640 = vmul.f32 -0.5, %v2587
    %v2641 = vadd.f32 %v2640, 1.0
    %v2642 = vmul.f32 %v2641, %v2587
    %v2643 = vand.u32 2147483647, %v2587
    %vm2644 = vcmp.lt.f32.partialorder %v2643, 0.0004427343
    %v2645 = vsel %vm2644, %v2642, %v2639
    %v2646 = vadd.f32 %v2589, 1.0
    %v2647 = vlog2.pop %v2646
    %v2648 = vmul.f32 %v2647, 0.6931472
    %v2649 = vmul.f32 -0.5, %v2589
    %v2650 = vadd.f32 %v2649, 1.0
    %v2651 = vmul.f32 %v2650, %v2589
    %v2652 = vand.u32 2147483647, %v2589
    %vm2653 = vcmp.lt.f32.partialorder %v2652, 0.0004427343
    %v2654 = vsel %vm2653, %v2651, %v2648
    %v2655 = vadd.f32 %v2591, 1.0
    %v2656 = vlog2.pop %v2655
    %v2657 = vmul.f32 %v2656, 0.6931472
    %v2658 = vmul.f32 -0.5, %v2591
    %v2659 = vadd.f32 %v2658, 1.0
    %v2660 = vmul.f32 %v2659, %v2591
    %v2661 = vand.u32 2147483647, %v2591
    %vm2662 = vcmp.lt.f32.partialorder %v2661, 0.0004427343
    %v2663 = vsel %vm2662, %v2660, %v2657
    %v2664 = vadd.f32 %v2536, %v2600
    %v2665 = vadd.f32 %v2537, %v2609
    %v2666 = vadd.f32 %v2538, %v2618
    %v2667 = vadd.f32 %v2539, %v2627
    %v2668 = vadd.f32 %v2540, %v2636
    %v2669 = vadd.f32 %v2541, %v2645
    %v2670 = vadd.f32 %v2542, %v2654
    %v2671 = vadd.f32 %v2543, %v2663
    %v2672 = vsel %vm2544, %v2552, %v2664
    %v2673 = vsel %vm2545, %v2553, %v2665
    %v2674 = vsel %vm2546, %v2554, %v2666
    %v2675 = vsel %vm2547, %v2555, %v2667
    %v2676 = vsel %vm2548, %v2556, %v2668
    %v2677 = vsel %vm2549, %v2557, %v2669
    %v2678 = vsel %vm2550, %v2558, %v2670
    %v2679 = vsel %vm2551, %v2559, %v2671
    %2688 = vrot.lane.b32.xlu0 %v2672, 64
    %v2689 = vpop.permute.xlu0 %2688
    %2690 = vrot.lane.b32.xlu0 %v2673, 64
    %v2691 = vpop.permute.xlu0 %2690
    %2692 = vrot.lane.b32.xlu0 %v2674, 64
    %v2693 = vpop.permute.xlu0 %2692
    %2694 = vrot.lane.b32.xlu0 %v2675, 64
    %v2695 = vpop.permute.xlu0 %2694
    %2696 = vrot.lane.b32.xlu0 %v2676, 64
    %v2697 = vpop.permute.xlu0 %2696
    %2698 = vrot.lane.b32.xlu0 %v2677, 64
    %v2699 = vpop.permute.xlu0 %2698
    %2700 = vrot.lane.b32.xlu0 %v2678, 64
    %v2701 = vpop.permute.xlu0 %2700
    %2702 = vrot.lane.b32.xlu0 %v2679, 64
    %v2703 = vpop.permute.xlu0 %2702
    %v2712 = vmul.f32 %v174, %v2689
    %v2713 = vmul.f32 %v175, %v2691
    %v2714 = vmul.f32 %v176, %v2693
    %v2715 = vmul.f32 %v177, %v2695
    %v2716 = vmul.f32 %v178, %v2697
    %v2717 = vmul.f32 %v179, %v2699
    %v2718 = vmul.f32 %v180, %v2701
    %v2719 = vmul.f32 %v181, %v2703
    %v2720 = vadd.f32 %v2712, %v2517
    %v2721 = vadd.f32 %v2713, %v2519
    %v2722 = vadd.f32 %v2714, %v2522
    %v2723 = vadd.f32 %v2715, %v2524
    %v2724 = vadd.f32 %v2716, %v2527
    %v2725 = vadd.f32 %v2717, %v2529
    %v2726 = vadd.f32 %v2718, %v2532
    %v2727 = vadd.f32 %v2719, %v2534
    %v2728 = vpack.c.bf16 %v2721, %v2720
    %v2729 = vpack.c.bf16 %v2723, %v2722
    %v2730 = vpack.c.bf16 %v2725, %v2724
    %v2731 = vpack.c.bf16 %v2727, %v2726
    %v2732 = vld [vmem:[#allocation13] sm:$0xff]
    %v2733 = vld [vmem:[#allocation13 + $0x8] sm:$0xff]
    %v2734 = vld [vmem:[#allocation13 + $0x10] sm:$0xff]
    %v2735 = vld [vmem:[#allocation13 + $0x18] sm:$0xff]
    %v2736 = vld [vmem:[#allocation13 + $0x20] sm:$0xff]
    %v2737 = vld [vmem:[#allocation13 + $0x28] sm:$0xff]
    %v2738 = vld [vmem:[#allocation13 + $0x30] sm:$0xff]
    %v2739 = vld [vmem:[#allocation13 + $0x38] sm:$0xff]
    %v2740 = vld [vmem:[#allocation13 + $0x40] sm:$0xff]
    %v2741 = vld [vmem:[#allocation13 + $0x48] sm:$0xff]
    %v2742 = vld [vmem:[#allocation13 + $0x50] sm:$0xff]
    %v2743 = vld [vmem:[#allocation13 + $0x58] sm:$0xff]
    %v2744 = vld [vmem:[#allocation13 + $0x60] sm:$0xff]
    %v2745 = vld [vmem:[#allocation13 + $0x68] sm:$0xff]
    %v2746 = vld [vmem:[#allocation13 + $0x70] sm:$0xff]
    %v2747 = vld [vmem:[#allocation13 + $0x78] sm:$0xff]
    %v2764 = vunpack.c.l.b16 %v2732
    %v2765 = vunpack.c.h.b16 %v2732
    %v2766 = vunpack.c.l.b16 %v2733
    %v2767 = vunpack.c.h.b16 %v2733
    %v2768 = vunpack.c.l.b16 %v2734
    %v2769 = vunpack.c.h.b16 %v2734
    %v2770 = vunpack.c.l.b16 %v2735
    %v2771 = vunpack.c.h.b16 %v2735
    %v2772 = vunpack.c.l.b16 %v2736
    %v2773 = vunpack.c.h.b16 %v2736
    %v2774 = vunpack.c.l.b16 %v2737
    %v2775 = vunpack.c.h.b16 %v2737
    %v2776 = vunpack.c.l.b16 %v2738
    %v2777 = vunpack.c.h.b16 %v2738
    %v2778 = vunpack.c.l.b16 %v2739
    %v2779 = vunpack.c.h.b16 %v2739
    %v2780 = vunpack.c.l.b16 %v2740
    %v2781 = vunpack.c.h.b16 %v2740
    %v2782 = vunpack.c.l.b16 %v2741
    %v2783 = vunpack.c.h.b16 %v2741
    %v2784 = vunpack.c.l.b16 %v2742
    %v2785 = vunpack.c.h.b16 %v2742
    %v2786 = vunpack.c.l.b16 %v2743
    %v2787 = vunpack.c.h.b16 %v2743
    %v2788 = vunpack.c.l.b16 %v2744
    %v2789 = vunpack.c.h.b16 %v2744
    %v2790 = vunpack.c.l.b16 %v2745
    %v2791 = vunpack.c.h.b16 %v2745
    %v2792 = vunpack.c.l.b16 %v2746
    %v2793 = vunpack.c.h.b16 %v2746
    %v2794 = vunpack.c.l.b16 %v2747
    %v2795 = vunpack.c.h.b16 %v2747
    %v2796 = vpack.c.b16 %v2768, %v2764
    %v2797 = vpack.c.b16 %v2769, %v2765
    %v2798 = vpack.c.b16 %v2770, %v2766
    %v2799 = vpack.c.b16 %v2771, %v2767
    %v2800 = vpack.c.b16 %v2776, %v2772
    %v2801 = vpack.c.b16 %v2777, %v2773
    %v2802 = vpack.c.b16 %v2778, %v2774
    %v2803 = vpack.c.b16 %v2779, %v2775
    %v2804 = vpack.c.b16 %v2784, %v2780
    %v2805 = vpack.c.b16 %v2785, %v2781
    %v2806 = vpack.c.b16 %v2786, %v2782
    %v2807 = vpack.c.b16 %v2787, %v2783
    %v2808 = vpack.c.b16 %v2792, %v2788
    %v2809 = vpack.c.b16 %v2793, %v2789
    %v2810 = vpack.c.b16 %v2794, %v2790
    %v2811 = vpack.c.b16 %v2795, %v2791
    %vm2828 = vcmask 523264
    %v2830 = vsel %vm2828, %v2728, 0
    %v2833 = vsel %vm2828, %v2729, 0
    %v2836 = vsel %vm2828, %v2730, 0
    %v2839 = vsel %vm2828, %v2731, 0
    %2841 = vmatpush.bf16.msra.mxu0 0
    %2842 = vmatpush.bf16.msra.mxu0 0
    %2843 = vmatpush.bf16.msra.mxu0 0
    %2844 = vmatpush.bf16.msra.mxu0 0
    %2845 = vmatpush.bf16.msra.mxu0 %v2808
    %2846 = vmatpush.bf16.msra.mxu0 %v2804
    %2847 = vmatpush.bf16.msra.mxu0 %v2800
    %2848 = vmatpush.bf16.msra.mxu0 %v2796
    %2849 = vmatmul.bf16.gmra.mxu0 %v2830
    %v2850 = vpop.f32.mrf.mxu0
    %v2851 = vadd.f32 0.0, %v2850
    %v2852 = vpop.f32.mrf.mxu0
    %v2853 = vadd.f32 0.0, %v2852
    %2854 = vmatmul.bf16.gmra.mxu0 %v2833
    %v2855 = vpop.f32.mrf.mxu0
    %v2856 = vadd.f32 0.0, %v2855
    %v2857 = vpop.f32.mrf.mxu0
    %v2858 = vadd.f32 0.0, %v2857
    %2859 = vmatmul.bf16.gmra.mxu0 %v2836
    %v2860 = vpop.f32.mrf.mxu0
    %v2861 = vadd.f32 0.0, %v2860
    %v2862 = vpop.f32.mrf.mxu0
    %v2863 = vadd.f32 0.0, %v2862
    %2864 = vmatmul.bf16.gmra.mxu0 %v2839
    %v2865 = vpop.f32.mrf.mxu0
    %v2866 = vadd.f32 0.0, %v2865
    %v2867 = vpop.f32.mrf.mxu0
    %v2868 = vadd.f32 0.0, %v2867
    %2869 = vdwg.mxu0
    %2870 = vmatpush.bf16.msra.mxu0 0
    %2871 = vmatpush.bf16.msra.mxu0 0
    %2872 = vmatpush.bf16.msra.mxu0 0
    %2873 = vmatpush.bf16.msra.mxu0 0
    %2874 = vmatpush.bf16.msra.mxu0 %v2809
    %2875 = vmatpush.bf16.msra.mxu0 %v2805
    %2876 = vmatpush.bf16.msra.mxu0 %v2801
    %2877 = vmatpush.bf16.msra.mxu0 %v2797
    %2878 = vmatmul.bf16.gmra.mxu0 %v2830
    %v2879 = vpop.f32.mrf.mxu0
    %v2880 = vadd.f32 0.0, %v2879
    %v2881 = vpop.f32.mrf.mxu0
    %v2882 = vadd.f32 0.0, %v2881
    %2883 = vmatmul.bf16.gmra.mxu0 %v2833
    %v2884 = vpop.f32.mrf.mxu0
    %v2885 = vadd.f32 0.0, %v2884
    %v2886 = vpop.f32.mrf.mxu0
    %v2887 = vadd.f32 0.0, %v2886
    %2888 = vmatmul.bf16.gmra.mxu0 %v2836
    %v2889 = vpop.f32.mrf.mxu0
    %v2890 = vadd.f32 0.0, %v2889
    %v2891 = vpop.f32.mrf.mxu0
    %v2892 = vadd.f32 0.0, %v2891
    %2893 = vmatmul.bf16.gmra.mxu0 %v2839
    %v2894 = vpop.f32.mrf.mxu0
    %v2895 = vadd.f32 0.0, %v2894
    %v2896 = vpop.f32.mrf.mxu0
    %v2897 = vadd.f32 0.0, %v2896
    %2898 = vdwg.mxu0
    %2899 = vmatpush.bf16.msra.mxu0 0
    %2900 = vmatpush.bf16.msra.mxu0 0
    %2901 = vmatpush.bf16.msra.mxu0 0
    %2902 = vmatpush.bf16.msra.mxu0 0
    %2903 = vmatpush.bf16.msra.mxu0 %v2810
    %2904 = vmatpush.bf16.msra.mxu0 %v2806
    %2905 = vmatpush.bf16.msra.mxu0 %v2802
    %2906 = vmatpush.bf16.msra.mxu0 %v2798
    %2907 = vmatmul.bf16.gmra.mxu0 %v2830
    %v2908 = vpop.f32.mrf.mxu0
    %v2909 = vadd.f32 0.0, %v2908
    %v2910 = vpop.f32.mrf.mxu0
    %v2911 = vadd.f32 0.0, %v2910
    %2912 = vmatmul.bf16.gmra.mxu0 %v2833
    %v2913 = vpop.f32.mrf.mxu0
    %v2914 = vadd.f32 0.0, %v2913
    %v2915 = vpop.f32.mrf.mxu0
    %v2916 = vadd.f32 0.0, %v2915
    %2917 = vmatmul.bf16.gmra.mxu0 %v2836
    %v2918 = vpop.f32.mrf.mxu0
    %v2919 = vadd.f32 0.0, %v2918
    %v2920 = vpop.f32.mrf.mxu0
    %v2921 = vadd.f32 0.0, %v2920
    %2922 = vmatmul.bf16.gmra.mxu0 %v2839
    %v2923 = vpop.f32.mrf.mxu0
    %v2924 = vadd.f32 0.0, %v2923
    %v2925 = vpop.f32.mrf.mxu0
    %v2926 = vadd.f32 0.0, %v2925
    %2927 = vdwg.mxu0
    %2928 = vmatpush.bf16.msra.mxu0 0
    %2929 = vmatpush.bf16.msra.mxu0 0
    %2930 = vmatpush.bf16.msra.mxu0 0
    %2931 = vmatpush.bf16.msra.mxu0 0
    %2932 = vmatpush.bf16.msra.mxu0 %v2811
    %2933 = vmatpush.bf16.msra.mxu0 %v2807
    %2934 = vmatpush.bf16.msra.mxu0 %v2803
    %2935 = vmatpush.bf16.msra.mxu0 %v2799
    %2936 = vmatmul.bf16.gmra.mxu0 %v2830
    %v2937 = vpop.f32.mrf.mxu0
    %v2938 = vadd.f32 0.0, %v2937
    %v2939 = vpop.f32.mrf.mxu0
    %v2940 = vadd.f32 0.0, %v2939
    %2941 = vmatmul.bf16.gmra.mxu0 %v2833
    %v2942 = vpop.f32.mrf.mxu0
    %v2943 = vadd.f32 0.0, %v2942
    %v2944 = vpop.f32.mrf.mxu0
    %v2945 = vadd.f32 0.0, %v2944
    %2946 = vmatmul.bf16.gmra.mxu0 %v2836
    %v2947 = vpop.f32.mrf.mxu0
    %v2948 = vadd.f32 0.0, %v2947
    %v2949 = vpop.f32.mrf.mxu0
    %v2950 = vadd.f32 0.0, %v2949
    %2951 = vmatmul.bf16.gmra.mxu0 %v2839
    %v2952 = vpop.f32.mrf.mxu0
    %v2953 = vadd.f32 0.0, %v2952
    %v2954 = vpop.f32.mrf.mxu0
    %v2955 = vadd.f32 0.0, %v2954
    %2956 = vdwg.mxu0
    %v2957 = vmax.f32 %v2851, 0.0
    %v2958 = vmax.f32 %v2880, 0.0
    %v2959 = vmax.f32 %v2909, 0.0
    %v2960 = vmax.f32 %v2938, 0.0
    %v2961 = vmax.f32 %v2853, 0.0
    %v2962 = vmax.f32 %v2882, 0.0
    %v2963 = vmax.f32 %v2911, 0.0
    %v2964 = vmax.f32 %v2940, 0.0
    %v2965 = vmax.f32 %v2856, 0.0
    %v2966 = vmax.f32 %v2885, 0.0
    %v2967 = vmax.f32 %v2914, 0.0
    %v2968 = vmax.f32 %v2943, 0.0
    %v2969 = vmax.f32 %v2858, 0.0
    %v2970 = vmax.f32 %v2887, 0.0
    %v2971 = vmax.f32 %v2916, 0.0
    %v2972 = vmax.f32 %v2945, 0.0
    %v2973 = vmax.f32 %v2861, 0.0
    %v2974 = vmax.f32 %v2890, 0.0
    %v2975 = vmax.f32 %v2919, 0.0
    %v2976 = vmax.f32 %v2948, 0.0
    %v2977 = vmax.f32 %v2863, 0.0
    %v2978 = vmax.f32 %v2892, 0.0
    %v2979 = vmax.f32 %v2921, 0.0
    %v2980 = vmax.f32 %v2950, 0.0
    %v2981 = vmax.f32 %v2866, 0.0
    %v2982 = vmax.f32 %v2895, 0.0
    %v2983 = vmax.f32 %v2924, 0.0
    %v2984 = vmax.f32 %v2953, 0.0
    %v2985 = vmax.f32 %v2868, 0.0
    %v2986 = vmax.f32 %v2897, 0.0
    %v2987 = vmax.f32 %v2926, 0.0
    %v2988 = vmax.f32 %v2955, 0.0
    %v2989 = vpack.c.bf16 %v2961, %v2957
    %v2990 = vpack.c.bf16 %v2962, %v2958
    %v2991 = vpack.c.bf16 %v2963, %v2959
    %v2992 = vpack.c.bf16 %v2964, %v2960
    %v2993 = vpack.c.bf16 %v2969, %v2965
    %v2994 = vpack.c.bf16 %v2970, %v2966
    %v2995 = vpack.c.bf16 %v2971, %v2967
    %v2996 = vpack.c.bf16 %v2972, %v2968
    %v2997 = vpack.c.bf16 %v2977, %v2973
    %v2998 = vpack.c.bf16 %v2978, %v2974
    %v2999 = vpack.c.bf16 %v2979, %v2975
    %v3000 = vpack.c.bf16 %v2980, %v2976
    %v3001 = vpack.c.bf16 %v2985, %v2981
    %v3002 = vpack.c.bf16 %v2986, %v2982
    %v3003 = vpack.c.bf16 %v2987, %v2983
    %v3004 = vpack.c.bf16 %v2988, %v2984
    %v3005 = vld [vmem:[#allocation14] sm:$0xff]
    %v3006 = vld [vmem:[#allocation14 + $0x8] sm:$0xff]
    %v3007 = vld [vmem:[#allocation14 + $0x10] sm:$0xff]
    %v3008 = vld [vmem:[#allocation14 + $0x18] sm:$0xff]
    %v3009 = vld [vmem:[#allocation14 + $0x20] sm:$0xff]
    %v3010 = vld [vmem:[#allocation14 + $0x28] sm:$0xff]
    %v3011 = vld [vmem:[#allocation14 + $0x30] sm:$0xff]
    %v3012 = vld [vmem:[#allocation14 + $0x38] sm:$0xff]
    %v3013 = vld [vmem:[#allocation14 + $0x40] sm:$0xff]
    %v3014 = vld [vmem:[#allocation14 + $0x48] sm:$0xff]
    %v3015 = vld [vmem:[#allocation14 + $0x50] sm:$0xff]
    %v3016 = vld [vmem:[#allocation14 + $0x58] sm:$0xff]
    %v3017 = vld [vmem:[#allocation14 + $0x60] sm:$0xff]
    %v3018 = vld [vmem:[#allocation14 + $0x68] sm:$0xff]
    %v3019 = vld [vmem:[#allocation14 + $0x70] sm:$0xff]
    %v3020 = vld [vmem:[#allocation14 + $0x78] sm:$0xff]
    %v3021 = vld [vmem:[#allocation14 + $0x80] sm:$0xff]
    %v3022 = vld [vmem:[#allocation14 + $0x88] sm:$0xff]
    %v3023 = vld [vmem:[#allocation14 + $0x90] sm:$0xff]
    %v3024 = vld [vmem:[#allocation14 + $0x98] sm:$0xff]
    %v3025 = vld [vmem:[#allocation14 + $0xa0] sm:$0xff]
    %v3026 = vld [vmem:[#allocation14 + $0xa8] sm:$0xff]
    %v3027 = vld [vmem:[#allocation14 + $0xb0] sm:$0xff]
    %v3028 = vld [vmem:[#allocation14 + $0xb8] sm:$0xff]
    %v3029 = vld [vmem:[#allocation14 + $0xc0] sm:$0xff]
    %v3030 = vld [vmem:[#allocation14 + $0xc8] sm:$0xff]
    %v3031 = vld [vmem:[#allocation14 + $0xd0] sm:$0xff]
    %v3032 = vld [vmem:[#allocation14 + $0xd8] sm:$0xff]
    %v3033 = vld [vmem:[#allocation14 + $0xe0] sm:$0xff]
    %v3034 = vld [vmem:[#allocation14 + $0xe8] sm:$0xff]
    %v3035 = vld [vmem:[#allocation14 + $0xf0] sm:$0xff]
    %v3036 = vld [vmem:[#allocation14 + $0xf8] sm:$0xff]
    %v3037 = vld [vmem:[#allocation14 + $0x100] sm:$0xff]
    %v3038 = vld [vmem:[#allocation14 + $0x108] sm:$0xff]
    %v3039 = vld [vmem:[#allocation14 + $0x110] sm:$0xff]
    %v3040 = vld [vmem:[#allocation14 + $0x118] sm:$0xff]
    %v3041 = vld [vmem:[#allocation14 + $0x120] sm:$0xff]
    %v3042 = vld [vmem:[#allocation14 + $0x128] sm:$0xff]
    %v3043 = vld [vmem:[#allocation14 + $0x130] sm:$0xff]
    %v3044 = vld [vmem:[#allocation14 + $0x138] sm:$0xff]
    %v3045 = vld [vmem:[#allocation14 + $0x140] sm:$0xff]
    %v3046 = vld [vmem:[#allocation14 + $0x148] sm:$0xff]
    %v3047 = vld [vmem:[#allocation14 + $0x150] sm:$0xff]
    %v3048 = vld [vmem:[#allocation14 + $0x158] sm:$0xff]
    %v3049 = vld [vmem:[#allocation14 + $0x160] sm:$0xff]
    %v3050 = vld [vmem:[#allocation14 + $0x168] sm:$0xff]
    %v3051 = vld [vmem:[#allocation14 + $0x170] sm:$0xff]
    %v3052 = vld [vmem:[#allocation14 + $0x178] sm:$0xff]
    %v3053 = vld [vmem:[#allocation14 + $0x180] sm:$0xff]
    %v3054 = vld [vmem:[#allocation14 + $0x188] sm:$0xff]
    %v3055 = vld [vmem:[#allocation14 + $0x190] sm:$0xff]
    %v3056 = vld [vmem:[#allocation14 + $0x198] sm:$0xff]
    %v3057 = vld [vmem:[#allocation14 + $0x1a0] sm:$0xff]
    %v3058 = vld [vmem:[#allocation14 + $0x1a8] sm:$0xff]
    %v3059 = vld [vmem:[#allocation14 + $0x1b0] sm:$0xff]
    %v3060 = vld [vmem:[#allocation14 + $0x1b8] sm:$0xff]
    %v3061 = vld [vmem:[#allocation14 + $0x1c0] sm:$0xff]
    %v3062 = vld [vmem:[#allocation14 + $0x1c8] sm:$0xff]
    %v3063 = vld [vmem:[#allocation14 + $0x1d0] sm:$0xff]
    %v3064 = vld [vmem:[#allocation14 + $0x1d8] sm:$0xff]
    %v3065 = vld [vmem:[#allocation14 + $0x1e0] sm:$0xff]
    %v3066 = vld [vmem:[#allocation14 + $0x1e8] sm:$0xff]
    %v3067 = vld [vmem:[#allocation14 + $0x1f0] sm:$0xff]
    %v3068 = vld [vmem:[#allocation14 + $0x1f8] sm:$0xff]
    %v3069 = vld [vmem:[#allocation14 + $0x200] sm:$0xff]
    %v3070 = vld [vmem:[#allocation14 + $0x208] sm:$0xff]
    %v3071 = vld [vmem:[#allocation14 + $0x210] sm:$0xff]
    %v3072 = vld [vmem:[#allocation14 + $0x218] sm:$0xff]
    %v3073 = vld [vmem:[#allocation14 + $0x220] sm:$0xff]
    %v3074 = vld [vmem:[#allocation14 + $0x228] sm:$0xff]
    %v3075 = vld [vmem:[#allocation14 + $0x230] sm:$0xff]
    %v3076 = vld [vmem:[#allocation14 + $0x238] sm:$0xff]
    %v3077 = vld [vmem:[#allocation14 + $0x240] sm:$0xff]
    %v3078 = vld [vmem:[#allocation14 + $0x248] sm:$0xff]
    %v3079 = vld [vmem:[#allocation14 + $0x250] sm:$0xff]
    %v3080 = vld [vmem:[#allocation14 + $0x258] sm:$0xff]
    %v3081 = vld [vmem:[#allocation14 + $0x260] sm:$0xff]
    %v3082 = vld [vmem:[#allocation14 + $0x268] sm:$0xff]
    %v3083 = vld [vmem:[#allocation14 + $0x270] sm:$0xff]
    %v3084 = vld [vmem:[#allocation14 + $0x278] sm:$0xff]
    %v3085 = vld [vmem:[#allocation14 + $0x280] sm:$0xff]
    %v3086 = vld [vmem:[#allocation14 + $0x288] sm:$0xff]
    %v3087 = vld [vmem:[#allocation14 + $0x290] sm:$0xff]
    %v3088 = vld [vmem:[#allocation14 + $0x298] sm:$0xff]
    %v3089 = vld [vmem:[#allocation14 + $0x2a0] sm:$0xff]
    %v3090 = vld [vmem:[#allocation14 + $0x2a8] sm:$0xff]
    %v3091 = vld [vmem:[#allocation14 + $0x2b0] sm:$0xff]
    %v3092 = vld [vmem:[#allocation14 + $0x2b8] sm:$0xff]
    %v3093 = vld [vmem:[#allocation14 + $0x2c0] sm:$0xff]
    %v3094 = vld [vmem:[#allocation14 + $0x2c8] sm:$0xff]
    %v3095 = vld [vmem:[#allocation14 + $0x2d0] sm:$0xff]
    %v3096 = vld [vmem:[#allocation14 + $0x2d8] sm:$0xff]
    %v3097 = vld [vmem:[#allocation14 + $0x2e0] sm:$0xff]
    %v3098 = vld [vmem:[#allocation14 + $0x2e8] sm:$0xff]
    %v3099 = vld [vmem:[#allocation14 + $0x2f0] sm:$0xff]
    %v3100 = vld [vmem:[#allocation14 + $0x2f8] sm:$0xff]
    %v3101 = vld [vmem:[#allocation14 + $0x300] sm:$0xff]
    %v3102 = vld [vmem:[#allocation14 + $0x308] sm:$0xff]
    %v3103 = vld [vmem:[#allocation14 + $0x310] sm:$0xff]
    %v3104 = vld [vmem:[#allocation14 + $0x318] sm:$0xff]
    %v3105 = vld [vmem:[#allocation14 + $0x320] sm:$0xff]
    %v3106 = vld [vmem:[#allocation14 + $0x328] sm:$0xff]
    %v3107 = vld [vmem:[#allocation14 + $0x330] sm:$0xff]
    %v3108 = vld [vmem:[#allocation14 + $0x338] sm:$0xff]
    %v3109 = vld [vmem:[#allocation14 + $0x340] sm:$0xff]
    %v3110 = vld [vmem:[#allocation14 + $0x348] sm:$0xff]
    %v3111 = vld [vmem:[#allocation14 + $0x350] sm:$0xff]
    %v3112 = vld [vmem:[#allocation14 + $0x358] sm:$0xff]
    %v3113 = vld [vmem:[#allocation14 + $0x360] sm:$0xff]
    %v3114 = vld [vmem:[#allocation14 + $0x368] sm:$0xff]
    %v3115 = vld [vmem:[#allocation14 + $0x370] sm:$0xff]
    %v3116 = vld [vmem:[#allocation14 + $0x378] sm:$0xff]
    %v3117 = vld [vmem:[#allocation14 + $0x380] sm:$0xff]
    %v3118 = vld [vmem:[#allocation14 + $0x388] sm:$0xff]
    %v3119 = vld [vmem:[#allocation14 + $0x390] sm:$0xff]
    %v3120 = vld [vmem:[#allocation14 + $0x398] sm:$0xff]
    %v3121 = vld [vmem:[#allocation14 + $0x3a0] sm:$0xff]
    %v3122 = vld [vmem:[#allocation14 + $0x3a8] sm:$0xff]
    %v3123 = vld [vmem:[#allocation14 + $0x3b0] sm:$0xff]
    %v3124 = vld [vmem:[#allocation14 + $0x3b8] sm:$0xff]
    %v3125 = vld [vmem:[#allocation14 + $0x3c0] sm:$0xff]
    %v3126 = vld [vmem:[#allocation14 + $0x3c8] sm:$0xff]
    %v3127 = vld [vmem:[#allocation14 + $0x3d0] sm:$0xff]
    %v3128 = vld [vmem:[#allocation14 + $0x3d8] sm:$0xff]
    %v3129 = vld [vmem:[#allocation14 + $0x3e0] sm:$0xff]
    %v3130 = vld [vmem:[#allocation14 + $0x3e8] sm:$0xff]
    %v3131 = vld [vmem:[#allocation14 + $0x3f0] sm:$0xff]
    %v3132 = vld [vmem:[#allocation14 + $0x3f8] sm:$0xff]
    %v3261 = vunpack.c.l.b16 %v3005
    %v3262 = vunpack.c.h.b16 %v3005
    %v3263 = vunpack.c.l.b16 %v3006
    %v3264 = vunpack.c.h.b16 %v3006
    %v3265 = vunpack.c.l.b16 %v3007
    %v3266 = vunpack.c.h.b16 %v3007
    %v3267 = vunpack.c.l.b16 %v3008
    %v3268 = vunpack.c.h.b16 %v3008
    %v3269 = vunpack.c.l.b16 %v3009
    %v3270 = vunpack.c.h.b16 %v3009
    %v3271 = vunpack.c.l.b16 %v3010
    %v3272 = vunpack.c.h.b16 %v3010
    %v3273 = vunpack.c.l.b16 %v3011
    %v3274 = vunpack.c.h.b16 %v3011
    %v3275 = vunpack.c.l.b16 %v3012
    %v3276 = vunpack.c.h.b16 %v3012
    %v3277 = vunpack.c.l.b16 %v3013
    %v3278 = vunpack.c.h.b16 %v3013
    %v3279 = vunpack.c.l.b16 %v3014
    %v3280 = vunpack.c.h.b16 %v3014
    %v3281 = vunpack.c.l.b16 %v3015
    %v3282 = vunpack.c.h.b16 %v3015
    %v3283 = vunpack.c.l.b16 %v3016
    %v3284 = vunpack.c.h.b16 %v3016
    %v3285 = vunpack.c.l.b16 %v3017
    %v3286 = vunpack.c.h.b16 %v3017
    %v3287 = vunpack.c.l.b16 %v3018
    %v3288 = vunpack.c.h.b16 %v3018
    %v3289 = vunpack.c.l.b16 %v3019
    %v3290 = vunpack.c.h.b16 %v3019
    %v3291 = vunpack.c.l.b16 %v3020
    %v3292 = vunpack.c.h.b16 %v3020
    %v3293 = vunpack.c.l.b16 %v3021
    %v3294 = vunpack.c.h.b16 %v3021
    %v3295 = vunpack.c.l.b16 %v3022
    %v3296 = vunpack.c.h.b16 %v3022
    %v3297 = vunpack.c.l.b16 %v3023
    %v3298 = vunpack.c.h.b16 %v3023
    %v3299 = vunpack.c.l.b16 %v3024
    %v3300 = vunpack.c.h.b16 %v3024
    %v3301 = vunpack.c.l.b16 %v3025
    %v3302 = vunpack.c.h.b16 %v3025
    %v3303 = vunpack.c.l.b16 %v3026
    %v3304 = vunpack.c.h.b16 %v3026
    %v3305 = vunpack.c.l.b16 %v3027
    %v3306 = vunpack.c.h.b16 %v3027
    %v3307 = vunpack.c.l.b16 %v3028
    %v3308 = vunpack.c.h.b16 %v3028
    %v3309 = vunpack.c.l.b16 %v3029
    %v3310 = vunpack.c.h.b16 %v3029
    %v3311 = vunpack.c.l.b16 %v3030
    %v3312 = vunpack.c.h.b16 %v3030
    %v3313 = vunpack.c.l.b16 %v3031
    %v3314 = vunpack.c.h.b16 %v3031
    %v3315 = vunpack.c.l.b16 %v3032
    %v3316 = vunpack.c.h.b16 %v3032
    %v3317 = vunpack.c.l.b16 %v3033
    %v3318 = vunpack.c.h.b16 %v3033
    %v3319 = vunpack.c.l.b16 %v3034
    %v3320 = vunpack.c.h.b16 %v3034
    %v3321 = vunpack.c.l.b16 %v3035
    %v3322 = vunpack.c.h.b16 %v3035
    %v3323 = vunpack.c.l.b16 %v3036
    %v3324 = vunpack.c.h.b16 %v3036
    %v3325 = vunpack.c.l.b16 %v3037
    %v3326 = vunpack.c.h.b16 %v3037
    %v3327 = vunpack.c.l.b16 %v3038
    %v3328 = vunpack.c.h.b16 %v3038
    %v3329 = vunpack.c.l.b16 %v3039
    %v3330 = vunpack.c.h.b16 %v3039
    %v3331 = vunpack.c.l.b16 %v3040
    %v3332 = vunpack.c.h.b16 %v3040
    %v3333 = vunpack.c.l.b16 %v3041
    %v3334 = vunpack.c.h.b16 %v3041
    %v3335 = vunpack.c.l.b16 %v3042
    %v3336 = vunpack.c.h.b16 %v3042
    %v3337 = vunpack.c.l.b16 %v3043
    %v3338 = vunpack.c.h.b16 %v3043
    %v3339 = vunpack.c.l.b16 %v3044
    %v3340 = vunpack.c.h.b16 %v3044
    %v3341 = vunpack.c.l.b16 %v3045
    %v3342 = vunpack.c.h.b16 %v3045
    %v3343 = vunpack.c.l.b16 %v3046
    %v3344 = vunpack.c.h.b16 %v3046
    %v3345 = vunpack.c.l.b16 %v3047
    %v3346 = vunpack.c.h.b16 %v3047
    %v3347 = vunpack.c.l.b16 %v3048
    %v3348 = vunpack.c.h.b16 %v3048
    %v3349 = vunpack.c.l.b16 %v3049
    %v3350 = vunpack.c.h.b16 %v3049
    %v3351 = vunpack.c.l.b16 %v3050
    %v3352 = vunpack.c.h.b16 %v3050
    %v3353 = vunpack.c.l.b16 %v3051
    %v3354 = vunpack.c.h.b16 %v3051
    %v3355 = vunpack.c.l.b16 %v3052
    %v3356 = vunpack.c.h.b16 %v3052
    %v3357 = vunpack.c.l.b16 %v3053
    %v3358 = vunpack.c.h.b16 %v3053
    %v3359 = vunpack.c.l.b16 %v3054
    %v3360 = vunpack.c.h.b16 %v3054
    %v3361 = vunpack.c.l.b16 %v3055
    %v3362 = vunpack.c.h.b16 %v3055
    %v3363 = vunpack.c.l.b16 %v3056
    %v3364 = vunpack.c.h.b16 %v3056
    %v3365 = vunpack.c.l.b16 %v3057
    %v3366 = vunpack.c.h.b16 %v3057
    %v3367 = vunpack.c.l.b16 %v3058
    %v3368 = vunpack.c.h.b16 %v3058
    %v3369 = vunpack.c.l.b16 %v3059
    %v3370 = vunpack.c.h.b16 %v3059
    %v3371 = vunpack.c.l.b16 %v3060
    %v3372 = vunpack.c.h.b16 %v3060
    %v3373 = vunpack.c.l.b16 %v3061
    %v3374 = vunpack.c.h.b16 %v3061
    %v3375 = vunpack.c.l.b16 %v3062
    %v3376 = vunpack.c.h.b16 %v3062
    %v3377 = vunpack.c.l.b16 %v3063
    %v3378 = vunpack.c.h.b16 %v3063
    %v3379 = vunpack.c.l.b16 %v3064
    %v3380 = vunpack.c.h.b16 %v3064
    %v3381 = vunpack.c.l.b16 %v3065
    %v3382 = vunpack.c.h.b16 %v3065
    %v3383 = vunpack.c.l.b16 %v3066
    %v3384 = vunpack.c.h.b16 %v3066
    %v3385 = vunpack.c.l.b16 %v3067
    %v3386 = vunpack.c.h.b16 %v3067
    %v3387 = vunpack.c.l.b16 %v3068
    %v3388 = vunpack.c.h.b16 %v3068
    %v3389 = vunpack.c.l.b16 %v3069
    %v3390 = vunpack.c.h.b16 %v3069
    %v3391 = vunpack.c.l.b16 %v3070
    %v3392 = vunpack.c.h.b16 %v3070
    %v3393 = vunpack.c.l.b16 %v3071
    %v3394 = vunpack.c.h.b16 %v3071
    %v3395 = vunpack.c.l.b16 %v3072
    %v3396 = vunpack.c.h.b16 %v3072
    %v3397 = vunpack.c.l.b16 %v3073
    %v3398 = vunpack.c.h.b16 %v3073
    %v3399 = vunpack.c.l.b16 %v3074
    %v3400 = vunpack.c.h.b16 %v3074
    %v3401 = vunpack.c.l.b16 %v3075
    %v3402 = vunpack.c.h.b16 %v3075
    %v3403 = vunpack.c.l.b16 %v3076
    %v3404 = vunpack.c.h.b16 %v3076
    %v3405 = vunpack.c.l.b16 %v3077
    %v3406 = vunpack.c.h.b16 %v3077
    %v3407 = vunpack.c.l.b16 %v3078
    %v3408 = vunpack.c.h.b16 %v3078
    %v3409 = vunpack.c.l.b16 %v3079
    %v3410 = vunpack.c.h.b16 %v3079
    %v3411 = vunpack.c.l.b16 %v3080
    %v3412 = vunpack.c.h.b16 %v3080
    %v3413 = vunpack.c.l.b16 %v3081
    %v3414 = vunpack.c.h.b16 %v3081
    %v3415 = vunpack.c.l.b16 %v3082
    %v3416 = vunpack.c.h.b16 %v3082
    %v3417 = vunpack.c.l.b16 %v3083
    %v3418 = vunpack.c.h.b16 %v3083
    %v3419 = vunpack.c.l.b16 %v3084
    %v3420 = vunpack.c.h.b16 %v3084
    %v3421 = vunpack.c.l.b16 %v3085
    %v3422 = vunpack.c.h.b16 %v3085
    %v3423 = vunpack.c.l.b16 %v3086
    %v3424 = vunpack.c.h.b16 %v3086
    %v3425 = vunpack.c.l.b16 %v3087
    %v3426 = vunpack.c.h.b16 %v3087
    %v3427 = vunpack.c.l.b16 %v3088
    %v3428 = vunpack.c.h.b16 %v3088
    %v3429 = vunpack.c.l.b16 %v3089
    %v3430 = vunpack.c.h.b16 %v3089
    %v3431 = vunpack.c.l.b16 %v3090
    %v3432 = vunpack.c.h.b16 %v3090
    %v3433 = vunpack.c.l.b16 %v3091
    %v3434 = vunpack.c.h.b16 %v3091
    %v3435 = vunpack.c.l.b16 %v3092
    %v3436 = vunpack.c.h.b16 %v3092
    %v3437 = vunpack.c.l.b16 %v3093
    %v3438 = vunpack.c.h.b16 %v3093
    %v3439 = vunpack.c.l.b16 %v3094
    %v3440 = vunpack.c.h.b16 %v3094
    %v3441 = vunpack.c.l.b16 %v3095
    %v3442 = vunpack.c.h.b16 %v3095
    %v3443 = vunpack.c.l.b16 %v3096
    %v3444 = vunpack.c.h.b16 %v3096
    %v3445 = vunpack.c.l.b16 %v3097
    %v3446 = vunpack.c.h.b16 %v3097
    %v3447 = vunpack.c.l.b16 %v3098
    %v3448 = vunpack.c.h.b16 %v3098
    %v3449 = vunpack.c.l.b16 %v3099
    %v3450 = vunpack.c.h.b16 %v3099
    %v3451 = vunpack.c.l.b16 %v3100
    %v3452 = vunpack.c.h.b16 %v3100
    %v3453 = vunpack.c.l.b16 %v3101
    %v3454 = vunpack.c.h.b16 %v3101
    %v3455 = vunpack.c.l.b16 %v3102
    %v3456 = vunpack.c.h.b16 %v3102
    %v3457 = vunpack.c.l.b16 %v3103
    %v3458 = vunpack.c.h.b16 %v3103
    %v3459 = vunpack.c.l.b16 %v3104
    %v3460 = vunpack.c.h.b16 %v3104
    %v3461 = vunpack.c.l.b16 %v3105
    %v3462 = vunpack.c.h.b16 %v3105
    %v3463 = vunpack.c.l.b16 %v3106
    %v3464 = vunpack.c.h.b16 %v3106
    %v3465 = vunpack.c.l.b16 %v3107
    %v3466 = vunpack.c.h.b16 %v3107
    %v3467 = vunpack.c.l.b16 %v3108
    %v3468 = vunpack.c.h.b16 %v3108
    %v3469 = vunpack.c.l.b16 %v3109
    %v3470 = vunpack.c.h.b16 %v3109
    %v3471 = vunpack.c.l.b16 %v3110
    %v3472 = vunpack.c.h.b16 %v3110
    %v3473 = vunpack.c.l.b16 %v3111
    %v3474 = vunpack.c.h.b16 %v3111
    %v3475 = vunpack.c.l.b16 %v3112
    %v3476 = vunpack.c.h.b16 %v3112
    %v3477 = vunpack.c.l.b16 %v3113
    %v3478 = vunpack.c.h.b16 %v3113
    %v3479 = vunpack.c.l.b16 %v3114
    %v3480 = vunpack.c.h.b16 %v3114
    %v3481 = vunpack.c.l.b16 %v3115
    %v3482 = vunpack.c.h.b16 %v3115
    %v3483 = vunpack.c.l.b16 %v3116
    %v3484 = vunpack.c.h.b16 %v3116
    %v3485 = vunpack.c.l.b16 %v3117
    %v3486 = vunpack.c.h.b16 %v3117
    %v3487 = vunpack.c.l.b16 %v3118
    %v3488 = vunpack.c.h.b16 %v3118
    %v3489 = vunpack.c.l.b16 %v3119
    %v3490 = vunpack.c.h.b16 %v3119
    %v3491 = vunpack.c.l.b16 %v3120
    %v3492 = vunpack.c.h.b16 %v3120
    %v3493 = vunpack.c.l.b16 %v3121
    %v3494 = vunpack.c.h.b16 %v3121
    %v3495 = vunpack.c.l.b16 %v3122
    %v3496 = vunpack.c.h.b16 %v3122
    %v3497 = vunpack.c.l.b16 %v3123
    %v3498 = vunpack.c.h.b16 %v3123
    %v3499 = vunpack.c.l.b16 %v3124
    %v3500 = vunpack.c.h.b16 %v3124
    %v3501 = vunpack.c.l.b16 %v3125
    %v3502 = vunpack.c.h.b16 %v3125
    %v3503 = vunpack.c.l.b16 %v3126
    %v3504 = vunpack.c.h.b16 %v3126
    %v3505 = vunpack.c.l.b16 %v3127
    %v3506 = vunpack.c.h.b16 %v3127
    %v3507 = vunpack.c.l.b16 %v3128
    %v3508 = vunpack.c.h.b16 %v3128
    %v3509 = vunpack.c.l.b16 %v3129
    %v3510 = vunpack.c.h.b16 %v3129
    %v3511 = vunpack.c.l.b16 %v3130
    %v3512 = vunpack.c.h.b16 %v3130
    %v3513 = vunpack.c.l.b16 %v3131
    %v3514 = vunpack.c.h.b16 %v3131
    %v3515 = vunpack.c.l.b16 %v3132
    %v3516 = vunpack.c.h.b16 %v3132
    %v3517 = vpack.c.b16 %v3265, %v3261
    %v3518 = vpack.c.b16 %v3266, %v3262
    %v3519 = vpack.c.b16 %v3267, %v3263
    %v3520 = vpack.c.b16 %v3268, %v3264
    %v3521 = vpack.c.b16 %v3273, %v3269
    %v3522 = vpack.c.b16 %v3274, %v3270
    %v3523 = vpack.c.b16 %v3275, %v3271
    %v3524 = vpack.c.b16 %v3276, %v3272
    %v3525 = vpack.c.b16 %v3281, %v3277
    %v3526 = vpack.c.b16 %v3282, %v3278
    %v3527 = vpack.c.b16 %v3283, %v3279
    %v3528 = vpack.c.b16 %v3284, %v3280
    %v3529 = vpack.c.b16 %v3289, %v3285
    %v3530 = vpack.c.b16 %v3290, %v3286
    %v3531 = vpack.c.b16 %v3291, %v3287
    %v3532 = vpack.c.b16 %v3292, %v3288
    %v3533 = vpack.c.b16 %v3297, %v3293
    %v3534 = vpack.c.b16 %v3298, %v3294
    %v3535 = vpack.c.b16 %v3299, %v3295
    %v3536 = vpack.c.b16 %v3300, %v3296
    %v3537 = vpack.c.b16 %v3305, %v3301
    %v3538 = vpack.c.b16 %v3306, %v3302
    %v3539 = vpack.c.b16 %v3307, %v3303
    %v3540 = vpack.c.b16 %v3308, %v3304
    %v3541 = vpack.c.b16 %v3313, %v3309
    %v3542 = vpack.c.b16 %v3314, %v3310
    %v3543 = vpack.c.b16 %v3315, %v3311
    %v3544 = vpack.c.b16 %v3316, %v3312
    %v3545 = vpack.c.b16 %v3321, %v3317
    %v3546 = vpack.c.b16 %v3322, %v3318
    %v3547 = vpack.c.b16 %v3323, %v3319
    %v3548 = vpack.c.b16 %v3324, %v3320
    %v3549 = vpack.c.b16 %v3329, %v3325
    %v3550 = vpack.c.b16 %v3330, %v3326
    %v3551 = vpack.c.b16 %v3331, %v3327
    %v3552 = vpack.c.b16 %v3332, %v3328
    %v3553 = vpack.c.b16 %v3337, %v3333
    %v3554 = vpack.c.b16 %v3338, %v3334
    %v3555 = vpack.c.b16 %v3339, %v3335
    %v3556 = vpack.c.b16 %v3340, %v3336
    %v3557 = vpack.c.b16 %v3345, %v3341
    %v3558 = vpack.c.b16 %v3346, %v3342
    %v3559 = vpack.c.b16 %v3347, %v3343
    %v3560 = vpack.c.b16 %v3348, %v3344
    %v3561 = vpack.c.b16 %v3353, %v3349
    %v3562 = vpack.c.b16 %v3354, %v3350
    %v3563 = vpack.c.b16 %v3355, %v3351
    %v3564 = vpack.c.b16 %v3356, %v3352
    %v3565 = vpack.c.b16 %v3361, %v3357
    %v3566 = vpack.c.b16 %v3362, %v3358
    %v3567 = vpack.c.b16 %v3363, %v3359
    %v3568 = vpack.c.b16 %v3364, %v3360
    %v3569 = vpack.c.b16 %v3369, %v3365
    %v3570 = vpack.c.b16 %v3370, %v3366
    %v3571 = vpack.c.b16 %v3371, %v3367
    %v3572 = vpack.c.b16 %v3372, %v3368
    %v3573 = vpack.c.b16 %v3377, %v3373
    %v3574 = vpack.c.b16 %v3378, %v3374
    %v3575 = vpack.c.b16 %v3379, %v3375
    %v3576 = vpack.c.b16 %v3380, %v3376
    %v3577 = vpack.c.b16 %v3385, %v3381
    %v3578 = vpack.c.b16 %v3386, %v3382
    %v3579 = vpack.c.b16 %v3387, %v3383
    %v3580 = vpack.c.b16 %v3388, %v3384
    %v3581 = vpack.c.b16 %v3393, %v3389
    %v3582 = vpack.c.b16 %v3394, %v3390
    %v3583 = vpack.c.b16 %v3395, %v3391
    %v3584 = vpack.c.b16 %v3396, %v3392
    %v3585 = vpack.c.b16 %v3401, %v3397
    %v3586 = vpack.c.b16 %v3402, %v3398
    %v3587 = vpack.c.b16 %v3403, %v3399
    %v3588 = vpack.c.b16 %v3404, %v3400
    %v3589 = vpack.c.b16 %v3409, %v3405
    %v3590 = vpack.c.b16 %v3410, %v3406
    %v3591 = vpack.c.b16 %v3411, %v3407
    %v3592 = vpack.c.b16 %v3412, %v3408
    %v3593 = vpack.c.b16 %v3417, %v3413
    %v3594 = vpack.c.b16 %v3418, %v3414
    %v3595 = vpack.c.b16 %v3419, %v3415
    %v3596 = vpack.c.b16 %v3420, %v3416
    %v3597 = vpack.c.b16 %v3425, %v3421
    %v3598 = vpack.c.b16 %v3426, %v3422
    %v3599 = vpack.c.b16 %v3427, %v3423
    %v3600 = vpack.c.b16 %v3428, %v3424
    %v3601 = vpack.c.b16 %v3433, %v3429
    %v3602 = vpack.c.b16 %v3434, %v3430
    %v3603 = vpack.c.b16 %v3435, %v3431
    %v3604 = vpack.c.b16 %v3436, %v3432
    %v3605 = vpack.c.b16 %v3441, %v3437
    %v3606 = vpack.c.b16 %v3442, %v3438
    %v3607 = vpack.c.b16 %v3443, %v3439
    %v3608 = vpack.c.b16 %v3444, %v3440
    %v3609 = vpack.c.b16 %v3449, %v3445
    %v3610 = vpack.c.b16 %v3450, %v3446
    %v3611 = vpack.c.b16 %v3451, %v3447
    %v3612 = vpack.c.b16 %v3452, %v3448
    %v3613 = vpack.c.b16 %v3457, %v3453
    %v3614 = vpack.c.b16 %v3458, %v3454
    %v3615 = vpack.c.b16 %v3459, %v3455
    %v3616 = vpack.c.b16 %v3460, %v3456
    %v3617 = vpack.c.b16 %v3465, %v3461
    %v3618 = vpack.c.b16 %v3466, %v3462
    %v3619 = vpack.c.b16 %v3467, %v3463
    %v3620 = vpack.c.b16 %v3468, %v3464
    %v3621 = vpack.c.b16 %v3473, %v3469
    %v3622 = vpack.c.b16 %v3474, %v3470
    %v3623 = vpack.c.b16 %v3475, %v3471
    %v3624 = vpack.c.b16 %v3476, %v3472
    %v3625 = vpack.c.b16 %v3481, %v3477
    %v3626 = vpack.c.b16 %v3482, %v3478
    %v3627 = vpack.c.b16 %v3483, %v3479
    %v3628 = vpack.c.b16 %v3484, %v3480
    %v3629 = vpack.c.b16 %v3489, %v3485
    %v3630 = vpack.c.b16 %v3490, %v3486
    %v3631 = vpack.c.b16 %v3491, %v3487
    %v3632 = vpack.c.b16 %v3492, %v3488
    %v3633 = vpack.c.b16 %v3497, %v3493
    %v3634 = vpack.c.b16 %v3498, %v3494
    %v3635 = vpack.c.b16 %v3499, %v3495
    %v3636 = vpack.c.b16 %v3500, %v3496
    %v3637 = vpack.c.b16 %v3505, %v3501
    %v3638 = vpack.c.b16 %v3506, %v3502
    %v3639 = vpack.c.b16 %v3507, %v3503
    %v3640 = vpack.c.b16 %v3508, %v3504
    %v3641 = vpack.c.b16 %v3513, %v3509
    %v3642 = vpack.c.b16 %v3514, %v3510
    %v3643 = vpack.c.b16 %v3515, %v3511
    %v3644 = vpack.c.b16 %v3516, %v3512
    %3773 = vmatpush.bf16.msra.mxu0 %v3545
    %3774 = vmatpush.bf16.msra.mxu0 %v3541
    %3775 = vmatpush.bf16.msra.mxu0 %v3537
    %3776 = vmatpush.bf16.msra.mxu0 %v3533
    %3777 = vmatpush.bf16.msra.mxu0 %v3529
    %3778 = vmatpush.bf16.msra.mxu0 %v3525
    %3779 = vmatpush.bf16.msra.mxu0 %v3521
    %3780 = vmatpush.bf16.msra.mxu0 %v3517
    %3781 = vmatmul.bf16.gmra.mxu0 %v2989
    %v3782 = vpop.f32.mrf.mxu0
    %v3783 = vadd.f32 0.0, %v3782
    %v3784 = vpop.f32.mrf.mxu0
    %v3785 = vadd.f32 0.0, %v3784
    %3786 = vmatmul.bf16.gmra.mxu0 %v2993
    %v3787 = vpop.f32.mrf.mxu0
    %v3788 = vadd.f32 0.0, %v3787
    %v3789 = vpop.f32.mrf.mxu0
    %v3790 = vadd.f32 0.0, %v3789
    %3791 = vmatmul.bf16.gmra.mxu0 %v2997
    %v3792 = vpop.f32.mrf.mxu0
    %v3793 = vadd.f32 0.0, %v3792
    %v3794 = vpop.f32.mrf.mxu0
    %v3795 = vadd.f32 0.0, %v3794
    %3796 = vmatmul.bf16.gmra.mxu0 %v3001
    %v3797 = vpop.f32.mrf.mxu0
    %v3798 = vadd.f32 0.0, %v3797
    %v3799 = vpop.f32.mrf.mxu0
    %v3800 = vadd.f32 0.0, %v3799
    %3801 = vdwg.mxu0
    %3802 = vmatpush.bf16.msra.mxu0 %v3577
    %3803 = vmatpush.bf16.msra.mxu0 %v3573
    %3804 = vmatpush.bf16.msra.mxu0 %v3569
    %3805 = vmatpush.bf16.msra.mxu0 %v3565
    %3806 = vmatpush.bf16.msra.mxu0 %v3561
    %3807 = vmatpush.bf16.msra.mxu0 %v3557
    %3808 = vmatpush.bf16.msra.mxu0 %v3553
    %3809 = vmatpush.bf16.msra.mxu0 %v3549
    %3810 = vmatmul.bf16.gmra.mxu0 %v2990
    %v3811 = vpop.f32.mrf.mxu0
    %v3812 = vadd.f32 %v3783, %v3811
    %v3813 = vpop.f32.mrf.mxu0
    %v3814 = vadd.f32 %v3785, %v3813
    %3815 = vmatmul.bf16.gmra.mxu0 %v2994
    %v3816 = vpop.f32.mrf.mxu0
    %v3817 = vadd.f32 %v3788, %v3816
    %v3818 = vpop.f32.mrf.mxu0
    %v3819 = vadd.f32 %v3790, %v3818
    %3820 = vmatmul.bf16.gmra.mxu0 %v2998
    %v3821 = vpop.f32.mrf.mxu0
    %v3822 = vadd.f32 %v3793, %v3821
    %v3823 = vpop.f32.mrf.mxu0
    %v3824 = vadd.f32 %v3795, %v3823
    %3825 = vmatmul.bf16.gmra.mxu0 %v3002
    %v3826 = vpop.f32.mrf.mxu0
    %v3827 = vadd.f32 %v3798, %v3826
    %v3828 = vpop.f32.mrf.mxu0
    %v3829 = vadd.f32 %v3800, %v3828
    %3830 = vdwg.mxu0
    %3831 = vmatpush.bf16.msra.mxu0 %v3609
    %3832 = vmatpush.bf16.msra.mxu0 %v3605
    %3833 = vmatpush.bf16.msra.mxu0 %v3601
    %3834 = vmatpush.bf16.msra.mxu0 %v3597
    %3835 = vmatpush.bf16.msra.mxu0 %v3593
    %3836 = vmatpush.bf16.msra.mxu0 %v3589
    %3837 = vmatpush.bf16.msra.mxu0 %v3585
    %3838 = vmatpush.bf16.msra.mxu0 %v3581
    %3839 = vmatmul.bf16.gmra.mxu0 %v2991
    %v3840 = vpop.f32.mrf.mxu0
    %v3841 = vadd.f32 %v3812, %v3840
    %v3842 = vpop.f32.mrf.mxu0
    %v3843 = vadd.f32 %v3814, %v3842
    %3844 = vmatmul.bf16.gmra.mxu0 %v2995
    %v3845 = vpop.f32.mrf.mxu0
    %v3846 = vadd.f32 %v3817, %v3845
    %v3847 = vpop.f32.mrf.mxu0
    %v3848 = vadd.f32 %v3819, %v3847
    %3849 = vmatmul.bf16.gmra.mxu0 %v2999
    %v3850 = vpop.f32.mrf.mxu0
    %v3851 = vadd.f32 %v3822, %v3850
    %v3852 = vpop.f32.mrf.mxu0
    %v3853 = vadd.f32 %v3824, %v3852
    %3854 = vmatmul.bf16.gmra.mxu0 %v3003
    %v3855 = vpop.f32.mrf.mxu0
    %v3856 = vadd.f32 %v3827, %v3855
    %v3857 = vpop.f32.mrf.mxu0
    %v3858 = vadd.f32 %v3829, %v3857
    %3859 = vdwg.mxu0
    %3860 = vmatpush.bf16.msra.mxu0 %v3641
    %3861 = vmatpush.bf16.msra.mxu0 %v3637
    %3862 = vmatpush.bf16.msra.mxu0 %v3633
    %3863 = vmatpush.bf16.msra.mxu0 %v3629
    %3864 = vmatpush.bf16.msra.mxu0 %v3625
    %3865 = vmatpush.bf16.msra.mxu0 %v3621
    %3866 = vmatpush.bf16.msra.mxu0 %v3617
    %3867 = vmatpush.bf16.msra.mxu0 %v3613
    %3868 = vmatmul.bf16.gmra.mxu0 %v2992
    %v3869 = vpop.f32.mrf.mxu0
    %v3870 = vadd.f32 %v3841, %v3869
    %v3871 = vpop.f32.mrf.mxu0
    %v3872 = vadd.f32 %v3843, %v3871
    %3873 = vmatmul.bf16.gmra.mxu0 %v2996
    %v3874 = vpop.f32.mrf.mxu0
    %v3875 = vadd.f32 %v3846, %v3874
    %v3876 = vpop.f32.mrf.mxu0
    %v3877 = vadd.f32 %v3848, %v3876
    %3878 = vmatmul.bf16.gmra.mxu0 %v3000
    %v3879 = vpop.f32.mrf.mxu0
    %v3880 = vadd.f32 %v3851, %v3879
    %v3881 = vpop.f32.mrf.mxu0
    %v3882 = vadd.f32 %v3853, %v3881
    %3883 = vmatmul.bf16.gmra.mxu0 %v3004
    %v3884 = vpop.f32.mrf.mxu0
    %v3885 = vadd.f32 %v3856, %v3884
    %v3886 = vpop.f32.mrf.mxu0
    %v3887 = vadd.f32 %v3858, %v3886
    %3888 = vdwg.mxu0
    %3889 = vmatpush.bf16.msra.mxu0 %v3546
    %3890 = vmatpush.bf16.msra.mxu0 %v3542
    %3891 = vmatpush.bf16.msra.mxu0 %v3538
    %3892 = vmatpush.bf16.msra.mxu0 %v3534
    %3893 = vmatpush.bf16.msra.mxu0 %v3530
    %3894 = vmatpush.bf16.msra.mxu0 %v3526
    %3895 = vmatpush.bf16.msra.mxu0 %v3522
    %3896 = vmatpush.bf16.msra.mxu0 %v3518
    %3897 = vmatmul.bf16.gmra.mxu0 %v2989
    %v3898 = vpop.f32.mrf.mxu0
    %v3899 = vadd.f32 0.0, %v3898
    %v3900 = vpop.f32.mrf.mxu0
    %v3901 = vadd.f32 0.0, %v3900
    %3902 = vmatmul.bf16.gmra.mxu0 %v2993
    %v3903 = vpop.f32.mrf.mxu0
    %v3904 = vadd.f32 0.0, %v3903
    %v3905 = vpop.f32.mrf.mxu0
    %v3906 = vadd.f32 0.0, %v3905
    %3907 = vmatmul.bf16.gmra.mxu0 %v2997
    %v3908 = vpop.f32.mrf.mxu0
    %v3909 = vadd.f32 0.0, %v3908
    %v3910 = vpop.f32.mrf.mxu0
    %v3911 = vadd.f32 0.0, %v3910
    %3912 = vmatmul.bf16.gmra.mxu0 %v3001
    %v3913 = vpop.f32.mrf.mxu0
    %v3914 = vadd.f32 0.0, %v3913
    %v3915 = vpop.f32.mrf.mxu0
    %v3916 = vadd.f32 0.0, %v3915
    %3917 = vdwg.mxu0
    %3918 = vmatpush.bf16.msra.mxu0 %v3578
    %3919 = vmatpush.bf16.msra.mxu0 %v3574
    %3920 = vmatpush.bf16.msra.mxu0 %v3570
    %3921 = vmatpush.bf16.msra.mxu0 %v3566
    %3922 = vmatpush.bf16.msra.mxu0 %v3562
    %3923 = vmatpush.bf16.msra.mxu0 %v3558
    %3924 = vmatpush.bf16.msra.mxu0 %v3554
    %3925 = vmatpush.bf16.msra.mxu0 %v3550
    %3926 = vmatmul.bf16.gmra.mxu0 %v2990
    %v3927 = vpop.f32.mrf.mxu0
    %v3928 = vadd.f32 %v3899, %v3927
    %v3929 = vpop.f32.mrf.mxu0
    %v3930 = vadd.f32 %v3901, %v3929
    %3931 = vmatmul.bf16.gmra.mxu0 %v2994
    %v3932 = vpop.f32.mrf.mxu0
    %v3933 = vadd.f32 %v3904, %v3932
    %v3934 = vpop.f32.mrf.mxu0
    %v3935 = vadd.f32 %v3906, %v3934
    %3936 = vmatmul.bf16.gmra.mxu0 %v2998
    %v3937 = vpop.f32.mrf.mxu0
    %v3938 = vadd.f32 %v3909, %v3937
    %v3939 = vpop.f32.mrf.mxu0
    %v3940 = vadd.f32 %v3911, %v3939
    %3941 = vmatmul.bf16.gmra.mxu0 %v3002
    %v3942 = vpop.f32.mrf.mxu0
    %v3943 = vadd.f32 %v3914, %v3942
    %v3944 = vpop.f32.mrf.mxu0
    %v3945 = vadd.f32 %v3916, %v3944
    %3946 = vdwg.mxu0
    %3947 = vmatpush.bf16.msra.mxu0 %v3610
    %3948 = vmatpush.bf16.msra.mxu0 %v3606
    %3949 = vmatpush.bf16.msra.mxu0 %v3602
    %3950 = vmatpush.bf16.msra.mxu0 %v3598
    %3951 = vmatpush.bf16.msra.mxu0 %v3594
    %3952 = vmatpush.bf16.msra.mxu0 %v3590
    %3953 = vmatpush.bf16.msra.mxu0 %v3586
    %3954 = vmatpush.bf16.msra.mxu0 %v3582
    %3955 = vmatmul.bf16.gmra.mxu0 %v2991
    %v3956 = vpop.f32.mrf.mxu0
    %v3957 = vadd.f32 %v3928, %v3956
    %v3958 = vpop.f32.mrf.mxu0
    %v3959 = vadd.f32 %v3930, %v3958
    %3960 = vmatmul.bf16.gmra.mxu0 %v2995
    %v3961 = vpop.f32.mrf.mxu0
    %v3962 = vadd.f32 %v3933, %v3961
    %v3963 = vpop.f32.mrf.mxu0
    %v3964 = vadd.f32 %v3935, %v3963
    %3965 = vmatmul.bf16.gmra.mxu0 %v2999
    %v3966 = vpop.f32.mrf.mxu0
    %v3967 = vadd.f32 %v3938, %v3966
    %v3968 = vpop.f32.mrf.mxu0
    %v3969 = vadd.f32 %v3940, %v3968
    %3970 = vmatmul.bf16.gmra.mxu0 %v3003
    %v3971 = vpop.f32.mrf.mxu0
    %v3972 = vadd.f32 %v3943, %v3971
    %v3973 = vpop.f32.mrf.mxu0
    %v3974 = vadd.f32 %v3945, %v3973
    %3975 = vdwg.mxu0
    %3976 = vmatpush.bf16.msra.mxu0 %v3642
    %3977 = vmatpush.bf16.msra.mxu0 %v3638
    %3978 = vmatpush.bf16.msra.mxu0 %v3634
    %3979 = vmatpush.bf16.msra.mxu0 %v3630
    %3980 = vmatpush.bf16.msra.mxu0 %v3626
    %3981 = vmatpush.bf16.msra.mxu0 %v3622
    %3982 = vmatpush.bf16.msra.mxu0 %v3618
    %3983 = vmatpush.bf16.msra.mxu0 %v3614
    %3984 = vmatmul.bf16.gmra.mxu0 %v2992
    %v3985 = vpop.f32.mrf.mxu0
    %v3986 = vadd.f32 %v3957, %v3985
    %v3987 = vpop.f32.mrf.mxu0
    %v3988 = vadd.f32 %v3959, %v3987
    %3989 = vmatmul.bf16.gmra.mxu0 %v2996
    %v3990 = vpop.f32.mrf.mxu0
    %v3991 = vadd.f32 %v3962, %v3990
    %v3992 = vpop.f32.mrf.mxu0
    %v3993 = vadd.f32 %v3964, %v3992
    %3994 = vmatmul.bf16.gmra.mxu0 %v3000
    %v3995 = vpop.f32.mrf.mxu0
    %v3996 = vadd.f32 %v3967, %v3995
    %v3997 = vpop.f32.mrf.mxu0
    %v3998 = vadd.f32 %v3969, %v3997
    %3999 = vmatmul.bf16.gmra.mxu0 %v3004
    %v4000 = vpop.f32.mrf.mxu0
    %v4001 = vadd.f32 %v3972, %v4000
    %v4002 = vpop.f32.mrf.mxu0
    %v4003 = vadd.f32 %v3974, %v4002
    %4004 = vdwg.mxu0
    %4005 = vmatpush.bf16.msra.mxu0 %v3547
    %4006 = vmatpush.bf16.msra.mxu0 %v3543
    %4007 = vmatpush.bf16.msra.mxu0 %v3539
    %4008 = vmatpush.bf16.msra.mxu0 %v3535
    %4009 = vmatpush.bf16.msra.mxu0 %v3531
    %4010 = vmatpush.bf16.msra.mxu0 %v3527
    %4011 = vmatpush.bf16.msra.mxu0 %v3523
    %4012 = vmatpush.bf16.msra.mxu0 %v3519
    %4013 = vmatmul.bf16.gmra.mxu0 %v2989
    %v4014 = vpop.f32.mrf.mxu0
    %v4015 = vadd.f32 0.0, %v4014
    %v4016 = vpop.f32.mrf.mxu0
    %v4017 = vadd.f32 0.0, %v4016
    %4018 = vmatmul.bf16.gmra.mxu0 %v2993
    %v4019 = vpop.f32.mrf.mxu0
    %v4020 = vadd.f32 0.0, %v4019
    %v4021 = vpop.f32.mrf.mxu0
    %v4022 = vadd.f32 0.0, %v4021
    %4023 = vmatmul.bf16.gmra.mxu0 %v2997
    %v4024 = vpop.f32.mrf.mxu0
    %v4025 = vadd.f32 0.0, %v4024
    %v4026 = vpop.f32.mrf.mxu0
    %v4027 = vadd.f32 0.0, %v4026
    %4028 = vmatmul.bf16.gmra.mxu0 %v3001
    %v4029 = vpop.f32.mrf.mxu0
    %v4030 = vadd.f32 0.0, %v4029
    %v4031 = vpop.f32.mrf.mxu0
    %v4032 = vadd.f32 0.0, %v4031
    %4033 = vdwg.mxu0
    %4034 = vmatpush.bf16.msra.mxu0 %v3579
    %4035 = vmatpush.bf16.msra.mxu0 %v3575
    %4036 = vmatpush.bf16.msra.mxu0 %v3571
    %4037 = vmatpush.bf16.msra.mxu0 %v3567
    %4038 = vmatpush.bf16.msra.mxu0 %v3563
    %4039 = vmatpush.bf16.msra.mxu0 %v3559
    %4040 = vmatpush.bf16.msra.mxu0 %v3555
    %4041 = vmatpush.bf16.msra.mxu0 %v3551
    %4042 = vmatmul.bf16.gmra.mxu0 %v2990
    %v4043 = vpop.f32.mrf.mxu0
    %v4044 = vadd.f32 %v4015, %v4043
    %v4045 = vpop.f32.mrf.mxu0
    %v4046 = vadd.f32 %v4017, %v4045
    %4047 = vmatmul.bf16.gmra.mxu0 %v2994
    %v4048 = vpop.f32.mrf.mxu0
    %v4049 = vadd.f32 %v4020, %v4048
    %v4050 = vpop.f32.mrf.mxu0
    %v4051 = vadd.f32 %v4022, %v4050
    %4052 = vmatmul.bf16.gmra.mxu0 %v2998
    %v4053 = vpop.f32.mrf.mxu0
    %v4054 = vadd.f32 %v4025, %v4053
    %v4055 = vpop.f32.mrf.mxu0
    %v4056 = vadd.f32 %v4027, %v4055
    %4057 = vmatmul.bf16.gmra.mxu0 %v3002
    %v4058 = vpop.f32.mrf.mxu0
    %v4059 = vadd.f32 %v4030, %v4058
    %v4060 = vpop.f32.mrf.mxu0
    %v4061 = vadd.f32 %v4032, %v4060
    %4062 = vdwg.mxu0
    %4063 = vmatpush.bf16.msra.mxu0 %v3611
    %4064 = vmatpush.bf16.msra.mxu0 %v3607
    %4065 = vmatpush.bf16.msra.mxu0 %v3603
    %4066 = vmatpush.bf16.msra.mxu0 %v3599
    %4067 = vmatpush.bf16.msra.mxu0 %v3595
    %4068 = vmatpush.bf16.msra.mxu0 %v3591
    %4069 = vmatpush.bf16.msra.mxu0 %v3587
    %4070 = vmatpush.bf16.msra.mxu0 %v3583
    %4071 = vmatmul.bf16.gmra.mxu0 %v2991
    %v4072 = vpop.f32.mrf.mxu0
    %v4073 = vadd.f32 %v4044, %v4072
    %v4074 = vpop.f32.mrf.mxu0
    %v4075 = vadd.f32 %v4046, %v4074
    %4076 = vmatmul.bf16.gmra.mxu0 %v2995
    %v4077 = vpop.f32.mrf.mxu0
    %v4078 = vadd.f32 %v4049, %v4077
    %v4079 = vpop.f32.mrf.mxu0
    %v4080 = vadd.f32 %v4051, %v4079
    %4081 = vmatmul.bf16.gmra.mxu0 %v2999
    %v4082 = vpop.f32.mrf.mxu0
    %v4083 = vadd.f32 %v4054, %v4082
    %v4084 = vpop.f32.mrf.mxu0
    %v4085 = vadd.f32 %v4056, %v4084
    %4086 = vmatmul.bf16.gmra.mxu0 %v3003
    %v4087 = vpop.f32.mrf.mxu0
    %v4088 = vadd.f32 %v4059, %v4087
    %v4089 = vpop.f32.mrf.mxu0
    %v4090 = vadd.f32 %v4061, %v4089
    %4091 = vdwg.mxu0
    %4092 = vmatpush.bf16.msra.mxu0 %v3643
    %4093 = vmatpush.bf16.msra.mxu0 %v3639
    %4094 = vmatpush.bf16.msra.mxu0 %v3635
    %4095 = vmatpush.bf16.msra.mxu0 %v3631
    %4096 = vmatpush.bf16.msra.mxu0 %v3627
    %4097 = vmatpush.bf16.msra.mxu0 %v3623
    %4098 = vmatpush.bf16.msra.mxu0 %v3619
    %4099 = vmatpush.bf16.msra.mxu0 %v3615
    %4100 = vmatmul.bf16.gmra.mxu0 %v2992
    %v4101 = vpop.f32.mrf.mxu0
    %v4102 = vadd.f32 %v4073, %v4101
    %v4103 = vpop.f32.mrf.mxu0
    %v4104 = vadd.f32 %v4075, %v4103
    %4105 = vmatmul.bf16.gmra.mxu0 %v2996
    %v4106 = vpop.f32.mrf.mxu0
    %v4107 = vadd.f32 %v4078, %v4106
    %v4108 = vpop.f32.mrf.mxu0
    %v4109 = vadd.f32 %v4080, %v4108
    %4110 = vmatmul.bf16.gmra.mxu0 %v3000
    %v4111 = vpop.f32.mrf.mxu0
    %v4112 = vadd.f32 %v4083, %v4111
    %v4113 = vpop.f32.mrf.mxu0
    %v4114 = vadd.f32 %v4085, %v4113
    %4115 = vmatmul.bf16.gmra.mxu0 %v3004
    %v4116 = vpop.f32.mrf.mxu0
    %v4117 = vadd.f32 %v4088, %v4116
    %v4118 = vpop.f32.mrf.mxu0
    %v4119 = vadd.f32 %v4090, %v4118
    %4120 = vdwg.mxu0
    %4121 = vmatpush.bf16.msra.mxu0 %v3548
    %4122 = vmatpush.bf16.msra.mxu0 %v3544
    %4123 = vmatpush.bf16.msra.mxu0 %v3540
    %4124 = vmatpush.bf16.msra.mxu0 %v3536
    %4125 = vmatpush.bf16.msra.mxu0 %v3532
    %4126 = vmatpush.bf16.msra.mxu0 %v3528
    %4127 = vmatpush.bf16.msra.mxu0 %v3524
    %4128 = vmatpush.bf16.msra.mxu0 %v3520
    %4129 = vmatmul.bf16.gmra.mxu0 %v2989
    %v4130 = vpop.f32.mrf.mxu0
    %v4131 = vadd.f32 0.0, %v4130
    %v4132 = vpop.f32.mrf.mxu0
    %v4133 = vadd.f32 0.0, %v4132
    %4134 = vmatmul.bf16.gmra.mxu0 %v2993
    %v4135 = vpop.f32.mrf.mxu0
    %v4136 = vadd.f32 0.0, %v4135
    %v4137 = vpop.f32.mrf.mxu0
    %v4138 = vadd.f32 0.0, %v4137
    %4139 = vmatmul.bf16.gmra.mxu0 %v2997
    %v4140 = vpop.f32.mrf.mxu0
    %v4141 = vadd.f32 0.0, %v4140
    %v4142 = vpop.f32.mrf.mxu0
    %v4143 = vadd.f32 0.0, %v4142
    %4144 = vmatmul.bf16.gmra.mxu0 %v3001
    %v4145 = vpop.f32.mrf.mxu0
    %v4146 = vadd.f32 0.0, %v4145
    %v4147 = vpop.f32.mrf.mxu0
    %v4148 = vadd.f32 0.0, %v4147
    %4149 = vdwg.mxu0
    %4150 = vmatpush.bf16.msra.mxu0 %v3580
    %4151 = vmatpush.bf16.msra.mxu0 %v3576
    %4152 = vmatpush.bf16.msra.mxu0 %v3572
    %4153 = vmatpush.bf16.msra.mxu0 %v3568
    %4154 = vmatpush.bf16.msra.mxu0 %v3564
    %4155 = vmatpush.bf16.msra.mxu0 %v3560
    %4156 = vmatpush.bf16.msra.mxu0 %v3556
    %4157 = vmatpush.bf16.msra.mxu0 %v3552
    %4158 = vmatmul.bf16.gmra.mxu0 %v2990
    %v4159 = vpop.f32.mrf.mxu0
    %v4160 = vadd.f32 %v4131, %v4159
    %v4161 = vpop.f32.mrf.mxu0
    %v4162 = vadd.f32 %v4133, %v4161
    %4163 = vmatmul.bf16.gmra.mxu0 %v2994
    %v4164 = vpop.f32.mrf.mxu0
    %v4165 = vadd.f32 %v4136, %v4164
    %v4166 = vpop.f32.mrf.mxu0
    %v4167 = vadd.f32 %v4138, %v4166
    %4168 = vmatmul.bf16.gmra.mxu0 %v2998
    %v4169 = vpop.f32.mrf.mxu0
    %v4170 = vadd.f32 %v4141, %v4169
    %v4171 = vpop.f32.mrf.mxu0
    %v4172 = vadd.f32 %v4143, %v4171
    %4173 = vmatmul.bf16.gmra.mxu0 %v3002
    %v4174 = vpop.f32.mrf.mxu0
    %v4175 = vadd.f32 %v4146, %v4174
    %v4176 = vpop.f32.mrf.mxu0
    %v4177 = vadd.f32 %v4148, %v4176
    %4178 = vdwg.mxu0
    %4179 = vmatpush.bf16.msra.mxu0 %v3612
    %4180 = vmatpush.bf16.msra.mxu0 %v3608
    %4181 = vmatpush.bf16.msra.mxu0 %v3604
    %4182 = vmatpush.bf16.msra.mxu0 %v3600
    %4183 = vmatpush.bf16.msra.mxu0 %v3596
    %4184 = vmatpush.bf16.msra.mxu0 %v3592
    %4185 = vmatpush.bf16.msra.mxu0 %v3588
    %4186 = vmatpush.bf16.msra.mxu0 %v3584
    %4187 = vmatmul.bf16.gmra.mxu0 %v2991
    %v4188 = vpop.f32.mrf.mxu0
    %v4189 = vadd.f32 %v4160, %v4188
    %v4190 = vpop.f32.mrf.mxu0
    %v4191 = vadd.f32 %v4162, %v4190
    %4192 = vmatmul.bf16.gmra.mxu0 %v2995
    %v4193 = vpop.f32.mrf.mxu0
    %v4194 = vadd.f32 %v4165, %v4193
    %v4195 = vpop.f32.mrf.mxu0
    %v4196 = vadd.f32 %v4167, %v4195
    %4197 = vmatmul.bf16.gmra.mxu0 %v2999
    %v4198 = vpop.f32.mrf.mxu0
    %v4199 = vadd.f32 %v4170, %v4198
    %v4200 = vpop.f32.mrf.mxu0
    %v4201 = vadd.f32 %v4172, %v4200
    %4202 = vmatmul.bf16.gmra.mxu0 %v3003
    %v4203 = vpop.f32.mrf.mxu0
    %v4204 = vadd.f32 %v4175, %v4203
    %v4205 = vpop.f32.mrf.mxu0
    %v4206 = vadd.f32 %v4177, %v4205
    %4207 = vdwg.mxu0
    %4208 = vmatpush.bf16.msra.mxu0 %v3644
    %4209 = vmatpush.bf16.msra.mxu0 %v3640
    %4210 = vmatpush.bf16.msra.mxu0 %v3636
    %4211 = vmatpush.bf16.msra.mxu0 %v3632
    %4212 = vmatpush.bf16.msra.mxu0 %v3628
    %4213 = vmatpush.bf16.msra.mxu0 %v3624
    %4214 = vmatpush.bf16.msra.mxu0 %v3620
    %4215 = vmatpush.bf16.msra.mxu0 %v3616
    %4216 = vmatmul.bf16.gmra.mxu0 %v2992
    %v4217 = vpop.f32.mrf.mxu0
    %v4218 = vadd.f32 %v4189, %v4217
    %v4219 = vpop.f32.mrf.mxu0
    %v4220 = vadd.f32 %v4191, %v4219
    %4221 = vmatmul.bf16.gmra.mxu0 %v2996
    %v4222 = vpop.f32.mrf.mxu0
    %v4223 = vadd.f32 %v4194, %v4222
    %v4224 = vpop.f32.mrf.mxu0
    %v4225 = vadd.f32 %v4196, %v4224
    %4226 = vmatmul.bf16.gmra.mxu0 %v3000
    %v4227 = vpop.f32.mrf.mxu0
    %v4228 = vadd.f32 %v4199, %v4227
    %v4229 = vpop.f32.mrf.mxu0
    %v4230 = vadd.f32 %v4201, %v4229
    %4231 = vmatmul.bf16.gmra.mxu0 %v3004
    %v4232 = vpop.f32.mrf.mxu0
    %v4233 = vadd.f32 %v4204, %v4232
    %v4234 = vpop.f32.mrf.mxu0
    %v4235 = vadd.f32 %v4206, %v4234
    %4236 = vdwg.mxu0
    %v4237 = vmax.f32 %v3870, 0.0
    %v4238 = vmax.f32 %v3986, 0.0
    %v4239 = vmax.f32 %v4102, 0.0
    %v4240 = vmax.f32 %v4218, 0.0
    %v4241 = vmax.f32 %v3872, 0.0
    %v4242 = vmax.f32 %v3988, 0.0
    %v4243 = vmax.f32 %v4104, 0.0
    %v4244 = vmax.f32 %v4220, 0.0
    %v4245 = vmax.f32 %v3875, 0.0
    %v4246 = vmax.f32 %v3991, 0.0
    %v4247 = vmax.f32 %v4107, 0.0
    %v4248 = vmax.f32 %v4223, 0.0
    %v4249 = vmax.f32 %v3877, 0.0
    %v4250 = vmax.f32 %v3993, 0.0
    %v4251 = vmax.f32 %v4109, 0.0
    %v4252 = vmax.f32 %v4225, 0.0
    %v4253 = vmax.f32 %v3880, 0.0
    %v4254 = vmax.f32 %v3996, 0.0
    %v4255 = vmax.f32 %v4112, 0.0
    %v4256 = vmax.f32 %v4228, 0.0
    %v4257 = vmax.f32 %v3882, 0.0
    %v4258 = vmax.f32 %v3998, 0.0
    %v4259 = vmax.f32 %v4114, 0.0
    %v4260 = vmax.f32 %v4230, 0.0
    %v4261 = vmax.f32 %v3885, 0.0
    %v4262 = vmax.f32 %v4001, 0.0
    %v4263 = vmax.f32 %v4117, 0.0
    %v4264 = vmax.f32 %v4233, 0.0
    %v4265 = vmax.f32 %v3887, 0.0
    %v4266 = vmax.f32 %v4003, 0.0
    %v4267 = vmax.f32 %v4119, 0.0
    %v4268 = vmax.f32 %v4235, 0.0
    %v4269 = vpack.c.bf16 %v4241, %v4237
    %v4270 = vpack.c.bf16 %v4242, %v4238
    %v4271 = vpack.c.bf16 %v4243, %v4239
    %v4272 = vpack.c.bf16 %v4244, %v4240
    %v4273 = vpack.c.bf16 %v4249, %v4245
    %v4274 = vpack.c.bf16 %v4250, %v4246
    %v4275 = vpack.c.bf16 %v4251, %v4247
    %v4276 = vpack.c.bf16 %v4252, %v4248
    %v4277 = vpack.c.bf16 %v4257, %v4253
    %v4278 = vpack.c.bf16 %v4258, %v4254
    %v4279 = vpack.c.bf16 %v4259, %v4255
    %v4280 = vpack.c.bf16 %v4260, %v4256
    %v4281 = vpack.c.bf16 %v4265, %v4261
    %v4282 = vpack.c.bf16 %v4266, %v4262
    %v4283 = vpack.c.bf16 %v4267, %v4263
    %v4284 = vpack.c.bf16 %v4268, %v4264
    %v4285 = vld [vmem:[#allocation16] sm:$0xff]
    %v4286 = vld [vmem:[#allocation16 + $0x8] sm:$0xff]
    %v4287 = vld [vmem:[#allocation16 + $0x10] sm:$0xff]
    %v4288 = vld [vmem:[#allocation16 + $0x18] sm:$0xff]
    %v4289 = vld [vmem:[#allocation16 + $0x20] sm:$0xff]
    %v4290 = vld [vmem:[#allocation16 + $0x28] sm:$0xff]
    %v4291 = vld [vmem:[#allocation16 + $0x30] sm:$0xff]
    %v4292 = vld [vmem:[#allocation16 + $0x38] sm:$0xff]
    %v4293 = vld [vmem:[#allocation16 + $0x40] sm:$0xff]
    %v4294 = vld [vmem:[#allocation16 + $0x48] sm:$0xff]
    %v4295 = vld [vmem:[#allocation16 + $0x50] sm:$0xff]
    %v4296 = vld [vmem:[#allocation16 + $0x58] sm:$0xff]
    %v4297 = vld [vmem:[#allocation16 + $0x60] sm:$0xff]
    %v4298 = vld [vmem:[#allocation16 + $0x68] sm:$0xff]
    %v4299 = vld [vmem:[#allocation16 + $0x70] sm:$0xff]
    %v4300 = vld [vmem:[#allocation16 + $0x78] sm:$0xff]
    %v4301 = vld [vmem:[#allocation16 + $0x80] sm:$0xff]
    %v4302 = vld [vmem:[#allocation16 + $0x88] sm:$0xff]
    %v4303 = vld [vmem:[#allocation16 + $0x90] sm:$0xff]
    %v4304 = vld [vmem:[#allocation16 + $0x98] sm:$0xff]
    %v4305 = vld [vmem:[#allocation16 + $0xa0] sm:$0xff]
    %v4306 = vld [vmem:[#allocation16 + $0xa8] sm:$0xff]
    %v4307 = vld [vmem:[#allocation16 + $0xb0] sm:$0xff]
    %v4308 = vld [vmem:[#allocation16 + $0xb8] sm:$0xff]
    %v4309 = vld [vmem:[#allocation16 + $0xc0] sm:$0xff]
    %v4310 = vld [vmem:[#allocation16 + $0xc8] sm:$0xff]
    %v4311 = vld [vmem:[#allocation16 + $0xd0] sm:$0xff]
    %v4312 = vld [vmem:[#allocation16 + $0xd8] sm:$0xff]
    %v4313 = vld [vmem:[#allocation16 + $0xe0] sm:$0xff]
    %v4314 = vld [vmem:[#allocation16 + $0xe8] sm:$0xff]
    %v4315 = vld [vmem:[#allocation16 + $0xf0] sm:$0xff]
    %v4316 = vld [vmem:[#allocation16 + $0xf8] sm:$0xff]
    %v4317 = vld [vmem:[#allocation16 + $0x100] sm:$0xff]
    %v4318 = vld [vmem:[#allocation16 + $0x108] sm:$0xff]
    %v4319 = vld [vmem:[#allocation16 + $0x110] sm:$0xff]
    %v4320 = vld [vmem:[#allocation16 + $0x118] sm:$0xff]
    %v4321 = vld [vmem:[#allocation16 + $0x120] sm:$0xff]
    %v4322 = vld [vmem:[#allocation16 + $0x128] sm:$0xff]
    %v4323 = vld [vmem:[#allocation16 + $0x130] sm:$0xff]
    %v4324 = vld [vmem:[#allocation16 + $0x138] sm:$0xff]
    %v4325 = vld [vmem:[#allocation16 + $0x140] sm:$0xff]
    %v4326 = vld [vmem:[#allocation16 + $0x148] sm:$0xff]
    %v4327 = vld [vmem:[#allocation16 + $0x150] sm:$0xff]
    %v4328 = vld [vmem:[#allocation16 + $0x158] sm:$0xff]
    %v4329 = vld [vmem:[#allocation16 + $0x160] sm:$0xff]
    %v4330 = vld [vmem:[#allocation16 + $0x168] sm:$0xff]
    %v4331 = vld [vmem:[#allocation16 + $0x170] sm:$0xff]
    %v4332 = vld [vmem:[#allocation16 + $0x178] sm:$0xff]
    %v4333 = vld [vmem:[#allocation16 + $0x180] sm:$0xff]
    %v4334 = vld [vmem:[#allocation16 + $0x188] sm:$0xff]
    %v4335 = vld [vmem:[#allocation16 + $0x190] sm:$0xff]
    %v4336 = vld [vmem:[#allocation16 + $0x198] sm:$0xff]
    %v4337 = vld [vmem:[#allocation16 + $0x1a0] sm:$0xff]
    %v4338 = vld [vmem:[#allocation16 + $0x1a8] sm:$0xff]
    %v4339 = vld [vmem:[#allocation16 + $0x1b0] sm:$0xff]
    %v4340 = vld [vmem:[#allocation16 + $0x1b8] sm:$0xff]
    %v4341 = vld [vmem:[#allocation16 + $0x1c0] sm:$0xff]
    %v4342 = vld [vmem:[#allocation16 + $0x1c8] sm:$0xff]
    %v4343 = vld [vmem:[#allocation16 + $0x1d0] sm:$0xff]
    %v4344 = vld [vmem:[#allocation16 + $0x1d8] sm:$0xff]
    %v4345 = vld [vmem:[#allocation16 + $0x1e0] sm:$0xff]
    %v4346 = vld [vmem:[#allocation16 + $0x1e8] sm:$0xff]
    %v4347 = vld [vmem:[#allocation16 + $0x1f0] sm:$0xff]
    %v4348 = vld [vmem:[#allocation16 + $0x1f8] sm:$0xff]
    %v4413 = vunpack.c.l.b16 %v4285
    %v4414 = vunpack.c.h.b16 %v4285
    %v4415 = vunpack.c.l.b16 %v4286
    %v4416 = vunpack.c.h.b16 %v4286
    %v4417 = vunpack.c.l.b16 %v4287
    %v4418 = vunpack.c.h.b16 %v4287
    %v4419 = vunpack.c.l.b16 %v4288
    %v4420 = vunpack.c.h.b16 %v4288
    %v4421 = vunpack.c.l.b16 %v4289
    %v4422 = vunpack.c.h.b16 %v4289
    %v4423 = vunpack.c.l.b16 %v4290
    %v4424 = vunpack.c.h.b16 %v4290
    %v4425 = vunpack.c.l.b16 %v4291
    %v4426 = vunpack.c.h.b16 %v4291
    %v4427 = vunpack.c.l.b16 %v4292
    %v4428 = vunpack.c.h.b16 %v4292
    %v4429 = vunpack.c.l.b16 %v4293
    %v4430 = vunpack.c.h.b16 %v4293
    %v4431 = vunpack.c.l.b16 %v4294
    %v4432 = vunpack.c.h.b16 %v4294
    %v4433 = vunpack.c.l.b16 %v4295
    %v4434 = vunpack.c.h.b16 %v4295
    %v4435 = vunpack.c.l.b16 %v4296
    %v4436 = vunpack.c.h.b16 %v4296
    %v4437 = vunpack.c.l.b16 %v4297
    %v4438 = vunpack.c.h.b16 %v4297
    %v4439 = vunpack.c.l.b16 %v4298
    %v4440 = vunpack.c.h.b16 %v4298
    %v4441 = vunpack.c.l.b16 %v4299
    %v4442 = vunpack.c.h.b16 %v4299
    %v4443 = vunpack.c.l.b16 %v4300
    %v4444 = vunpack.c.h.b16 %v4300
    %v4445 = vunpack.c.l.b16 %v4301
    %v4446 = vunpack.c.h.b16 %v4301
    %v4447 = vunpack.c.l.b16 %v4302
    %v4448 = vunpack.c.h.b16 %v4302
    %v4449 = vunpack.c.l.b16 %v4303
    %v4450 = vunpack.c.h.b16 %v4303
    %v4451 = vunpack.c.l.b16 %v4304
    %v4452 = vunpack.c.h.b16 %v4304
    %v4453 = vunpack.c.l.b16 %v4305
    %v4454 = vunpack.c.h.b16 %v4305
    %v4455 = vunpack.c.l.b16 %v4306
    %v4456 = vunpack.c.h.b16 %v4306
    %v4457 = vunpack.c.l.b16 %v4307
    %v4458 = vunpack.c.h.b16 %v4307
    %v4459 = vunpack.c.l.b16 %v4308
    %v4460 = vunpack.c.h.b16 %v4308
    %v4461 = vunpack.c.l.b16 %v4309
    %v4462 = vunpack.c.h.b16 %v4309
    %v4463 = vunpack.c.l.b16 %v4310
    %v4464 = vunpack.c.h.b16 %v4310
    %v4465 = vunpack.c.l.b16 %v4311
    %v4466 = vunpack.c.h.b16 %v4311
    %v4467 = vunpack.c.l.b16 %v4312
    %v4468 = vunpack.c.h.b16 %v4312
    %v4469 = vunpack.c.l.b16 %v4313
    %v4470 = vunpack.c.h.b16 %v4313
    %v4471 = vunpack.c.l.b16 %v4314
    %v4472 = vunpack.c.h.b16 %v4314
    %v4473 = vunpack.c.l.b16 %v4315
    %v4474 = vunpack.c.h.b16 %v4315
    %v4475 = vunpack.c.l.b16 %v4316
    %v4476 = vunpack.c.h.b16 %v4316
    %v4477 = vunpack.c.l.b16 %v4317
    %v4478 = vunpack.c.h.b16 %v4317
    %v4479 = vunpack.c.l.b16 %v4318
    %v4480 = vunpack.c.h.b16 %v4318
    %v4481 = vunpack.c.l.b16 %v4319
    %v4482 = vunpack.c.h.b16 %v4319
    %v4483 = vunpack.c.l.b16 %v4320
    %v4484 = vunpack.c.h.b16 %v4320
    %v4485 = vunpack.c.l.b16 %v4321
    %v4486 = vunpack.c.h.b16 %v4321
    %v4487 = vunpack.c.l.b16 %v4322
    %v4488 = vunpack.c.h.b16 %v4322
    %v4489 = vunpack.c.l.b16 %v4323
    %v4490 = vunpack.c.h.b16 %v4323
    %v4491 = vunpack.c.l.b16 %v4324
    %v4492 = vunpack.c.h.b16 %v4324
    %v4493 = vunpack.c.l.b16 %v4325
    %v4494 = vunpack.c.h.b16 %v4325
    %v4495 = vunpack.c.l.b16 %v4326
    %v4496 = vunpack.c.h.b16 %v4326
    %v4497 = vunpack.c.l.b16 %v4327
    %v4498 = vunpack.c.h.b16 %v4327
    %v4499 = vunpack.c.l.b16 %v4328
    %v4500 = vunpack.c.h.b16 %v4328
    %v4501 = vunpack.c.l.b16 %v4329
    %v4502 = vunpack.c.h.b16 %v4329
    %v4503 = vunpack.c.l.b16 %v4330
    %v4504 = vunpack.c.h.b16 %v4330
    %v4505 = vunpack.c.l.b16 %v4331
    %v4506 = vunpack.c.h.b16 %v4331
    %v4507 = vunpack.c.l.b16 %v4332
    %v4508 = vunpack.c.h.b16 %v4332
    %v4509 = vunpack.c.l.b16 %v4333
    %v4510 = vunpack.c.h.b16 %v4333
    %v4511 = vunpack.c.l.b16 %v4334
    %v4512 = vunpack.c.h.b16 %v4334
    %v4513 = vunpack.c.l.b16 %v4335
    %v4514 = vunpack.c.h.b16 %v4335
    %v4515 = vunpack.c.l.b16 %v4336
    %v4516 = vunpack.c.h.b16 %v4336
    %v4517 = vunpack.c.l.b16 %v4337
    %v4518 = vunpack.c.h.b16 %v4337
    %v4519 = vunpack.c.l.b16 %v4338
    %v4520 = vunpack.c.h.b16 %v4338
    %v4521 = vunpack.c.l.b16 %v4339
    %v4522 = vunpack.c.h.b16 %v4339
    %v4523 = vunpack.c.l.b16 %v4340
    %v4524 = vunpack.c.h.b16 %v4340
    %v4525 = vunpack.c.l.b16 %v4341
    %v4526 = vunpack.c.h.b16 %v4341
    %v4527 = vunpack.c.l.b16 %v4342
    %v4528 = vunpack.c.h.b16 %v4342
    %v4529 = vunpack.c.l.b16 %v4343
    %v4530 = vunpack.c.h.b16 %v4343
    %v4531 = vunpack.c.l.b16 %v4344
    %v4532 = vunpack.c.h.b16 %v4344
    %v4533 = vunpack.c.l.b16 %v4345
    %v4534 = vunpack.c.h.b16 %v4345
    %v4535 = vunpack.c.l.b16 %v4346
    %v4536 = vunpack.c.h.b16 %v4346
    %v4537 = vunpack.c.l.b16 %v4347
    %v4538 = vunpack.c.h.b16 %v4347
    %v4539 = vunpack.c.l.b16 %v4348
    %v4540 = vunpack.c.h.b16 %v4348
    %v4541 = vpack.c.b16 %v4415, %v4413
    %v4542 = vpack.c.b16 %v4416, %v4414
    %v4543 = vpack.c.b16 %v4419, %v4417
    %v4544 = vpack.c.b16 %v4420, %v4418
    %v4545 = vpack.c.b16 %v4423, %v4421
    %v4546 = vpack.c.b16 %v4424, %v4422
    %v4547 = vpack.c.b16 %v4427, %v4425
    %v4548 = vpack.c.b16 %v4428, %v4426
    %v4549 = vpack.c.b16 %v4431, %v4429
    %v4550 = vpack.c.b16 %v4432, %v4430
    %v4551 = vpack.c.b16 %v4435, %v4433
    %v4552 = vpack.c.b16 %v4436, %v4434
    %v4553 = vpack.c.b16 %v4439, %v4437
    %v4554 = vpack.c.b16 %v4440, %v4438
    %v4555 = vpack.c.b16 %v4443, %v4441
    %v4556 = vpack.c.b16 %v4444, %v4442
    %v4557 = vpack.c.b16 %v4447, %v4445
    %v4558 = vpack.c.b16 %v4448, %v4446
    %v4559 = vpack.c.b16 %v4451, %v4449
    %v4560 = vpack.c.b16 %v4452, %v4450
    %v4561 = vpack.c.b16 %v4455, %v4453
    %v4562 = vpack.c.b16 %v4456, %v4454
    %v4563 = vpack.c.b16 %v4459, %v4457
    %v4564 = vpack.c.b16 %v4460, %v4458
    %v4565 = vpack.c.b16 %v4463, %v4461
    %v4566 = vpack.c.b16 %v4464, %v4462
    %v4567 = vpack.c.b16 %v4467, %v4465
    %v4568 = vpack.c.b16 %v4468, %v4466
    %v4569 = vpack.c.b16 %v4471, %v4469
    %v4570 = vpack.c.b16 %v4472, %v4470
    %v4571 = vpack.c.b16 %v4475, %v4473
    %v4572 = vpack.c.b16 %v4476, %v4474
    %v4573 = vpack.c.b16 %v4479, %v4477
    %v4574 = vpack.c.b16 %v4480, %v4478
    %v4575 = vpack.c.b16 %v4483, %v4481
    %v4576 = vpack.c.b16 %v4484, %v4482
    %v4577 = vpack.c.b16 %v4487, %v4485
    %v4578 = vpack.c.b16 %v4488, %v4486
    %v4579 = vpack.c.b16 %v4491, %v4489
    %v4580 = vpack.c.b16 %v4492, %v4490
    %v4581 = vpack.c.b16 %v4495, %v4493
    %v4582 = vpack.c.b16 %v4496, %v4494
    %v4583 = vpack.c.b16 %v4499, %v4497
    %v4584 = vpack.c.b16 %v4500, %v4498
    %v4585 = vpack.c.b16 %v4503, %v4501
    %v4586 = vpack.c.b16 %v4504, %v4502
    %v4587 = vpack.c.b16 %v4507, %v4505
    %v4588 = vpack.c.b16 %v4508, %v4506
    %v4589 = vpack.c.b16 %v4511, %v4509
    %v4590 = vpack.c.b16 %v4512, %v4510
    %v4591 = vpack.c.b16 %v4515, %v4513
    %v4592 = vpack.c.b16 %v4516, %v4514
    %v4593 = vpack.c.b16 %v4519, %v4517
    %v4594 = vpack.c.b16 %v4520, %v4518
    %v4595 = vpack.c.b16 %v4523, %v4521
    %v4596 = vpack.c.b16 %v4524, %v4522
    %v4597 = vpack.c.b16 %v4527, %v4525
    %v4598 = vpack.c.b16 %v4528, %v4526
    %v4599 = vpack.c.b16 %v4531, %v4529
    %v4600 = vpack.c.b16 %v4532, %v4530
    %v4601 = vpack.c.b16 %v4535, %v4533
    %v4602 = vpack.c.b16 %v4536, %v4534
    %v4603 = vpack.c.b16 %v4539, %v4537
    %v4604 = vpack.c.b16 %v4540, %v4538
    %4669 = vmatpush.bf16.msra.mxu0 %v4555
    %4670 = vmatpush.bf16.msra.mxu0 %v4553
    %4671 = vmatpush.bf16.msra.mxu0 %v4551
    %4672 = vmatpush.bf16.msra.mxu0 %v4549
    %4673 = vmatpush.bf16.msra.mxu0 %v4547
    %4674 = vmatpush.bf16.msra.mxu0 %v4545
    %4675 = vmatpush.bf16.msra.mxu0 %v4543
    %4676 = vmatpush.bf16.msra.mxu0 %v4541
    %4677 = vmatmul.bf16.gmra.mxu0 %v4269
    %v4678 = vpop.f32.mrf.mxu0
    %v4679 = vadd.f32 0.0, %v4678
    %v4680 = vpop.f32.mrf.mxu0
    %v4681 = vadd.f32 0.0, %v4680
    %4682 = vmatmul.bf16.gmra.mxu0 %v4273
    %v4683 = vpop.f32.mrf.mxu0
    %v4684 = vadd.f32 0.0, %v4683
    %v4685 = vpop.f32.mrf.mxu0
    %v4686 = vadd.f32 0.0, %v4685
    %4687 = vmatmul.bf16.gmra.mxu0 %v4277
    %v4688 = vpop.f32.mrf.mxu0
    %v4689 = vadd.f32 0.0, %v4688
    %v4690 = vpop.f32.mrf.mxu0
    %v4691 = vadd.f32 0.0, %v4690
    %4692 = vmatmul.bf16.gmra.mxu0 %v4281
    %v4693 = vpop.f32.mrf.mxu0
    %v4694 = vadd.f32 0.0, %v4693
    %v4695 = vpop.f32.mrf.mxu0
    %v4696 = vadd.f32 0.0, %v4695
    %4697 = vdwg.mxu0
    %4698 = vmatpush.bf16.msra.mxu0 %v4571
    %4699 = vmatpush.bf16.msra.mxu0 %v4569
    %4700 = vmatpush.bf16.msra.mxu0 %v4567
    %4701 = vmatpush.bf16.msra.mxu0 %v4565
    %4702 = vmatpush.bf16.msra.mxu0 %v4563
    %4703 = vmatpush.bf16.msra.mxu0 %v4561
    %4704 = vmatpush.bf16.msra.mxu0 %v4559
    %4705 = vmatpush.bf16.msra.mxu0 %v4557
    %4706 = vmatmul.bf16.gmra.mxu0 %v4270
    %v4707 = vpop.f32.mrf.mxu0
    %v4708 = vadd.f32 %v4679, %v4707
    %v4709 = vpop.f32.mrf.mxu0
    %v4710 = vadd.f32 %v4681, %v4709
    %4711 = vmatmul.bf16.gmra.mxu0 %v4274
    %v4712 = vpop.f32.mrf.mxu0
    %v4713 = vadd.f32 %v4684, %v4712
    %v4714 = vpop.f32.mrf.mxu0
    %v4715 = vadd.f32 %v4686, %v4714
    %4716 = vmatmul.bf16.gmra.mxu0 %v4278
    %v4717 = vpop.f32.mrf.mxu0
    %v4718 = vadd.f32 %v4689, %v4717
    %v4719 = vpop.f32.mrf.mxu0
    %v4720 = vadd.f32 %v4691, %v4719
    %4721 = vmatmul.bf16.gmra.mxu0 %v4282
    %v4722 = vpop.f32.mrf.mxu0
    %v4723 = vadd.f32 %v4694, %v4722
    %v4724 = vpop.f32.mrf.mxu0
    %v4725 = vadd.f32 %v4696, %v4724
    %4726 = vdwg.mxu0
    %4727 = vmatpush.bf16.msra.mxu0 %v4587
    %4728 = vmatpush.bf16.msra.mxu0 %v4585
    %4729 = vmatpush.bf16.msra.mxu0 %v4583
    %4730 = vmatpush.bf16.msra.mxu0 %v4581
    %4731 = vmatpush.bf16.msra.mxu0 %v4579
    %4732 = vmatpush.bf16.msra.mxu0 %v4577
    %4733 = vmatpush.bf16.msra.mxu0 %v4575
    %4734 = vmatpush.bf16.msra.mxu0 %v4573
    %4735 = vmatmul.bf16.gmra.mxu0 %v4271
    %v4736 = vpop.f32.mrf.mxu0
    %v4737 = vadd.f32 %v4708, %v4736
    %v4738 = vpop.f32.mrf.mxu0
    %v4739 = vadd.f32 %v4710, %v4738
    %4740 = vmatmul.bf16.gmra.mxu0 %v4275
    %v4741 = vpop.f32.mrf.mxu0
    %v4742 = vadd.f32 %v4713, %v4741
    %v4743 = vpop.f32.mrf.mxu0
    %v4744 = vadd.f32 %v4715, %v4743
    %4745 = vmatmul.bf16.gmra.mxu0 %v4279
    %v4746 = vpop.f32.mrf.mxu0
    %v4747 = vadd.f32 %v4718, %v4746
    %v4748 = vpop.f32.mrf.mxu0
    %v4749 = vadd.f32 %v4720, %v4748
    %4750 = vmatmul.bf16.gmra.mxu0 %v4283
    %v4751 = vpop.f32.mrf.mxu0
    %v4752 = vadd.f32 %v4723, %v4751
    %v4753 = vpop.f32.mrf.mxu0
    %v4754 = vadd.f32 %v4725, %v4753
    %4755 = vdwg.mxu0
    %4756 = vmatpush.bf16.msra.mxu0 %v4603
    %4757 = vmatpush.bf16.msra.mxu0 %v4601
    %4758 = vmatpush.bf16.msra.mxu0 %v4599
    %4759 = vmatpush.bf16.msra.mxu0 %v4597
    %4760 = vmatpush.bf16.msra.mxu0 %v4595
    %4761 = vmatpush.bf16.msra.mxu0 %v4593
    %4762 = vmatpush.bf16.msra.mxu0 %v4591
    %4763 = vmatpush.bf16.msra.mxu0 %v4589
    %4764 = vmatmul.bf16.gmra.mxu0 %v4272
    %v4765 = vpop.f32.mrf.mxu0
    %v4766 = vadd.f32 %v4737, %v4765
    %v4767 = vpop.f32.mrf.mxu0
    %v4768 = vadd.f32 %v4739, %v4767
    %4769 = vmatmul.bf16.gmra.mxu0 %v4276
    %v4770 = vpop.f32.mrf.mxu0
    %v4771 = vadd.f32 %v4742, %v4770
    %v4772 = vpop.f32.mrf.mxu0
    %v4773 = vadd.f32 %v4744, %v4772
    %4774 = vmatmul.bf16.gmra.mxu0 %v4280
    %v4775 = vpop.f32.mrf.mxu0
    %v4776 = vadd.f32 %v4747, %v4775
    %v4777 = vpop.f32.mrf.mxu0
    %v4778 = vadd.f32 %v4749, %v4777
    %4779 = vmatmul.bf16.gmra.mxu0 %v4284
    %v4780 = vpop.f32.mrf.mxu0
    %v4781 = vadd.f32 %v4752, %v4780
    %v4782 = vpop.f32.mrf.mxu0
    %v4783 = vadd.f32 %v4754, %v4782
    %4784 = vdwg.mxu0
    %4785 = vmatpush.bf16.msra.mxu0 %v4556
    %4786 = vmatpush.bf16.msra.mxu0 %v4554
    %4787 = vmatpush.bf16.msra.mxu0 %v4552
    %4788 = vmatpush.bf16.msra.mxu0 %v4550
    %4789 = vmatpush.bf16.msra.mxu0 %v4548
    %4790 = vmatpush.bf16.msra.mxu0 %v4546
    %4791 = vmatpush.bf16.msra.mxu0 %v4544
    %4792 = vmatpush.bf16.msra.mxu0 %v4542
    %4793 = vmatmul.bf16.gmra.mxu0 %v4269
    %v4794 = vpop.f32.mrf.mxu0
    %v4795 = vadd.f32 0.0, %v4794
    %v4796 = vpop.f32.mrf.mxu0
    %v4797 = vadd.f32 0.0, %v4796
    %4798 = vmatmul.bf16.gmra.mxu0 %v4273
    %v4799 = vpop.f32.mrf.mxu0
    %v4800 = vadd.f32 0.0, %v4799
    %v4801 = vpop.f32.mrf.mxu0
    %v4802 = vadd.f32 0.0, %v4801
    %4803 = vmatmul.bf16.gmra.mxu0 %v4277
    %v4804 = vpop.f32.mrf.mxu0
    %v4805 = vadd.f32 0.0, %v4804
    %v4806 = vpop.f32.mrf.mxu0
    %v4807 = vadd.f32 0.0, %v4806
    %4808 = vmatmul.bf16.gmra.mxu0 %v4281
    %v4809 = vpop.f32.mrf.mxu0
    %v4810 = vadd.f32 0.0, %v4809
    %v4811 = vpop.f32.mrf.mxu0
    %v4812 = vadd.f32 0.0, %v4811
    %4813 = vdwg.mxu0
    %4814 = vmatpush.bf16.msra.mxu0 %v4572
    %4815 = vmatpush.bf16.msra.mxu0 %v4570
    %4816 = vmatpush.bf16.msra.mxu0 %v4568
    %4817 = vmatpush.bf16.msra.mxu0 %v4566
    %4818 = vmatpush.bf16.msra.mxu0 %v4564
    %4819 = vmatpush.bf16.msra.mxu0 %v4562
    %4820 = vmatpush.bf16.msra.mxu0 %v4560
    %4821 = vmatpush.bf16.msra.mxu0 %v4558
    %4822 = vmatmul.bf16.gmra.mxu0 %v4270
    %v4823 = vpop.f32.mrf.mxu0
    %v4824 = vadd.f32 %v4795, %v4823
    %v4825 = vpop.f32.mrf.mxu0
    %v4826 = vadd.f32 %v4797, %v4825
    %4827 = vmatmul.bf16.gmra.mxu0 %v4274
    %v4828 = vpop.f32.mrf.mxu0
    %v4829 = vadd.f32 %v4800, %v4828
    %v4830 = vpop.f32.mrf.mxu0
    %v4831 = vadd.f32 %v4802, %v4830
    %4832 = vmatmul.bf16.gmra.mxu0 %v4278
    %v4833 = vpop.f32.mrf.mxu0
    %v4834 = vadd.f32 %v4805, %v4833
    %v4835 = vpop.f32.mrf.mxu0
    %v4836 = vadd.f32 %v4807, %v4835
    %4837 = vmatmul.bf16.gmra.mxu0 %v4282
    %v4838 = vpop.f32.mrf.mxu0
    %v4839 = vadd.f32 %v4810, %v4838
    %v4840 = vpop.f32.mrf.mxu0
    %v4841 = vadd.f32 %v4812, %v4840
    %4842 = vdwg.mxu0
    %4843 = vmatpush.bf16.msra.mxu0 %v4588
    %4844 = vmatpush.bf16.msra.mxu0 %v4586
    %4845 = vmatpush.bf16.msra.mxu0 %v4584
    %4846 = vmatpush.bf16.msra.mxu0 %v4582
    %4847 = vmatpush.bf16.msra.mxu0 %v4580
    %4848 = vmatpush.bf16.msra.mxu0 %v4578
    %4849 = vmatpush.bf16.msra.mxu0 %v4576
    %4850 = vmatpush.bf16.msra.mxu0 %v4574
    %4851 = vmatmul.bf16.gmra.mxu0 %v4271
    %v4852 = vpop.f32.mrf.mxu0
    %v4853 = vadd.f32 %v4824, %v4852
    %v4854 = vpop.f32.mrf.mxu0
    %v4855 = vadd.f32 %v4826, %v4854
    %4856 = vmatmul.bf16.gmra.mxu0 %v4275
    %v4857 = vpop.f32.mrf.mxu0
    %v4858 = vadd.f32 %v4829, %v4857
    %v4859 = vpop.f32.mrf.mxu0
    %v4860 = vadd.f32 %v4831, %v4859
    %4861 = vmatmul.bf16.gmra.mxu0 %v4279
    %v4862 = vpop.f32.mrf.mxu0
    %v4863 = vadd.f32 %v4834, %v4862
    %v4864 = vpop.f32.mrf.mxu0
    %v4865 = vadd.f32 %v4836, %v4864
    %4866 = vmatmul.bf16.gmra.mxu0 %v4283
    %v4867 = vpop.f32.mrf.mxu0
    %v4868 = vadd.f32 %v4839, %v4867
    %v4869 = vpop.f32.mrf.mxu0
    %v4870 = vadd.f32 %v4841, %v4869
    %4871 = vdwg.mxu0
    %4872 = vmatpush.bf16.msra.mxu0 %v4604
    %4873 = vmatpush.bf16.msra.mxu0 %v4602
    %4874 = vmatpush.bf16.msra.mxu0 %v4600
    %4875 = vmatpush.bf16.msra.mxu0 %v4598
    %4876 = vmatpush.bf16.msra.mxu0 %v4596
    %4877 = vmatpush.bf16.msra.mxu0 %v4594
    %4878 = vmatpush.bf16.msra.mxu0 %v4592
    %4879 = vmatpush.bf16.msra.mxu0 %v4590
    %4880 = vmatmul.bf16.gmra.mxu0 %v4272
    %v4881 = vpop.f32.mrf.mxu0
    %v4882 = vadd.f32 %v4853, %v4881
    %v4883 = vpop.f32.mrf.mxu0
    %v4884 = vadd.f32 %v4855, %v4883
    %4885 = vmatmul.bf16.gmra.mxu0 %v4276
    %v4886 = vpop.f32.mrf.mxu0
    %v4887 = vadd.f32 %v4858, %v4886
    %v4888 = vpop.f32.mrf.mxu0
    %v4889 = vadd.f32 %v4860, %v4888
    %4890 = vmatmul.bf16.gmra.mxu0 %v4280
    %v4891 = vpop.f32.mrf.mxu0
    %v4892 = vadd.f32 %v4863, %v4891
    %v4893 = vpop.f32.mrf.mxu0
    %v4894 = vadd.f32 %v4865, %v4893
    %4895 = vmatmul.bf16.gmra.mxu0 %v4284
    %v4896 = vpop.f32.mrf.mxu0
    %v4897 = vadd.f32 %v4868, %v4896
    %v4898 = vpop.f32.mrf.mxu0
    %v4899 = vadd.f32 %v4870, %v4898
    %4900 = vdwg.mxu0
    %4901 = vst [vmem:[#allocation17] sm:$0xff] %v4766
    %4902 = vst [vmem:[#allocation17 + $0x8] sm:$0xff] %v4882
    %4903 = vst [vmem:[#allocation17 + $0x10] sm:$0xff] %v4768
    %4904 = vst [vmem:[#allocation17 + $0x18] sm:$0xff] %v4884
    %4905 = vst [vmem:[#allocation17 + $0x20] sm:$0xff] %v4771
    %4906 = vst [vmem:[#allocation17 + $0x28] sm:$0xff] %v4887
    %4907 = vst [vmem:[#allocation17 + $0x30] sm:$0xff] %v4773
    %4908 = vst [vmem:[#allocation17 + $0x38] sm:$0xff] %v4889
    %4909 = vst [vmem:[#allocation17 + $0x40] sm:$0xff] %v4776
    %4910 = vst [vmem:[#allocation17 + $0x48] sm:$0xff] %v4892
    %4911 = vst [vmem:[#allocation17 + $0x50] sm:$0xff] %v4778
    %4912 = vst [vmem:[#allocation17 + $0x58] sm:$0xff] %v4894
    %4913 = vst [vmem:[#allocation17 + $0x60] sm:$0xff] %v4781
    %4914 = vst [vmem:[#allocation17 + $0x68] sm:$0xff] %v4897
    %4915 = vst [vmem:[#allocation17 + $0x70] sm:$0xff] %v4783
    %4916 = vst [vmem:[#allocation17 + $0x78] sm:$0xff] %v4899
    // Predicated region
    $region78: #{tpu_custom_call.1} parent=1 // pred_check
      _
    $region79: #{tpu_custom_call.1} parent=1 // pred_check_branch
      %4918 = sbr.rel (0) target = $region81
    $region80: #{tpu_custom_call.1} parent=1 // pred_region
      %4920 = vsyncadd [#allocation4], 0
      %s4921 = sshll.u32 [#allocation17], 4
      %s4922 = int_to_ptr.vmem [resolvable:$true] %s4921
      %s4923 = sshll.u32 %s10, 4
      %s4924 = int_to_ptr.hbm [resolvable:$true] %s4923
      %4929 = dma.vmem_to_hbm [thread:$0]  %s4922, 2048, %s4924, [#allocation4], 256, 256, 16
    $region81: #{tpu_custom_call.1} parent=1 // pred_fallthru
      _
    // Predicated region
    $region82: #{tpu_custom_call.1} parent=1 // pred_check
      _
    $region83: #{tpu_custom_call.1} parent=1 // pred_check_branch
      %4931 = sbr.rel (0) target = $region85
    $region84: #{tpu_custom_call.1} parent=1 // pred_region
      %4933 = dma.done [#allocation4], 2048
    $region85: #{tpu_custom_call.1} parent=1 // pred_fallthru
      _
    %4934 = vsyncpa [#allocation3], 1
    %4935 = vsyncpa [#allocation6], 1
    %4936 = vsyncpa [#allocation9], 1
    %4937 = vsyncpa [#allocation12], 1
    %4938 = vsyncpa [#allocation15], 1
    %4939 = vsyncpa [#allocation4], 1

</llo_original>
